<compile_context>
chip_gen: v6e
topology: v6e:2x2x1
jax: 0.10.0
libtpu: 0.0.40
codegen_flags: <defaults>
</compile_context>

<pallas_src>
import math

import jax
import jax.numpy as jnp
from jax import lax
from jax.experimental import pallas as pl
from jax.experimental.pallas import tpu as pltpu

LANE = 128


# --------------------------------------------------------------------------
# Pallas kernel: full GRU sequence + fused projections in one invocation
# --------------------------------------------------------------------------
def _make_gru_seq_kernel(N, S, H):
    """Kernel factory closing over static sizes.

    Ref layout (sequence-major rows: row index = s*N + n):
      x_ref     : (S*N, D)      inputs for every timestep
      wi_rz_ref : (D, 2H)       input weights for r,z   (cols [ir | iz])
      wi_n_ref  : (D, H)        input weights for n
      wh_rz_ref : (H, 2H)       hidden weights for r,z  (cols [hr | hz])
      wh_n_ref  : (H, H)        hidden weights for n
      bi_rz_ref : (1, 2H)  bi_n_ref : (1, H)   b_ih split
      bh_rz_ref : (1, 2H)  bh_n_ref : (1, H)   b_hh split
      wp_ref    : (H, P)        projection weight, zero-padded to P=128 lanes
      bp_ref    : (1, P)        projection bias,   zero-padded
      out_ref   : (S*N, P)      lane-dense projected outputs
      g_rz_ref  : (S*N, 2H)     VMEM scratch — hoisted input proj (r,z)
      g_n_ref   : (S*N, H)      VMEM scratch — hoisted input proj (n)
      hs_ref    : (S*N, H)      VMEM scratch — stacked hidden states
    """
    H2 = 2 * H

    def kernel(x_ref, wi_rz_ref, wi_n_ref, wh_rz_ref, wh_n_ref,
               bi_rz_ref, bi_n_ref, bh_rz_ref, bh_n_ref, wp_ref, bp_ref,
               out_ref, g_rz_ref, g_n_ref, hs_ref):
        # ---- 1) Input projection for ALL timesteps: bulk MXU matmuls ----
        x = x_ref[...]
        g_rz_ref[...] = (
            jnp.dot(x, wi_rz_ref[...], preferred_element_type=jnp.float32)
            + bi_rz_ref[...])
        g_n_ref[...] = (
            jnp.dot(x, wi_n_ref[...], preferred_element_type=jnp.float32)
            + bi_n_ref[...])

        # ---- 2) Hoist weights / bias broadcasts out of the step loop ----
        wh_rz = wh_rz_ref[...]                               # (H, 2H)
        wh_n = wh_n_ref[...]                                 # (H, H)
        bh_rz = jnp.broadcast_to(bh_rz_ref[...], (N, H2))    # (N, 2H)
        bh_n = jnp.broadcast_to(bh_n_ref[...], (N, H))       # (N, H)

        # ---- 3) Serial recurrence; hidden state lives in vregs ----
        # TODO(synk): hold wh_{rz,n} on the MXU across the unrolled steps with
        # pltpu.matmul_push_rhs / matmul_acc_lhs / matmul_pop (explicit MXU
        # weight residency) once validated at these tiny shapes.
        h = jnp.zeros((N, H), dtype=jnp.float32)
        for s in range(S):        # static unroll: S is small and known
            row = s * N           # static, sublane-aligned offset
            hh_rz = jnp.dot(h, wh_rz, preferred_element_type=jnp.float32) + bh_rz
            hh_n = jnp.dot(h, wh_n, preferred_element_type=jnp.float32) + bh_n
            # Fused r/z: ONE sigmoid (EUP) launch on lane-aligned operands.
            rz = jax.nn.sigmoid(g_rz_ref[pl.ds(row, N), :] + hh_rz)
            r = rz[:, 0:H]         # lanes [0, H): aligned with hh_n / g_n / h
            z = rz[:, H:H2]        # single lane relayout per step (unavoidable)
            n = jnp.tanh(g_n_ref[pl.ds(row, N), :] + r * hh_n)
            h = (1.0 - z) * n + z * h
            hs_ref[pl.ds(row, N), :] = h   # aligned store, off critical chain

        # ---- 4) Hoisted lane-dense output projection + bulk full-width store ----
        out_ref[...] = (
            jnp.dot(hs_ref[...], wp_ref[...], preferred_element_type=jnp.float32)
            + bp_ref[...]).astype(out_ref.dtype)

    return kernel


def _full_spec(shape):
    nd = len(shape)
    return pl.BlockSpec(shape, lambda i, _nd=nd: (0,) * _nd)


def gru_proj_pallas(x_nsd, w_ih, w_hh, b_ih, b_hh, w_proj, b_proj):
    """Single-layer batch_first GRU (zero initial state) + Linear projection.

    x_nsd : (N, S, D) float32
    w_ih  : (3H, D)  w_hh : (3H, H)  b_ih, b_hh : (3H,)   [PyTorch order r,z,n]
    w_proj: (D_out, H)  b_proj : (D_out,)
    returns (N, S, D_out) float32
    """
    N, S, D = x_nsd.shape
    H = w_hh.shape[1]
    D_out = w_proj.shape[0]
    H2, H3 = 2 * H, 3 * H
    P = max(LANE, ((D_out + LANE - 1) // LANE) * LANE)   # lane-dense output width
    f32 = jnp.float32

    # Sequence-major 2D slab for the kernel: row index = s*N + n.
    # (Layout plumbing, ~8 KiB; fuse into the kernel only for production sizes.)
    x_2d = jnp.transpose(x_nsd.astype(f32), (1, 0, 2)).reshape(S * N, D)

    # Pack & split gate weights (PyTorch row order r, z, n) for right-matmuls.
    wi = jnp.transpose(w_ih).astype(f32)          # (D, 3H) cols = [ir|iz|in]
    wh = jnp.transpose(w_hh).astype(f32)          # (H, 3H) cols = [hr|hz|hn]
    wi_rz, wi_n = wi[:, :H2], wi[:, H2:H3]
    wh_rz, wh_n = wh[:, :H2], wh[:, H2:H3]
    bi_rz = b_ih[:H2].reshape(1, H2).astype(f32)
    bi_n = b_ih[H2:].reshape(1, H).astype(f32)
    bh_rz = b_hh[:H2].reshape(1, H2).astype(f32)
    bh_n = b_hh[H2:].reshape(1, H).astype(f32)

    # Zero-pad the projection to 128 lanes -> full-width unmasked stores.
    wp = jnp.zeros((H, P), f32).at[:, :D_out].set(jnp.transpose(w_proj).astype(f32))
    bp = jnp.zeros((1, P), f32).at[0, :D_out].set(b_proj.astype(f32))

    kernel = _make_gru_seq_kernel(N, S, H)

    out_pad = pl.pallas_call(
        kernel,
        out_shape=jax.ShapeDtypeStruct((S * N, P), f32),
        grid_spec=pltpu.PrefetchScalarGridSpec(
            num_scalar_prefetch=0,
            grid=(1,),                                  # single invocation
            in_specs=[
                _full_spec((S * N, D)),
                _full_spec((D, H2)), _full_spec((D, H)),
                _full_spec((H, H2)), _full_spec((H, H)),
                _full_spec((1, H2)), _full_spec((1, H)),
                _full_spec((1, H2)), _full_spec((1, H)),
                _full_spec((H, P)), _full_spec((1, P)),
            ],
            out_specs=_full_spec((S * N, P)),
            scratch_shapes=[
                pltpu.VMEM((S * N, H2), f32),           # hoisted input proj (r,z)
                pltpu.VMEM((S * N, H), f32),            # hoisted input proj (n)
                pltpu.VMEM((S * N, H), f32),            # stacked hidden states
            ],
        ),
        compiler_params=pltpu.CompilerParams(
            dimension_semantics=("arbitrary",)),
    )(x_2d, wi_rz, wi_n, wh_rz, wh_n, bi_rz, bi_n, bh_rz, bh_n, wp, bp)

    # (S*N, P) -> slice lane padding -> (N, S, D_out)
    out_2d = out_pad[:, :D_out]
    return jnp.transpose(out_2d.reshape(S, N, D_out), (1, 0, 2))


# --------------------------------------------------------------------------
# GRUAlongFrequency forward: sequence along F, per-step features = T
# --------------------------------------------------------------------------
def gru_along_frequency_forward(x, params):
    """x: (B, C, F, T) -> (B, C, F, T)."""
    B, C, F_, T = x.shape
    x_seq = x.reshape(B * C, F_, T)                 # pure view, like torch .view
    out = gru_proj_pallas(x_seq, *params)           # (B*C, F, T)
    return out.reshape(B, C, F_, T)


# --------------------------------------------------------------------------
# Deterministic parameter init (matches PyTorch default init distributions)
# --------------------------------------------------------------------------
def init_gru_params(key, input_size, hidden_size):
    k = 1.0 / math.sqrt(hidden_size)
    k0, k1, k2, k3 = jax.random.split(key, 4)
    w_ih = jax.random.uniform(k0, (3 * hidden_size, input_size), jnp.float32, -k, k)
    w_hh = jax.random.uniform(k1, (3 * hidden_size, hidden_size), jnp.float32, -k, k)
    b_ih = jax.random.uniform(k2, (3 * hidden_size,), jnp.float32, -k, k)
    b_hh = jax.random.uniform(k3, (3 * hidden_size,), jnp.float32, -k, k)
    return w_ih, w_hh, b_ih, b_hh


def init_linear_params(key, in_features, out_features):
    k = 1.0 / math.sqrt(in_features)
    k0, k1 = jax.random.split(key)
    w = jax.random.uniform(k0, (out_features, in_features), jnp.float32, -k, k)
    b = jax.random.uniform(k1, (out_features,), jnp.float32, -k, k)
    return w, b


# --------------------------------------------------------------------------
# Pure-JAX reference (lax.scan) for correctness checking
# --------------------------------------------------------------------------
def gru_proj_ref(x_nsd, w_ih, w_hh, b_ih, b_hh, w_proj, b_proj):
    N, S, D = x_nsd.shape
    H = w_hh.shape[1]
    hp = lax.Precision.HIGHEST

    def step(h, x_t):
        gi = jnp.dot(x_t, w_ih.T, precision=hp) + b_ih
        gh = jnp.dot(h, w_hh.T, precision=hp) + b_hh
        r = jax.nn.sigmoid(gi[:, :H] + gh[:, :H])
        z = jax.nn.sigmoid(gi[:, H:2 * H] + gh[:, H:2 * H])
        n = jnp.tanh(gi[:, 2 * H:] + r * gh[:, 2 * H:])
        h = (1.0 - z) * n + z * h
        return h, jnp.dot(h, w_proj.T, precision=hp) + b_proj

    h0 = jnp.zeros((N, H), jnp.float32)
    _, ys = lax.scan(step, h0, jnp.transpose(x_nsd, (1, 0, 2)))
    return jnp.transpose(ys, (1, 0, 2))


def gru_along_frequency_ref(x, params):
    B, C, F_, T = x.shape
    x_seq = x.reshape(B * C, F_, T)
    out = gru_proj_ref(x_seq, *params)
    return out.reshape(B, C, F_, T)


# --------------------------------------------------------------------------
if __name__ == "__main__":
    B, C, Freq, Time = 2, 4, 16, 16
    hidden = 32

    key = jax.random.PRNGKey(0)
    kx, kg, kl = jax.random.split(key, 3)
    x = jax.random.normal(kx, (B, C, Freq, Time), jnp.float32)

    # GRUAlongFrequency: GRU(input=Time, hidden) + Linear(hidden -> Time)
    params = init_gru_params(kg, Time, hidden) + init_linear_params(kl, hidden, Time)

    fwd = jax.jit(gru_along_frequency_forward)
    out = jax.block_until_ready(fwd(x, params))
    assert out.shape == (B, C, Freq, Time), out.shape
    assert out.dtype == jnp.float32

    ref = jax.block_until_ready(gru_along_frequency_ref(x, params))
    max_err = float(jnp.max(jnp.abs(out - ref)))
    assert jnp.allclose(out, ref, atol=2e-3, rtol=2e-3), max_err

    print("KERNEL_OK")
</pallas_src>

<mosaic_0001>
module attributes {stable_mosaic.version = 11 : i64} {
  func.func @kernel(%arg0: i32, %arg1: memref<128x16xf32, #tpu.memory_space<vmem>>, %arg2: memref<16x64xf32, #tpu.memory_space<vmem>>, %arg3: memref<16x32xf32, #tpu.memory_space<vmem>>, %arg4: memref<32x64xf32, #tpu.memory_space<vmem>>, %arg5: memref<32x32xf32, #tpu.memory_space<vmem>>, %arg6: memref<1x64xf32, #tpu.memory_space<vmem>>, %arg7: memref<1x32xf32, #tpu.memory_space<vmem>>, %arg8: memref<1x64xf32, #tpu.memory_space<vmem>>, %arg9: memref<1x32xf32, #tpu.memory_space<vmem>>, %arg10: memref<32x128xf32, #tpu.memory_space<vmem>>, %arg11: memref<1x128xf32, #tpu.memory_space<vmem>>, %arg12: memref<128x128xf32, #tpu.memory_space<vmem>>, %arg13: memref<128x64xf32, #tpu.memory_space<vmem>>, %arg14: memref<128x32xf32, #tpu.memory_space<vmem>>, %arg15: memref<128x32xf32, #tpu.memory_space<vmem>>) attributes {dimension_semantics = [#tpu.dimension_semantics<arbitrary>], iteration_bounds = array<i64: 1>, scalar_prefetch = 0 : i64, scratch_operands = 3 : i64, tpu.core_type = #tpu.core_type<tc>, window_params = [{pipeline_mode = #tpu.pipeline_mode<synchronous>, transform_indices = @transform_0, window_bounds = array<i64: 128, 16>}, {pipeline_mode = #tpu.pipeline_mode<synchronous>, transform_indices = @transform_1, window_bounds = array<i64: 16, 64>}, {pipeline_mode = #tpu.pipeline_mode<synchronous>, transform_indices = @transform_2, window_bounds = array<i64: 16, 32>}, {pipeline_mode = #tpu.pipeline_mode<synchronous>, transform_indices = @transform_3, window_bounds = array<i64: 32, 64>}, {pipeline_mode = #tpu.pipeline_mode<synchronous>, transform_indices = @transform_4, window_bounds = array<i64: 32, 32>}, {pipeline_mode = #tpu.pipeline_mode<synchronous>, transform_indices = @transform_5, window_bounds = array<i64: 1, 64>}, {pipeline_mode = #tpu.pipeline_mode<synchronous>, transform_indices = @transform_6, window_bounds = array<i64: 1, 32>}, {pipeline_mode = #tpu.pipeline_mode<synchronous>, transform_indices = @transform_7, window_bounds = array<i64: 1, 64>}, {pipeline_mode = #tpu.pipeline_mode<synchronous>, transform_indices = @transform_8, window_bounds = array<i64: 1, 32>}, {pipeline_mode = #tpu.pipeline_mode<synchronous>, transform_indices = @transform_9, window_bounds = array<i64: 32, 128>}, {pipeline_mode = #tpu.pipeline_mode<synchronous>, transform_indices = @transform_10, window_bounds = array<i64: 1, 128>}, {pipeline_mode = #tpu.pipeline_mode<synchronous>, transform_indices = @transform_11, window_bounds = array<i64: 128, 128>}]} {
    %c0 = arith.constant 0 : index
    %c0_0 = arith.constant 0 : index
    %0 = vector.load %arg1[%c0, %c0_0] : memref<128x16xf32, #tpu.memory_space<vmem>>, vector<128x16xf32>
    %c0_1 = arith.constant 0 : index
    %c0_2 = arith.constant 0 : index
    %1 = vector.load %arg2[%c0_1, %c0_2] : memref<16x64xf32, #tpu.memory_space<vmem>>, vector<16x64xf32>
    %cst = arith.constant dense<0.000000e+00> : vector<128x64xf32>
    %2 = tpu.matmul %0, %1, %cst {dimension_numbers = #tpu.dot_dimension_numbers<[1], [0], [0], [1], [0, 0, 1, 1], [], []>} : vector<128x16xf32>, vector<16x64xf32>, vector<128x64xf32> -> vector<128x64xf32>
    %c0_3 = arith.constant 0 : index
    %c0_4 = arith.constant 0 : index
    %3 = vector.load %arg6[%c0_3, %c0_4] : memref<1x64xf32, #tpu.memory_space<vmem>>, vector<1x64xf32>
    %4 = vector.broadcast %3 : vector<1x64xf32> to vector<128x64xf32>
    %5 = arith.addf %2, %4 : vector<128x64xf32>
    %c0_5 = arith.constant 0 : index
    %c0_6 = arith.constant 0 : index
    %6 = vector.load %arg13[%c0_5, %c0_6] : memref<128x64xf32, #tpu.memory_space<vmem>>, vector<128x64xf32>
    tpu.vector_store %arg13[%c0_5, %c0_6], %5 {strides = array<i32>} : memref<128x64xf32, #tpu.memory_space<vmem>>, vector<128x64xf32>,
    %c0_7 = arith.constant 0 : index
    %c0_8 = arith.constant 0 : index
    %7 = vector.load %arg3[%c0_7, %c0_8] : memref<16x32xf32, #tpu.memory_space<vmem>>, vector<16x32xf32>
    %cst_9 = arith.constant dense<0.000000e+00> : vector<128x32xf32>
    %8 = tpu.matmul %0, %7, %cst_9 {dimension_numbers = #tpu.dot_dimension_numbers<[1], [0], [0], [1], [0, 0, 1, 1], [], []>} : vector<128x16xf32>, vector<16x32xf32>, vector<128x32xf32> -> vector<128x32xf32>
    %c0_10 = arith.constant 0 : index
    %c0_11 = arith.constant 0 : index
    %9 = vector.load %arg7[%c0_10, %c0_11] : memref<1x32xf32, #tpu.memory_space<vmem>>, vector<1x32xf32>
    %10 = vector.broadcast %9 : vector<1x32xf32> to vector<128x32xf32>
    %11 = arith.addf %8, %10 : vector<128x32xf32>
    %c0_12 = arith.constant 0 : index
    %c0_13 = arith.constant 0 : index
    %12 = vector.load %arg14[%c0_12, %c0_13] : memref<128x32xf32, #tpu.memory_space<vmem>>, vector<128x32xf32>
    tpu.vector_store %arg14[%c0_12, %c0_13], %11 {strides = array<i32>} : memref<128x32xf32, #tpu.memory_space<vmem>>, vector<128x32xf32>,
    %c0_14 = arith.constant 0 : index
    %c0_15 = arith.constant 0 : index
    %13 = vector.load %arg4[%c0_14, %c0_15] : memref<32x64xf32, #tpu.memory_space<vmem>>, vector<32x64xf32>
    %c0_16 = arith.constant 0 : index
    %c0_17 = arith.constant 0 : index
    %14 = vector.load %arg5[%c0_16, %c0_17] : memref<32x32xf32, #tpu.memory_space<vmem>>, vector<32x32xf32>
    %c0_18 = arith.constant 0 : index
    %c0_19 = arith.constant 0 : index
    %15 = vector.load %arg8[%c0_18, %c0_19] : memref<1x64xf32, #tpu.memory_space<vmem>>, vector<1x64xf32>
    %16 = vector.shape_cast %15 : vector<1x64xf32> to vector<1x64xf32>
    %17 = vector.broadcast %16 : vector<1x64xf32> to vector<8x64xf32>
    %c0_20 = arith.constant 0 : index
    %c0_21 = arith.constant 0 : index
    %18 = vector.load %arg9[%c0_20, %c0_21] : memref<1x32xf32, #tpu.memory_space<vmem>>, vector<1x32xf32>
    %19 = vector.shape_cast %18 : vector<1x32xf32> to vector<1x32xf32>
    %20 = vector.broadcast %19 : vector<1x32xf32> to vector<8x32xf32>
    %cst_22 = arith.constant 0.000000e+00 : f32
    %21 = vector.broadcast %cst_22 : f32 to vector<8x32xf32>
    %cst_23 = arith.constant dense<0.000000e+00> : vector<8x64xf32>
    %22 = tpu.matmul %21, %13, %cst_23 {dimension_numbers = #tpu.dot_dimension_numbers<[1], [0], [0], [1], [0, 0, 1, 1], [], []>} : vector<8x32xf32>, vector<32x64xf32>, vector<8x64xf32> -> vector<8x64xf32>
    %23 = arith.addf %22, %17 : vector<8x64xf32>
    %cst_24 = arith.constant dense<0.000000e+00> : vector<8x32xf32>
    %24 = tpu.matmul %21, %14, %cst_24 {dimension_numbers = #tpu.dot_dimension_numbers<[1], [0], [0], [1], [0, 0, 1, 1], [], []>} : vector<8x32xf32>, vector<32x32xf32>, vector<8x32xf32> -> vector<8x32xf32>
    %25 = arith.addf %24, %20 : vector<8x32xf32>
    %c0_25 = arith.constant 0 : index
    %c0_26 = arith.constant 0 : index
    %26 = vector.load %arg13[%c0_25, %c0_26] : memref<128x64xf32, #tpu.memory_space<vmem>>, vector<8x64xf32>
    %27 = arith.addf %26, %23 : vector<8x64xf32>
    %28 = arith.negf %27 : vector<8x64xf32>
    %29 = math.exp %28 : vector<8x64xf32>
    %cst_27 = arith.constant 1.000000e+00 : f32
    %30 = vector.broadcast %cst_27 : f32 to vector<8x64xf32>
    %31 = arith.addf %30, %29 : vector<8x64xf32>
    %32 = arith.divf %30, %31 : vector<8x64xf32>
    %33 = vector.extract_strided_slice %32 {offsets = [0, 0], sizes = [8, 32], strides = [1, 1]} : vector<8x64xf32> to vector<8x32xf32>
    %34 = vector.extract_strided_slice %32 {offsets = [0, 32], sizes = [8, 32], strides = [1, 1]} : vector<8x64xf32> to vector<8x32xf32>
    %c0_28 = arith.constant 0 : index
    %c0_29 = arith.constant 0 : index
    %35 = vector.load %arg14[%c0_28, %c0_29] : memref<128x32xf32, #tpu.memory_space<vmem>>, vector<8x32xf32>
    %36 = arith.mulf %33, %25 : vector<8x32xf32>
    %37 = arith.addf %35, %36 : vector<8x32xf32>
    %38 = math.tanh %37 : vector<8x32xf32>
    %cst_30 = arith.constant 1.000000e+00 : f32
    %39 = vector.broadcast %cst_30 : f32 to vector<8x32xf32>
    %40 = arith.subf %39, %34 : vector<8x32xf32>
    %41 = arith.mulf %40, %38 : vector<8x32xf32>
    %42 = arith.mulf %34, %21 : vector<8x32xf32>
    %43 = arith.addf %41, %42 : vector<8x32xf32>
    %c0_31 = arith.constant 0 : index
    %c0_32 = arith.constant 0 : index
    %44 = vector.load %arg15[%c0_31, %c0_32] : memref<128x32xf32, #tpu.memory_space<vmem>>, vector<8x32xf32>
    tpu.vector_store %arg15[%c0_31, %c0_32], %43 {strides = array<i32>} : memref<128x32xf32, #tpu.memory_space<vmem>>, vector<8x32xf32>,
    %cst_33 = arith.constant dense<0.000000e+00> : vector<8x64xf32>
    %45 = tpu.matmul %43, %13, %cst_33 {dimension_numbers = #tpu.dot_dimension_numbers<[1], [0], [0], [1], [0, 0, 1, 1], [], []>} : vector<8x32xf32>, vector<32x64xf32>, vector<8x64xf32> -> vector<8x64xf32>
    %46 = arith.addf %45, %17 : vector<8x64xf32>
    %cst_34 = arith.constant dense<0.000000e+00> : vector<8x32xf32>
    %47 = tpu.matmul %43, %14, %cst_34 {dimension_numbers = #tpu.dot_dimension_numbers<[1], [0], [0], [1], [0, 0, 1, 1], [], []>} : vector<8x32xf32>, vector<32x32xf32>, vector<8x32xf32> -> vector<8x32xf32>
    %48 = arith.addf %47, %20 : vector<8x32xf32>
    %c8 = arith.constant 8 : index
    %c0_35 = arith.constant 0 : index
    %49 = vector.load %arg13[%c8, %c0_35] : memref<128x64xf32, #tpu.memory_space<vmem>>, vector<8x64xf32>
    %50 = arith.addf %49, %46 : vector<8x64xf32>
    %51 = arith.negf %50 : vector<8x64xf32>
    %52 = math.exp %51 : vector<8x64xf32>
    %cst_36 = arith.constant 1.000000e+00 : f32
    %53 = vector.broadcast %cst_36 : f32 to vector<8x64xf32>
    %54 = arith.addf %53, %52 : vector<8x64xf32>
    %55 = arith.divf %53, %54 : vector<8x64xf32>
    %56 = vector.extract_strided_slice %55 {offsets = [0, 0], sizes = [8, 32], strides = [1, 1]} : vector<8x64xf32> to vector<8x32xf32>
    %57 = vector.extract_strided_slice %55 {offsets = [0, 32], sizes = [8, 32], strides = [1, 1]} : vector<8x64xf32> to vector<8x32xf32>
    %c8_37 = arith.constant 8 : index
    %c0_38 = arith.constant 0 : index
    %58 = vector.load %arg14[%c8_37, %c0_38] : memref<128x32xf32, #tpu.memory_space<vmem>>, vector<8x32xf32>
    %59 = arith.mulf %56, %48 : vector<8x32xf32>
    %60 = arith.addf %58, %59 : vector<8x32xf32>
    %61 = math.tanh %60 : vector<8x32xf32>
    %cst_39 = arith.constant 1.000000e+00 : f32
    %62 = vector.broadcast %cst_39 : f32 to vector<8x32xf32>
    %63 = arith.subf %62, %57 : vector<8x32xf32>
    %64 = arith.mulf %63, %61 : vector<8x32xf32>
    %65 = arith.mulf %57, %43 : vector<8x32xf32>
    %66 = arith.addf %64, %65 : vector<8x32xf32>
    %c8_40 = arith.constant 8 : index
    %c0_41 = arith.constant 0 : index
    %67 = vector.load %arg15[%c8_40, %c0_41] : memref<128x32xf32, #tpu.memory_space<vmem>>, vector<8x32xf32>
    tpu.vector_store %arg15[%c8_40, %c0_41], %66 {strides = array<i32>} : memref<128x32xf32, #tpu.memory_space<vmem>>, vector<8x32xf32>,
    %cst_42 = arith.constant dense<0.000000e+00> : vector<8x64xf32>
    %68 = tpu.matmul %66, %13, %cst_42 {dimension_numbers = #tpu.dot_dimension_numbers<[1], [0], [0], [1], [0, 0, 1, 1], [], []>} : vector<8x32xf32>, vector<32x64xf32>, vector<8x64xf32> -> vector<8x64xf32>
    %69 = arith.addf %68, %17 : vector<8x64xf32>
    %cst_43 = arith.constant dense<0.000000e+00> : vector<8x32xf32>
    %70 = tpu.matmul %66, %14, %cst_43 {dimension_numbers = #tpu.dot_dimension_numbers<[1], [0], [0], [1], [0, 0, 1, 1], [], []>} : vector<8x32xf32>, vector<32x32xf32>, vector<8x32xf32> -> vector<8x32xf32>
    %71 = arith.addf %70, %20 : vector<8x32xf32>
    %c16 = arith.constant 16 : index
    %c0_44 = arith.constant 0 : index
    %72 = vector.load %arg13[%c16, %c0_44] : memref<128x64xf32, #tpu.memory_space<vmem>>, vector<8x64xf32>
    %73 = arith.addf %72, %69 : vector<8x64xf32>
    %74 = arith.negf %73 : vector<8x64xf32>
    %75 = math.exp %74 : vector<8x64xf32>
    %cst_45 = arith.constant 1.000000e+00 : f32
    %76 = vector.broadcast %cst_45 : f32 to vector<8x64xf32>
    %77 = arith.addf %76, %75 : vector<8x64xf32>
    %78 = arith.divf %76, %77 : vector<8x64xf32>
    %79 = vector.extract_strided_slice %78 {offsets = [0, 0], sizes = [8, 32], strides = [1, 1]} : vector<8x64xf32> to vector<8x32xf32>
    %80 = vector.extract_strided_slice %78 {offsets = [0, 32], sizes = [8, 32], strides = [1, 1]} : vector<8x64xf32> to vector<8x32xf32>
    %c16_46 = arith.constant 16 : index
    %c0_47 = arith.constant 0 : index
    %81 = vector.load %arg14[%c16_46, %c0_47] : memref<128x32xf32, #tpu.memory_space<vmem>>, vector<8x32xf32>
    %82 = arith.mulf %79, %71 : vector<8x32xf32>
    %83 = arith.addf %81, %82 : vector<8x32xf32>
    %84 = math.tanh %83 : vector<8x32xf32>
    %cst_48 = arith.constant 1.000000e+00 : f32
    %85 = vector.broadcast %cst_48 : f32 to vector<8x32xf32>
    %86 = arith.subf %85, %80 : vector<8x32xf32>
    %87 = arith.mulf %86, %84 : vector<8x32xf32>
    %88 = arith.mulf %80, %66 : vector<8x32xf32>
    %89 = arith.addf %87, %88 : vector<8x32xf32>
    %c16_49 = arith.constant 16 : index
    %c0_50 = arith.constant 0 : index
    %90 = vector.load %arg15[%c16_49, %c0_50] : memref<128x32xf32, #tpu.memory_space<vmem>>, vector<8x32xf32>
    tpu.vector_store %arg15[%c16_49, %c0_50], %89 {strides = array<i32>} : memref<128x32xf32, #tpu.memory_space<vmem>>, vector<8x32xf32>,
    %cst_51 = arith.constant dense<0.000000e+00> : vector<8x64xf32>
    %91 = tpu.matmul %89, %13, %cst_51 {dimension_numbers = #tpu.dot_dimension_numbers<[1], [0], [0], [1], [0, 0, 1, 1], [], []>} : vector<8x32xf32>, vector<32x64xf32>, vector<8x64xf32> -> vector<8x64xf32>
    %92 = arith.addf %91, %17 : vector<8x64xf32>
    %cst_52 = arith.constant dense<0.000000e+00> : vector<8x32xf32>
    %93 = tpu.matmul %89, %14, %cst_52 {dimension_numbers = #tpu.dot_dimension_numbers<[1], [0], [0], [1], [0, 0, 1, 1], [], []>} : vector<8x32xf32>, vector<32x32xf32>, vector<8x32xf32> -> vector<8x32xf32>
    %94 = arith.addf %93, %20 : vector<8x32xf32>
    %c24 = arith.constant 24 : index
    %c0_53 = arith.constant 0 : index
    %95 = vector.load %arg13[%c24, %c0_53] : memref<128x64xf32, #tpu.memory_space<vmem>>, vector<8x64xf32>
    %96 = arith.addf %95, %92 : vector<8x64xf32>
    %97 = arith.negf %96 : vector<8x64xf32>
    %98 = math.exp %97 : vector<8x64xf32>
    %cst_54 = arith.constant 1.000000e+00 : f32
    %99 = vector.broadcast %cst_54 : f32 to vector<8x64xf32>
    %100 = arith.addf %99, %98 : vector<8x64xf32>
    %101 = arith.divf %99, %100 : vector<8x64xf32>
    %102 = vector.extract_strided_slice %101 {offsets = [0, 0], sizes = [8, 32], strides = [1, 1]} : vector<8x64xf32> to vector<8x32xf32>
    %103 = vector.extract_strided_slice %101 {offsets = [0, 32], sizes = [8, 32], strides = [1, 1]} : vector<8x64xf32> to vector<8x32xf32>
    %c24_55 = arith.constant 24 : index
    %c0_56 = arith.constant 0 : index
    %104 = vector.load %arg14[%c24_55, %c0_56] : memref<128x32xf32, #tpu.memory_space<vmem>>, vector<8x32xf32>
    %105 = arith.mulf %102, %94 : vector<8x32xf32>
    %106 = arith.addf %104, %105 : vector<8x32xf32>
    %107 = math.tanh %106 : vector<8x32xf32>
    %cst_57 = arith.constant 1.000000e+00 : f32
    %108 = vector.broadcast %cst_57 : f32 to vector<8x32xf32>
    %109 = arith.subf %108, %103 : vector<8x32xf32>
    %110 = arith.mulf %109, %107 : vector<8x32xf32>
    %111 = arith.mulf %103, %89 : vector<8x32xf32>
    %112 = arith.addf %110, %111 : vector<8x32xf32>
    %c24_58 = arith.constant 24 : index
    %c0_59 = arith.constant 0 : index
    %113 = vector.load %arg15[%c24_58, %c0_59] : memref<128x32xf32, #tpu.memory_space<vmem>>, vector<8x32xf32>
    tpu.vector_store %arg15[%c24_58, %c0_59], %112 {strides = array<i32>} : memref<128x32xf32, #tpu.memory_space<vmem>>, vector<8x32xf32>,
    %cst_60 = arith.constant dense<0.000000e+00> : vector<8x64xf32>
    %114 = tpu.matmul %112, %13, %cst_60 {dimension_numbers = #tpu.dot_dimension_numbers<[1], [0], [0], [1], [0, 0, 1, 1], [], []>} : vector<8x32xf32>, vector<32x64xf32>, vector<8x64xf32> -> vector<8x64xf32>
    %115 = arith.addf %114, %17 : vector<8x64xf32>
    %cst_61 = arith.constant dense<0.000000e+00> : vector<8x32xf32>
    %116 = tpu.matmul %112, %14, %cst_61 {dimension_numbers = #tpu.dot_dimension_numbers<[1], [0], [0], [1], [0, 0, 1, 1], [], []>} : vector<8x32xf32>, vector<32x32xf32>, vector<8x32xf32> -> vector<8x32xf32>
    %117 = arith.addf %116, %20 : vector<8x32xf32>
    %c32 = arith.constant 32 : index
    %c0_62 = arith.constant 0 : index
    %118 = vector.load %arg13[%c32, %c0_62] : memref<128x64xf32, #tpu.memory_space<vmem>>, vector<8x64xf32>
    %119 = arith.addf %118, %115 : vector<8x64xf32>
    %120 = arith.negf %119 : vector<8x64xf32>
    %121 = math.exp %120 : vector<8x64xf32>
    %cst_63 = arith.constant 1.000000e+00 : f32
    %122 = vector.broadcast %cst_63 : f32 to vector<8x64xf32>
    %123 = arith.addf %122, %121 : vector<8x64xf32>
    %124 = arith.divf %122, %123 : vector<8x64xf32>
    %125 = vector.extract_strided_slice %124 {offsets = [0, 0], sizes = [8, 32], strides = [1, 1]} : vector<8x64xf32> to vector<8x32xf32>
    %126 = vector.extract_strided_slice %124 {offsets = [0, 32], sizes = [8, 32], strides = [1, 1]} : vector<8x64xf32> to vector<8x32xf32>
    %c32_64 = arith.constant 32 : index
    %c0_65 = arith.constant 0 : index
    %127 = vector.load %arg14[%c32_64, %c0_65] : memref<128x32xf32, #tpu.memory_space<vmem>>, vector<8x32xf32>
    %128 = arith.mulf %125, %117 : vector<8x32xf32>
    %129 = arith.addf %127, %128 : vector<8x32xf32>
    %130 = math.tanh %129 : vector<8x32xf32>
    %cst_66 = arith.constant 1.000000e+00 : f32
    %131 = vector.broadcast %cst_66 : f32 to vector<8x32xf32>
    %132 = arith.subf %131, %126 : vector<8x32xf32>
    %133 = arith.mulf %132, %130 : vector<8x32xf32>
    %134 = arith.mulf %126, %112 : vector<8x32xf32>
    %135 = arith.addf %133, %134 : vector<8x32xf32>
    %c32_67 = arith.constant 32 : index
    %c0_68 = arith.constant 0 : index
    %136 = vector.load %arg15[%c32_67, %c0_68] : memref<128x32xf32, #tpu.memory_space<vmem>>, vector<8x32xf32>
    tpu.vector_store %arg15[%c32_67, %c0_68], %135 {strides = array<i32>} : memref<128x32xf32, #tpu.memory_space<vmem>>, vector<8x32xf32>,
    %cst_69 = arith.constant dense<0.000000e+00> : vector<8x64xf32>
    %137 = tpu.matmul %135, %13, %cst_69 {dimension_numbers = #tpu.dot_dimension_numbers<[1], [0], [0], [1], [0, 0, 1, 1], [], []>} : vector<8x32xf32>, vector<32x64xf32>, vector<8x64xf32> -> vector<8x64xf32>
    %138 = arith.addf %137, %17 : vector<8x64xf32>
    %cst_70 = arith.constant dense<0.000000e+00> : vector<8x32xf32>
    %139 = tpu.matmul %135, %14, %cst_70 {dimension_numbers = #tpu.dot_dimension_numbers<[1], [0], [0], [1], [0, 0, 1, 1], [], []>} : vector<8x32xf32>, vector<32x32xf32>, vector<8x32xf32> -> vector<8x32xf32>
    %140 = arith.addf %139, %20 : vector<8x32xf32>
    %c40 = arith.constant 40 : index
    %c0_71 = arith.constant 0 : index
    %141 = vector.load %arg13[%c40, %c0_71] : memref<128x64xf32, #tpu.memory_space<vmem>>, vector<8x64xf32>
    %142 = arith.addf %141, %138 : vector<8x64xf32>
    %143 = arith.negf %142 : vector<8x64xf32>
    %144 = math.exp %143 : vector<8x64xf32>
    %cst_72 = arith.constant 1.000000e+00 : f32
    %145 = vector.broadcast %cst_72 : f32 to vector<8x64xf32>
    %146 = arith.addf %145, %144 : vector<8x64xf32>
    %147 = arith.divf %145, %146 : vector<8x64xf32>
    %148 = vector.extract_strided_slice %147 {offsets = [0, 0], sizes = [8, 32], strides = [1, 1]} : vector<8x64xf32> to vector<8x32xf32>
    %149 = vector.extract_strided_slice %147 {offsets = [0, 32], sizes = [8, 32], strides = [1, 1]} : vector<8x64xf32> to vector<8x32xf32>
    %c40_73 = arith.constant 40 : index
    %c0_74 = arith.constant 0 : index
    %150 = vector.load %arg14[%c40_73, %c0_74] : memref<128x32xf32, #tpu.memory_space<vmem>>, vector<8x32xf32>
    %151 = arith.mulf %148, %140 : vector<8x32xf32>
    %152 = arith.addf %150, %151 : vector<8x32xf32>
    %153 = math.tanh %152 : vector<8x32xf32>
    %cst_75 = arith.constant 1.000000e+00 : f32
    %154 = vector.broadcast %cst_75 : f32 to vector<8x32xf32>
    %155 = arith.subf %154, %149 : vector<8x32xf32>
    %156 = arith.mulf %155, %153 : vector<8x32xf32>
    %157 = arith.mulf %149, %135 : vector<8x32xf32>
    %158 = arith.addf %156, %157 : vector<8x32xf32>
    %c40_76 = arith.constant 40 : index
    %c0_77 = arith.constant 0 : index
    %159 = vector.load %arg15[%c40_76, %c0_77] : memref<128x32xf32, #tpu.memory_space<vmem>>, vector<8x32xf32>
    tpu.vector_store %arg15[%c40_76, %c0_77], %158 {strides = array<i32>} : memref<128x32xf32, #tpu.memory_space<vmem>>, vector<8x32xf32>,
    %cst_78 = arith.constant dense<0.000000e+00> : vector<8x64xf32>
    %160 = tpu.matmul %158, %13, %cst_78 {dimension_numbers = #tpu.dot_dimension_numbers<[1], [0], [0], [1], [0, 0, 1, 1], [], []>} : vector<8x32xf32>, vector<32x64xf32>, vector<8x64xf32> -> vector<8x64xf32>
    %161 = arith.addf %160, %17 : vector<8x64xf32>
    %cst_79 = arith.constant dense<0.000000e+00> : vector<8x32xf32>
    %162 = tpu.matmul %158, %14, %cst_79 {dimension_numbers = #tpu.dot_dimension_numbers<[1], [0], [0], [1], [0, 0, 1, 1], [], []>} : vector<8x32xf32>, vector<32x32xf32>, vector<8x32xf32> -> vector<8x32xf32>
    %163 = arith.addf %162, %20 : vector<8x32xf32>
    %c48 = arith.constant 48 : index
    %c0_80 = arith.constant 0 : index
    %164 = vector.load %arg13[%c48, %c0_80] : memref<128x64xf32, #tpu.memory_space<vmem>>, vector<8x64xf32>
    %165 = arith.addf %164, %161 : vector<8x64xf32>
    %166 = arith.negf %165 : vector<8x64xf32>
    %167 = math.exp %166 : vector<8x64xf32>
    %cst_81 = arith.constant 1.000000e+00 : f32
    %168 = vector.broadcast %cst_81 : f32 to vector<8x64xf32>
    %169 = arith.addf %168, %167 : vector<8x64xf32>
    %170 = arith.divf %168, %169 : vector<8x64xf32>
    %171 = vector.extract_strided_slice %170 {offsets = [0, 0], sizes = [8, 32], strides = [1, 1]} : vector<8x64xf32> to vector<8x32xf32>
    %172 = vector.extract_strided_slice %170 {offsets = [0, 32], sizes = [8, 32], strides = [1, 1]} : vector<8x64xf32> to vector<8x32xf32>
    %c48_82 = arith.constant 48 : index
    %c0_83 = arith.constant 0 : index
    %173 = vector.load %arg14[%c48_82, %c0_83] : memref<128x32xf32, #tpu.memory_space<vmem>>, vector<8x32xf32>
    %174 = arith.mulf %171, %163 : vector<8x32xf32>
    %175 = arith.addf %173, %174 : vector<8x32xf32>
    %176 = math.tanh %175 : vector<8x32xf32>
    %cst_84 = arith.constant 1.000000e+00 : f32
    %177 = vector.broadcast %cst_84 : f32 to vector<8x32xf32>
    %178 = arith.subf %177, %172 : vector<8x32xf32>
    %179 = arith.mulf %178, %176 : vector<8x32xf32>
    %180 = arith.mulf %172, %158 : vector<8x32xf32>
    %181 = arith.addf %179, %180 : vector<8x32xf32>
    %c48_85 = arith.constant 48 : index
    %c0_86 = arith.constant 0 : index
    %182 = vector.load %arg15[%c48_85, %c0_86] : memref<128x32xf32, #tpu.memory_space<vmem>>, vector<8x32xf32>
    tpu.vector_store %arg15[%c48_85, %c0_86], %181 {strides = array<i32>} : memref<128x32xf32, #tpu.memory_space<vmem>>, vector<8x32xf32>,
    %cst_87 = arith.constant dense<0.000000e+00> : vector<8x64xf32>
    %183 = tpu.matmul %181, %13, %cst_87 {dimension_numbers = #tpu.dot_dimension_numbers<[1], [0], [0], [1], [0, 0, 1, 1], [], []>} : vector<8x32xf32>, vector<32x64xf32>, vector<8x64xf32> -> vector<8x64xf32>
    %184 = arith.addf %183, %17 : vector<8x64xf32>
    %cst_88 = arith.constant dense<0.000000e+00> : vector<8x32xf32>
    %185 = tpu.matmul %181, %14, %cst_88 {dimension_numbers = #tpu.dot_dimension_numbers<[1], [0], [0], [1], [0, 0, 1, 1], [], []>} : vector<8x32xf32>, vector<32x32xf32>, vector<8x32xf32> -> vector<8x32xf32>
    %186 = arith.addf %185, %20 : vector<8x32xf32>
    %c56 = arith.constant 56 : index
    %c0_89 = arith.constant 0 : index
    %187 = vector.load %arg13[%c56, %c0_89] : memref<128x64xf32, #tpu.memory_space<vmem>>, vector<8x64xf32>
    %188 = arith.addf %187, %184 : vector<8x64xf32>
    %189 = arith.negf %188 : vector<8x64xf32>
    %190 = math.exp %189 : vector<8x64xf32>
    %cst_90 = arith.constant 1.000000e+00 : f32
    %191 = vector.broadcast %cst_90 : f32 to vector<8x64xf32>
    %192 = arith.addf %191, %190 : vector<8x64xf32>
    %193 = arith.divf %191, %192 : vector<8x64xf32>
    %194 = vector.extract_strided_slice %193 {offsets = [0, 0], sizes = [8, 32], strides = [1, 1]} : vector<8x64xf32> to vector<8x32xf32>
    %195 = vector.extract_strided_slice %193 {offsets = [0, 32], sizes = [8, 32], strides = [1, 1]} : vector<8x64xf32> to vector<8x32xf32>
    %c56_91 = arith.constant 56 : index
    %c0_92 = arith.constant 0 : index
    %196 = vector.load %arg14[%c56_91, %c0_92] : memref<128x32xf32, #tpu.memory_space<vmem>>, vector<8x32xf32>
    %197 = arith.mulf %194, %186 : vector<8x32xf32>
    %198 = arith.addf %196, %197 : vector<8x32xf32>
    %199 = math.tanh %198 : vector<8x32xf32>
    %cst_93 = arith.constant 1.000000e+00 : f32
    %200 = vector.broadcast %cst_93 : f32 to vector<8x32xf32>
    %201 = arith.subf %200, %195 : vector<8x32xf32>
    %202 = arith.mulf %201, %199 : vector<8x32xf32>
    %203 = arith.mulf %195, %181 : vector<8x32xf32>
    %204 = arith.addf %202, %203 : vector<8x32xf32>
    %c56_94 = arith.constant 56 : index
    %c0_95 = arith.constant 0 : index
    %205 = vector.load %arg15[%c56_94, %c0_95] : memref<128x32xf32, #tpu.memory_space<vmem>>, vector<8x32xf32>
    tpu.vector_store %arg15[%c56_94, %c0_95], %204 {strides = array<i32>} : memref<128x32xf32, #tpu.memory_space<vmem>>, vector<8x32xf32>,
    %cst_96 = arith.constant dense<0.000000e+00> : vector<8x64xf32>
    %206 = tpu.matmul %204, %13, %cst_96 {dimension_numbers = #tpu.dot_dimension_numbers<[1], [0], [0], [1], [0, 0, 1, 1], [], []>} : vector<8x32xf32>, vector<32x64xf32>, vector<8x64xf32> -> vector<8x64xf32>
    %207 = arith.addf %206, %17 : vector<8x64xf32>
    %cst_97 = arith.constant dense<0.000000e+00> : vector<8x32xf32>
    %208 = tpu.matmul %204, %14, %cst_97 {dimension_numbers = #tpu.dot_dimension_numbers<[1], [0], [0], [1], [0, 0, 1, 1], [], []>} : vector<8x32xf32>, vector<32x32xf32>, vector<8x32xf32> -> vector<8x32xf32>
    %209 = arith.addf %208, %20 : vector<8x32xf32>
    %c64 = arith.constant 64 : index
    %c0_98 = arith.constant 0 : index
    %210 = vector.load %arg13[%c64, %c0_98] : memref<128x64xf32, #tpu.memory_space<vmem>>, vector<8x64xf32>
    %211 = arith.addf %210, %207 : vector<8x64xf32>
    %212 = arith.negf %211 : vector<8x64xf32>
    %213 = math.exp %212 : vector<8x64xf32>
    %cst_99 = arith.constant 1.000000e+00 : f32
    %214 = vector.broadcast %cst_99 : f32 to vector<8x64xf32>
    %215 = arith.addf %214, %213 : vector<8x64xf32>
    %216 = arith.divf %214, %215 : vector<8x64xf32>
    %217 = vector.extract_strided_slice %216 {offsets = [0, 0], sizes = [8, 32], strides = [1, 1]} : vector<8x64xf32> to vector<8x32xf32>
    %218 = vector.extract_strided_slice %216 {offsets = [0, 32], sizes = [8, 32], strides = [1, 1]} : vector<8x64xf32> to vector<8x32xf32>
    %c64_100 = arith.constant 64 : index
    %c0_101 = arith.constant 0 : index
    %219 = vector.load %arg14[%c64_100, %c0_101] : memref<128x32xf32, #tpu.memory_space<vmem>>, vector<8x32xf32>
    %220 = arith.mulf %217, %209 : vector<8x32xf32>
    %221 = arith.addf %219, %220 : vector<8x32xf32>
    %222 = math.tanh %221 : vector<8x32xf32>
    %cst_102 = arith.constant 1.000000e+00 : f32
    %223 = vector.broadcast %cst_102 : f32 to vector<8x32xf32>
    %224 = arith.subf %223, %218 : vector<8x32xf32>
    %225 = arith.mulf %224, %222 : vector<8x32xf32>
    %226 = arith.mulf %218, %204 : vector<8x32xf32>
    %227 = arith.addf %225, %226 : vector<8x32xf32>
    %c64_103 = arith.constant 64 : index
    %c0_104 = arith.constant 0 : index
    %228 = vector.load %arg15[%c64_103, %c0_104] : memref<128x32xf32, #tpu.memory_space<vmem>>, vector<8x32xf32>
    tpu.vector_store %arg15[%c64_103, %c0_104], %227 {strides = array<i32>} : memref<128x32xf32, #tpu.memory_space<vmem>>, vector<8x32xf32>,
    %cst_105 = arith.constant dense<0.000000e+00> : vector<8x64xf32>
    %229 = tpu.matmul %227, %13, %cst_105 {dimension_numbers = #tpu.dot_dimension_numbers<[1], [0], [0], [1], [0, 0, 1, 1], [], []>} : vector<8x32xf32>, vector<32x64xf32>, vector<8x64xf32> -> vector<8x64xf32>
    %230 = arith.addf %229, %17 : vector<8x64xf32>
    %cst_106 = arith.constant dense<0.000000e+00> : vector<8x32xf32>
    %231 = tpu.matmul %227, %14, %cst_106 {dimension_numbers = #tpu.dot_dimension_numbers<[1], [0], [0], [1], [0, 0, 1, 1], [], []>} : vector<8x32xf32>, vector<32x32xf32>, vector<8x32xf32> -> vector<8x32xf32>
    %232 = arith.addf %231, %20 : vector<8x32xf32>
    %c72 = arith.constant 72 : index
    %c0_107 = arith.constant 0 : index
    %233 = vector.load %arg13[%c72, %c0_107] : memref<128x64xf32, #tpu.memory_space<vmem>>, vector<8x64xf32>
    %234 = arith.addf %233, %230 : vector<8x64xf32>
    %235 = arith.negf %234 : vector<8x64xf32>
    %236 = math.exp %235 : vector<8x64xf32>
    %cst_108 = arith.constant 1.000000e+00 : f32
    %237 = vector.broadcast %cst_108 : f32 to vector<8x64xf32>
    %238 = arith.addf %237, %236 : vector<8x64xf32>
    %239 = arith.divf %237, %238 : vector<8x64xf32>
    %240 = vector.extract_strided_slice %239 {offsets = [0, 0], sizes = [8, 32], strides = [1, 1]} : vector<8x64xf32> to vector<8x32xf32>
    %241 = vector.extract_strided_slice %239 {offsets = [0, 32], sizes = [8, 32], strides = [1, 1]} : vector<8x64xf32> to vector<8x32xf32>
    %c72_109 = arith.constant 72 : index
    %c0_110 = arith.constant 0 : index
    %242 = vector.load %arg14[%c72_109, %c0_110] : memref<128x32xf32, #tpu.memory_space<vmem>>, vector<8x32xf32>
    %243 = arith.mulf %240, %232 : vector<8x32xf32>
    %244 = arith.addf %242, %243 : vector<8x32xf32>
    %245 = math.tanh %244 : vector<8x32xf32>
    %cst_111 = arith.constant 1.000000e+00 : f32
    %246 = vector.broadcast %cst_111 : f32 to vector<8x32xf32>
    %247 = arith.subf %246, %241 : vector<8x32xf32>
    %248 = arith.mulf %247, %245 : vector<8x32xf32>
    %249 = arith.mulf %241, %227 : vector<8x32xf32>
    %250 = arith.addf %248, %249 : vector<8x32xf32>
    %c72_112 = arith.constant 72 : index
    %c0_113 = arith.constant 0 : index
    %251 = vector.load %arg15[%c72_112, %c0_113] : memref<128x32xf32, #tpu.memory_space<vmem>>, vector<8x32xf32>
    tpu.vector_store %arg15[%c72_112, %c0_113], %250 {strides = array<i32>} : memref<128x32xf32, #tpu.memory_space<vmem>>, vector<8x32xf32>,
    %cst_114 = arith.constant dense<0.000000e+00> : vector<8x64xf32>
    %252 = tpu.matmul %250, %13, %cst_114 {dimension_numbers = #tpu.dot_dimension_numbers<[1], [0], [0], [1], [0, 0, 1, 1], [], []>} : vector<8x32xf32>, vector<32x64xf32>, vector<8x64xf32> -> vector<8x64xf32>
    %253 = arith.addf %252, %17 : vector<8x64xf32>
    %cst_115 = arith.constant dense<0.000000e+00> : vector<8x32xf32>
    %254 = tpu.matmul %250, %14, %cst_115 {dimension_numbers = #tpu.dot_dimension_numbers<[1], [0], [0], [1], [0, 0, 1, 1], [], []>} : vector<8x32xf32>, vector<32x32xf32>, vector<8x32xf32> -> vector<8x32xf32>
    %255 = arith.addf %254, %20 : vector<8x32xf32>
    %c80 = arith.constant 80 : index
    %c0_116 = arith.constant 0 : index
    %256 = vector.load %arg13[%c80, %c0_116] : memref<128x64xf32, #tpu.memory_space<vmem>>, vector<8x64xf32>
    %257 = arith.addf %256, %253 : vector<8x64xf32>
    %258 = arith.negf %257 : vector<8x64xf32>
    %259 = math.exp %258 : vector<8x64xf32>
    %cst_117 = arith.constant 1.000000e+00 : f32
    %260 = vector.broadcast %cst_117 : f32 to vector<8x64xf32>
    %261 = arith.addf %260, %259 : vector<8x64xf32>
    %262 = arith.divf %260, %261 : vector<8x64xf32>
    %263 = vector.extract_strided_slice %262 {offsets = [0, 0], sizes = [8, 32], strides = [1, 1]} : vector<8x64xf32> to vector<8x32xf32>
    %264 = vector.extract_strided_slice %262 {offsets = [0, 32], sizes = [8, 32], strides = [1, 1]} : vector<8x64xf32> to vector<8x32xf32>
    %c80_118 = arith.constant 80 : index
    %c0_119 = arith.constant 0 : index
    %265 = vector.load %arg14[%c80_118, %c0_119] : memref<128x32xf32, #tpu.memory_space<vmem>>, vector<8x32xf32>
    %266 = arith.mulf %263, %255 : vector<8x32xf32>
    %267 = arith.addf %265, %266 : vector<8x32xf32>
    %268 = math.tanh %267 : vector<8x32xf32>
    %cst_120 = arith.constant 1.000000e+00 : f32
    %269 = vector.broadcast %cst_120 : f32 to vector<8x32xf32>
    %270 = arith.subf %269, %264 : vector<8x32xf32>
    %271 = arith.mulf %270, %268 : vector<8x32xf32>
    %272 = arith.mulf %264, %250 : vector<8x32xf32>
    %273 = arith.addf %271, %272 : vector<8x32xf32>
    %c80_121 = arith.constant 80 : index
    %c0_122 = arith.constant 0 : index
    %274 = vector.load %arg15[%c80_121, %c0_122] : memref<128x32xf32, #tpu.memory_space<vmem>>, vector<8x32xf32>
    tpu.vector_store %arg15[%c80_121, %c0_122], %273 {strides = array<i32>} : memref<128x32xf32, #tpu.memory_space<vmem>>, vector<8x32xf32>,
    %cst_123 = arith.constant dense<0.000000e+00> : vector<8x64xf32>
    %275 = tpu.matmul %273, %13, %cst_123 {dimension_numbers = #tpu.dot_dimension_numbers<[1], [0], [0], [1], [0, 0, 1, 1], [], []>} : vector<8x32xf32>, vector<32x64xf32>, vector<8x64xf32> -> vector<8x64xf32>
    %276 = arith.addf %275, %17 : vector<8x64xf32>
    %cst_124 = arith.constant dense<0.000000e+00> : vector<8x32xf32>
    %277 = tpu.matmul %273, %14, %cst_124 {dimension_numbers = #tpu.dot_dimension_numbers<[1], [0], [0], [1], [0, 0, 1, 1], [], []>} : vector<8x32xf32>, vector<32x32xf32>, vector<8x32xf32> -> vector<8x32xf32>
    %278 = arith.addf %277, %20 : vector<8x32xf32>
    %c88 = arith.constant 88 : index
    %c0_125 = arith.constant 0 : index
    %279 = vector.load %arg13[%c88, %c0_125] : memref<128x64xf32, #tpu.memory_space<vmem>>, vector<8x64xf32>
    %280 = arith.addf %279, %276 : vector<8x64xf32>
    %281 = arith.negf %280 : vector<8x64xf32>
    %282 = math.exp %281 : vector<8x64xf32>
    %cst_126 = arith.constant 1.000000e+00 : f32
    %283 = vector.broadcast %cst_126 : f32 to vector<8x64xf32>
    %284 = arith.addf %283, %282 : vector<8x64xf32>
    %285 = arith.divf %283, %284 : vector<8x64xf32>
    %286 = vector.extract_strided_slice %285 {offsets = [0, 0], sizes = [8, 32], strides = [1, 1]} : vector<8x64xf32> to vector<8x32xf32>
    %287 = vector.extract_strided_slice %285 {offsets = [0, 32], sizes = [8, 32], strides = [1, 1]} : vector<8x64xf32> to vector<8x32xf32>
    %c88_127 = arith.constant 88 : index
    %c0_128 = arith.constant 0 : index
    %288 = vector.load %arg14[%c88_127, %c0_128] : memref<128x32xf32, #tpu.memory_space<vmem>>, vector<8x32xf32>
    %289 = arith.mulf %286, %278 : vector<8x32xf32>
    %290 = arith.addf %288, %289 : vector<8x32xf32>
    %291 = math.tanh %290 : vector<8x32xf32>
    %cst_129 = arith.constant 1.000000e+00 : f32
    %292 = vector.broadcast %cst_129 : f32 to vector<8x32xf32>
    %293 = arith.subf %292, %287 : vector<8x32xf32>
    %294 = arith.mulf %293, %291 : vector<8x32xf32>
    %295 = arith.mulf %287, %273 : vector<8x32xf32>
    %296 = arith.addf %294, %295 : vector<8x32xf32>
    %c88_130 = arith.constant 88 : index
    %c0_131 = arith.constant 0 : index
    %297 = vector.load %arg15[%c88_130, %c0_131] : memref<128x32xf32, #tpu.memory_space<vmem>>, vector<8x32xf32>
    tpu.vector_store %arg15[%c88_130, %c0_131], %296 {strides = array<i32>} : memref<128x32xf32, #tpu.memory_space<vmem>>, vector<8x32xf32>,
    %cst_132 = arith.constant dense<0.000000e+00> : vector<8x64xf32>
    %298 = tpu.matmul %296, %13, %cst_132 {dimension_numbers = #tpu.dot_dimension_numbers<[1], [0], [0], [1], [0, 0, 1, 1], [], []>} : vector<8x32xf32>, vector<32x64xf32>, vector<8x64xf32> -> vector<8x64xf32>
    %299 = arith.addf %298, %17 : vector<8x64xf32>
    %cst_133 = arith.constant dense<0.000000e+00> : vector<8x32xf32>
    %300 = tpu.matmul %296, %14, %cst_133 {dimension_numbers = #tpu.dot_dimension_numbers<[1], [0], [0], [1], [0, 0, 1, 1], [], []>} : vector<8x32xf32>, vector<32x32xf32>, vector<8x32xf32> -> vector<8x32xf32>
    %301 = arith.addf %300, %20 : vector<8x32xf32>
    %c96 = arith.constant 96 : index
    %c0_134 = arith.constant 0 : index
    %302 = vector.load %arg13[%c96, %c0_134] : memref<128x64xf32, #tpu.memory_space<vmem>>, vector<8x64xf32>
    %303 = arith.addf %302, %299 : vector<8x64xf32>
    %304 = arith.negf %303 : vector<8x64xf32>
    %305 = math.exp %304 : vector<8x64xf32>
    %cst_135 = arith.constant 1.000000e+00 : f32
    %306 = vector.broadcast %cst_135 : f32 to vector<8x64xf32>
    %307 = arith.addf %306, %305 : vector<8x64xf32>
    %308 = arith.divf %306, %307 : vector<8x64xf32>
    %309 = vector.extract_strided_slice %308 {offsets = [0, 0], sizes = [8, 32], strides = [1, 1]} : vector<8x64xf32> to vector<8x32xf32>
    %310 = vector.extract_strided_slice %308 {offsets = [0, 32], sizes = [8, 32], strides = [1, 1]} : vector<8x64xf32> to vector<8x32xf32>
    %c96_136 = arith.constant 96 : index
    %c0_137 = arith.constant 0 : index
    %311 = vector.load %arg14[%c96_136, %c0_137] : memref<128x32xf32, #tpu.memory_space<vmem>>, vector<8x32xf32>
    %312 = arith.mulf %309, %301 : vector<8x32xf32>
    %313 = arith.addf %311, %312 : vector<8x32xf32>
    %314 = math.tanh %313 : vector<8x32xf32>
    %cst_138 = arith.constant 1.000000e+00 : f32
    %315 = vector.broadcast %cst_138 : f32 to vector<8x32xf32>
    %316 = arith.subf %315, %310 : vector<8x32xf32>
    %317 = arith.mulf %316, %314 : vector<8x32xf32>
    %318 = arith.mulf %310, %296 : vector<8x32xf32>
    %319 = arith.addf %317, %318 : vector<8x32xf32>
    %c96_139 = arith.constant 96 : index
    %c0_140 = arith.constant 0 : index
    %320 = vector.load %arg15[%c96_139, %c0_140] : memref<128x32xf32, #tpu.memory_space<vmem>>, vector<8x32xf32>
    tpu.vector_store %arg15[%c96_139, %c0_140], %319 {strides = array<i32>} : memref<128x32xf32, #tpu.memory_space<vmem>>, vector<8x32xf32>,
    %cst_141 = arith.constant dense<0.000000e+00> : vector<8x64xf32>
    %321 = tpu.matmul %319, %13, %cst_141 {dimension_numbers = #tpu.dot_dimension_numbers<[1], [0], [0], [1], [0, 0, 1, 1], [], []>} : vector<8x32xf32>, vector<32x64xf32>, vector<8x64xf32> -> vector<8x64xf32>
    %322 = arith.addf %321, %17 : vector<8x64xf32>
    %cst_142 = arith.constant dense<0.000000e+00> : vector<8x32xf32>
    %323 = tpu.matmul %319, %14, %cst_142 {dimension_numbers = #tpu.dot_dimension_numbers<[1], [0], [0], [1], [0, 0, 1, 1], [], []>} : vector<8x32xf32>, vector<32x32xf32>, vector<8x32xf32> -> vector<8x32xf32>
    %324 = arith.addf %323, %20 : vector<8x32xf32>
    %c104 = arith.constant 104 : index
    %c0_143 = arith.constant 0 : index
    %325 = vector.load %arg13[%c104, %c0_143] : memref<128x64xf32, #tpu.memory_space<vmem>>, vector<8x64xf32>
    %326 = arith.addf %325, %322 : vector<8x64xf32>
    %327 = arith.negf %326 : vector<8x64xf32>
    %328 = math.exp %327 : vector<8x64xf32>
    %cst_144 = arith.constant 1.000000e+00 : f32
    %329 = vector.broadcast %cst_144 : f32 to vector<8x64xf32>
    %330 = arith.addf %329, %328 : vector<8x64xf32>
    %331 = arith.divf %329, %330 : vector<8x64xf32>
    %332 = vector.extract_strided_slice %331 {offsets = [0, 0], sizes = [8, 32], strides = [1, 1]} : vector<8x64xf32> to vector<8x32xf32>
    %333 = vector.extract_strided_slice %331 {offsets = [0, 32], sizes = [8, 32], strides = [1, 1]} : vector<8x64xf32> to vector<8x32xf32>
    %c104_145 = arith.constant 104 : index
    %c0_146 = arith.constant 0 : index
    %334 = vector.load %arg14[%c104_145, %c0_146] : memref<128x32xf32, #tpu.memory_space<vmem>>, vector<8x32xf32>
    %335 = arith.mulf %332, %324 : vector<8x32xf32>
    %336 = arith.addf %334, %335 : vector<8x32xf32>
    %337 = math.tanh %336 : vector<8x32xf32>
    %cst_147 = arith.constant 1.000000e+00 : f32
    %338 = vector.broadcast %cst_147 : f32 to vector<8x32xf32>
    %339 = arith.subf %338, %333 : vector<8x32xf32>
    %340 = arith.mulf %339, %337 : vector<8x32xf32>
    %341 = arith.mulf %333, %319 : vector<8x32xf32>
    %342 = arith.addf %340, %341 : vector<8x32xf32>
    %c104_148 = arith.constant 104 : index
    %c0_149 = arith.constant 0 : index
    %343 = vector.load %arg15[%c104_148, %c0_149] : memref<128x32xf32, #tpu.memory_space<vmem>>, vector<8x32xf32>
    tpu.vector_store %arg15[%c104_148, %c0_149], %342 {strides = array<i32>} : memref<128x32xf32, #tpu.memory_space<vmem>>, vector<8x32xf32>,
    %cst_150 = arith.constant dense<0.000000e+00> : vector<8x64xf32>
    %344 = tpu.matmul %342, %13, %cst_150 {dimension_numbers = #tpu.dot_dimension_numbers<[1], [0], [0], [1], [0, 0, 1, 1], [], []>} : vector<8x32xf32>, vector<32x64xf32>, vector<8x64xf32> -> vector<8x64xf32>
    %345 = arith.addf %344, %17 : vector<8x64xf32>
    %cst_151 = arith.constant dense<0.000000e+00> : vector<8x32xf32>
    %346 = tpu.matmul %342, %14, %cst_151 {dimension_numbers = #tpu.dot_dimension_numbers<[1], [0], [0], [1], [0, 0, 1, 1], [], []>} : vector<8x32xf32>, vector<32x32xf32>, vector<8x32xf32> -> vector<8x32xf32>
    %347 = arith.addf %346, %20 : vector<8x32xf32>
    %c112 = arith.constant 112 : index
    %c0_152 = arith.constant 0 : index
    %348 = vector.load %arg13[%c112, %c0_152] : memref<128x64xf32, #tpu.memory_space<vmem>>, vector<8x64xf32>
    %349 = arith.addf %348, %345 : vector<8x64xf32>
    %350 = arith.negf %349 : vector<8x64xf32>
    %351 = math.exp %350 : vector<8x64xf32>
    %cst_153 = arith.constant 1.000000e+00 : f32
    %352 = vector.broadcast %cst_153 : f32 to vector<8x64xf32>
    %353 = arith.addf %352, %351 : vector<8x64xf32>
    %354 = arith.divf %352, %353 : vector<8x64xf32>
    %355 = vector.extract_strided_slice %354 {offsets = [0, 0], sizes = [8, 32], strides = [1, 1]} : vector<8x64xf32> to vector<8x32xf32>
    %356 = vector.extract_strided_slice %354 {offsets = [0, 32], sizes = [8, 32], strides = [1, 1]} : vector<8x64xf32> to vector<8x32xf32>
    %c112_154 = arith.constant 112 : index
    %c0_155 = arith.constant 0 : index
    %357 = vector.load %arg14[%c112_154, %c0_155] : memref<128x32xf32, #tpu.memory_space<vmem>>, vector<8x32xf32>
    %358 = arith.mulf %355, %347 : vector<8x32xf32>
    %359 = arith.addf %357, %358 : vector<8x32xf32>
    %360 = math.tanh %359 : vector<8x32xf32>
    %cst_156 = arith.constant 1.000000e+00 : f32
    %361 = vector.broadcast %cst_156 : f32 to vector<8x32xf32>
    %362 = arith.subf %361, %356 : vector<8x32xf32>
    %363 = arith.mulf %362, %360 : vector<8x32xf32>
    %364 = arith.mulf %356, %342 : vector<8x32xf32>
    %365 = arith.addf %363, %364 : vector<8x32xf32>
    %c112_157 = arith.constant 112 : index
    %c0_158 = arith.constant 0 : index
    %366 = vector.load %arg15[%c112_157, %c0_158] : memref<128x32xf32, #tpu.memory_space<vmem>>, vector<8x32xf32>
    tpu.vector_store %arg15[%c112_157, %c0_158], %365 {strides = array<i32>} : memref<128x32xf32, #tpu.memory_space<vmem>>, vector<8x32xf32>,
    %cst_159 = arith.constant dense<0.000000e+00> : vector<8x64xf32>
    %367 = tpu.matmul %365, %13, %cst_159 {dimension_numbers = #tpu.dot_dimension_numbers<[1], [0], [0], [1], [0, 0, 1, 1], [], []>} : vector<8x32xf32>, vector<32x64xf32>, vector<8x64xf32> -> vector<8x64xf32>
    %368 = arith.addf %367, %17 : vector<8x64xf32>
    %cst_160 = arith.constant dense<0.000000e+00> : vector<8x32xf32>
    %369 = tpu.matmul %365, %14, %cst_160 {dimension_numbers = #tpu.dot_dimension_numbers<[1], [0], [0], [1], [0, 0, 1, 1], [], []>} : vector<8x32xf32>, vector<32x32xf32>, vector<8x32xf32> -> vector<8x32xf32>
    %370 = arith.addf %369, %20 : vector<8x32xf32>
    %c120 = arith.constant 120 : index
    %c0_161 = arith.constant 0 : index
    %371 = vector.load %arg13[%c120, %c0_161] : memref<128x64xf32, #tpu.memory_space<vmem>>, vector<8x64xf32>
    %372 = arith.addf %371, %368 : vector<8x64xf32>
    %373 = arith.negf %372 : vector<8x64xf32>
    %374 = math.exp %373 : vector<8x64xf32>
    %cst_162 = arith.constant 1.000000e+00 : f32
    %375 = vector.broadcast %cst_162 : f32 to vector<8x64xf32>
    %376 = arith.addf %375, %374 : vector<8x64xf32>
    %377 = arith.divf %375, %376 : vector<8x64xf32>
    %378 = vector.extract_strided_slice %377 {offsets = [0, 0], sizes = [8, 32], strides = [1, 1]} : vector<8x64xf32> to vector<8x32xf32>
    %379 = vector.extract_strided_slice %377 {offsets = [0, 32], sizes = [8, 32], strides = [1, 1]} : vector<8x64xf32> to vector<8x32xf32>
    %c120_163 = arith.constant 120 : index
    %c0_164 = arith.constant 0 : index
    %380 = vector.load %arg14[%c120_163, %c0_164] : memref<128x32xf32, #tpu.memory_space<vmem>>, vector<8x32xf32>
    %381 = arith.mulf %378, %370 : vector<8x32xf32>
    %382 = arith.addf %380, %381 : vector<8x32xf32>
    %383 = math.tanh %382 : vector<8x32xf32>
    %cst_165 = arith.constant 1.000000e+00 : f32
    %384 = vector.broadcast %cst_165 : f32 to vector<8x32xf32>
    %385 = arith.subf %384, %379 : vector<8x32xf32>
    %386 = arith.mulf %385, %383 : vector<8x32xf32>
    %387 = arith.mulf %379, %365 : vector<8x32xf32>
    %388 = arith.addf %386, %387 : vector<8x32xf32>
    %c120_166 = arith.constant 120 : index
    %c0_167 = arith.constant 0 : index
    %389 = vector.load %arg15[%c120_166, %c0_167] : memref<128x32xf32, #tpu.memory_space<vmem>>, vector<8x32xf32>
    tpu.vector_store %arg15[%c120_166, %c0_167], %388 {strides = array<i32>} : memref<128x32xf32, #tpu.memory_space<vmem>>, vector<8x32xf32>,
    %c0_168 = arith.constant 0 : index
    %c0_169 = arith.constant 0 : index
    %390 = vector.load %arg15[%c0_168, %c0_169] : memref<128x32xf32, #tpu.memory_space<vmem>>, vector<128x32xf32>
    %c0_170 = arith.constant 0 : index
    %c0_171 = arith.constant 0 : index
    %391 = vector.load %arg10[%c0_170, %c0_171] : memref<32x128xf32, #tpu.memory_space<vmem>>, vector<32x128xf32>
    %cst_172 = arith.constant dense<0.000000e+00> : vector<128x128xf32>
    %392 = tpu.matmul %390, %391, %cst_172 {dimension_numbers = #tpu.dot_dimension_numbers<[1], [0], [0], [1], [0, 0, 1, 1], [], []>} : vector<128x32xf32>, vector<32x128xf32>, vector<128x128xf32> -> vector<128x128xf32>
    %c0_173 = arith.constant 0 : index
    %c0_174 = arith.constant 0 : index
    %393 = vector.load %arg11[%c0_173, %c0_174] : memref<1x128xf32, #tpu.memory_space<vmem>>, vector<1x128xf32>
    %394 = vector.broadcast %393 : vector<1x128xf32> to vector<128x128xf32>
    %395 = arith.addf %392, %394 : vector<128x128xf32>
    %c0_175 = arith.constant 0 : index
    %c0_176 = arith.constant 0 : index
    %396 = vector.load %arg12[%c0_175, %c0_176] : memref<128x128xf32, #tpu.memory_space<vmem>>, vector<128x128xf32>
    tpu.vector_store %arg12[%c0_175, %c0_176], %395 {strides = array<i32>} : memref<128x128xf32, #tpu.memory_space<vmem>>, vector<128x128xf32>,
    return
  }
  func.func @transform_0(%arg0: i32) -> (i32, i32) {
    %c0_i32 = arith.constant 0 : i32
    %c0_i32_0 = arith.constant 0 : i32
    %c0_i32_1 = arith.constant 0 : i32
    return %c0_i32, %c0_i32_0 : i32, i32
  }
  func.func @transform_1(%arg0: i32) -> (i32, i32) {
    %c0_i32 = arith.constant 0 : i32
    %c0_i32_0 = arith.constant 0 : i32
    %c0_i32_1 = arith.constant 0 : i32
    return %c0_i32, %c0_i32_0 : i32, i32
  }
  func.func @transform_2(%arg0: i32) -> (i32, i32) {
    %c0_i32 = arith.constant 0 : i32
    %c0_i32_0 = arith.constant 0 : i32
    %c0_i32_1 = arith.constant 0 : i32
    return %c0_i32, %c0_i32_0 : i32, i32
  }
  func.func @transform_3(%arg0: i32) -> (i32, i32) {
    %c0_i32 = arith.constant 0 : i32
    %c0_i32_0 = arith.constant 0 : i32
    %c0_i32_1 = arith.constant 0 : i32
    return %c0_i32, %c0_i32_0 : i32, i32
  }
  func.func @transform_4(%arg0: i32) -> (i32, i32) {
    %c0_i32 = arith.constant 0 : i32
    %c0_i32_0 = arith.constant 0 : i32
    %c0_i32_1 = arith.constant 0 : i32
    return %c0_i32, %c0_i32_0 : i32, i32
  }
  func.func @transform_5(%arg0: i32) -> (i32, i32) {
    %c0_i32 = arith.constant 0 : i32
    %c0_i32_0 = arith.constant 0 : i32
    %c0_i32_1 = arith.constant 0 : i32
    return %c0_i32, %c0_i32_0 : i32, i32
  }
  func.func @transform_6(%arg0: i32) -> (i32, i32) {
    %c0_i32 = arith.constant 0 : i32
    %c0_i32_0 = arith.constant 0 : i32
    %c0_i32_1 = arith.constant 0 : i32
    return %c0_i32, %c0_i32_0 : i32, i32
  }
  func.func @transform_7(%arg0: i32) -> (i32, i32) {
    %c0_i32 = arith.constant 0 : i32
    %c0_i32_0 = arith.constant 0 : i32
    %c0_i32_1 = arith.constant 0 : i32
    return %c0_i32, %c0_i32_0 : i32, i32
  }
  func.func @transform_8(%arg0: i32) -> (i32, i32) {
    %c0_i32 = arith.constant 0 : i32
    %c0_i32_0 = arith.constant 0 : i32
    %c0_i32_1 = arith.constant 0 : i32
    return %c0_i32, %c0_i32_0 : i32, i32
  }
  func.func @transform_9(%arg0: i32) -> (i32, i32) {
    %c0_i32 = arith.constant 0 : i32
    %c0_i32_0 = arith.constant 0 : i32
    %c0_i32_1 = arith.constant 0 : i32
    return %c0_i32, %c0_i32_0 : i32, i32
  }
  func.func @transform_10(%arg0: i32) -> (i32, i32) {
    %c0_i32 = arith.constant 0 : i32
    %c0_i32_0 = arith.constant 0 : i32
    %c0_i32_1 = arith.constant 0 : i32
    return %c0_i32, %c0_i32_0 : i32, i32
  }
  func.func @transform_11(%arg0: i32) -> (i32, i32) {
    %c0_i32 = arith.constant 0 : i32
    %c0_i32_0 = arith.constant 0 : i32
    %c0_i32_1 = arith.constant 0 : i32
    return %c0_i32, %c0_i32_0 : i32, i32
  }
}

</mosaic_0001>

<llo_original>
// kernel: gru_along_frequency_forward.1
$region0: #{gru_along_frequency_forward.1}
  #allocation0 [shape = 'u32[]', space=smem, size = 0x4, offset = 0x4, fixed_abs, tag = 'smem constant byte address 0x4 - core index']
  #allocation1 [shape = 'u32[144,128]{1,0:T(1,128)}', space=vmem, size = 0x12000, scoped, tag = 'internal scratch']
  #allocation2 [shape = 'f32[128,64]{1,0:T(8,128)}', space=vmem, size = 0x10000, scoped, tag = 'scratch operand']
  #allocation3 [shape = 'f32[128,32]{1,0:T(8,128)}', space=vmem, size = 0x10000, scoped, tag = 'scratch operand']
  #allocation4 [shape = 'f32[128,32]{1,0:T(8,128)}', space=vmem, size = 0x10000, scoped, tag = 'scratch operand']
  %s0 = inlined_call_operand.vmem [shape: f32[128,16], index: 0, kind: input, shape index: {}]
  %s1 = inlined_call_operand.vmem [shape: f32[16,64], index: 1, kind: input, shape index: {}]
  %s2 = inlined_call_operand.vmem [shape: f32[16,32], index: 2, kind: input, shape index: {}]
  %s3 = inlined_call_operand.vmem [shape: f32[32,64], index: 3, kind: input, shape index: {}]
  %s4 = inlined_call_operand.vmem [shape: f32[32,32], index: 4, kind: input, shape index: {}]
  %s5 = inlined_call_operand.vmem [shape: f32[1,64], index: 5, kind: input, shape index: {}]
  %s6 = inlined_call_operand.vmem [shape: f32[1,32], index: 6, kind: input, shape index: {}]
  %s7 = inlined_call_operand.vmem [shape: f32[1,64], index: 7, kind: input, shape index: {}]
  %s8 = inlined_call_operand.vmem [shape: f32[1,32], index: 8, kind: input, shape index: {}]
  %s9 = inlined_call_operand.vmem [shape: f32[32,128], index: 9, kind: input, shape index: {}]
  %s10 = inlined_call_operand.vmem [shape: f32[1,128], index: 10, kind: input, shape index: {}]
  %s11 = inlined_call_operand.vmem [shape: f32[128,128], index: 11, kind: output, shape index: {}]
  %s12 = sld [smem:[#allocation0]]
  $region54: #{gru_along_frequency_forward.1} parent=0
    _
  %s14 = ssub.s32 1, %s12
  %s15 = scalar_select 0, %s14, %s12
  // Predicated region
  $region2: #{gru_along_frequency_forward.1} parent=0 // pred_check
    _
  $region3: #{gru_along_frequency_forward.1} parent=0 // pred_check_branch
    %17 = sbr.rel (0) target = $region5
  $region4: #{gru_along_frequency_forward.1} parent=0 // pred_region
    _
  $region5: #{gru_along_frequency_forward.1} parent=0 // pred_fallthru
    _
  // Predicated region
  $region6: #{gru_along_frequency_forward.1} parent=0 // pred_check
    _
  $region7: #{gru_along_frequency_forward.1} parent=0 // pred_check_branch
    %19 = sbr.rel (0) target = $region9
  $region8: #{gru_along_frequency_forward.1} parent=0 // pred_region
    _
  $region9: #{gru_along_frequency_forward.1} parent=0 // pred_fallthru
    _
  // Predicated region
  $region10: #{gru_along_frequency_forward.1} parent=0 // pred_check
    _
  $region11: #{gru_along_frequency_forward.1} parent=0 // pred_check_branch
    %21 = sbr.rel (0) target = $region13
  $region12: #{gru_along_frequency_forward.1} parent=0 // pred_region
    _
  $region13: #{gru_along_frequency_forward.1} parent=0 // pred_fallthru
    _
  // Predicated region
  $region14: #{gru_along_frequency_forward.1} parent=0 // pred_check
    _
  $region15: #{gru_along_frequency_forward.1} parent=0 // pred_check_branch
    %23 = sbr.rel (0) target = $region17
  $region16: #{gru_along_frequency_forward.1} parent=0 // pred_region
    _
  $region17: #{gru_along_frequency_forward.1} parent=0 // pred_fallthru
    _
  // Predicated region
  $region18: #{gru_along_frequency_forward.1} parent=0 // pred_check
    _
  $region19: #{gru_along_frequency_forward.1} parent=0 // pred_check_branch
    %25 = sbr.rel (0) target = $region21
  $region20: #{gru_along_frequency_forward.1} parent=0 // pred_region
    _
  $region21: #{gru_along_frequency_forward.1} parent=0 // pred_fallthru
    _
  // Predicated region
  $region22: #{gru_along_frequency_forward.1} parent=0 // pred_check
    _
  $region23: #{gru_along_frequency_forward.1} parent=0 // pred_check_branch
    %27 = sbr.rel (0) target = $region25
  $region24: #{gru_along_frequency_forward.1} parent=0 // pred_region
    _
  $region25: #{gru_along_frequency_forward.1} parent=0 // pred_fallthru
    _
  // Predicated region
  $region26: #{gru_along_frequency_forward.1} parent=0 // pred_check
    _
  $region27: #{gru_along_frequency_forward.1} parent=0 // pred_check_branch
    %29 = sbr.rel (0) target = $region29
  $region28: #{gru_along_frequency_forward.1} parent=0 // pred_region
    _
  $region29: #{gru_along_frequency_forward.1} parent=0 // pred_fallthru
    _
  // Predicated region
  $region30: #{gru_along_frequency_forward.1} parent=0 // pred_check
    _
  $region31: #{gru_along_frequency_forward.1} parent=0 // pred_check_branch
    %31 = sbr.rel (0) target = $region33
  $region32: #{gru_along_frequency_forward.1} parent=0 // pred_region
    _
  $region33: #{gru_along_frequency_forward.1} parent=0 // pred_fallthru
    _
  // Predicated region
  $region34: #{gru_along_frequency_forward.1} parent=0 // pred_check
    _
  $region35: #{gru_along_frequency_forward.1} parent=0 // pred_check_branch
    %33 = sbr.rel (0) target = $region37
  $region36: #{gru_along_frequency_forward.1} parent=0 // pred_region
    _
  $region37: #{gru_along_frequency_forward.1} parent=0 // pred_fallthru
    _
  // Predicated region
  $region38: #{gru_along_frequency_forward.1} parent=0 // pred_check
    _
  $region39: #{gru_along_frequency_forward.1} parent=0 // pred_check_branch
    %35 = sbr.rel (0) target = $region41
  $region40: #{gru_along_frequency_forward.1} parent=0 // pred_region
    _
  $region41: #{gru_along_frequency_forward.1} parent=0 // pred_fallthru
    _
  // Predicated region
  $region42: #{gru_along_frequency_forward.1} parent=0 // pred_check
    _
  $region43: #{gru_along_frequency_forward.1} parent=0 // pred_check_branch
    %37 = sbr.rel (0) target = $region45
  $region44: #{gru_along_frequency_forward.1} parent=0 // pred_region
    _
  $region45: #{gru_along_frequency_forward.1} parent=0 // pred_fallthru
    _
  %v38 = vld [vmem:[%s0] sm:$0xff]
  %v39 = vld [vmem:[%s0 + $0x8] sm:$0xff]
  %v40 = vld [vmem:[%s0 + $0x10] sm:$0xff]
  %v41 = vld [vmem:[%s0 + $0x18] sm:$0xff]
  %v42 = vld [vmem:[%s0 + $0x20] sm:$0xff]
  %v43 = vld [vmem:[%s0 + $0x28] sm:$0xff]
  %v44 = vld [vmem:[%s0 + $0x30] sm:$0xff]
  %v45 = vld [vmem:[%s0 + $0x38] sm:$0xff]
  %v46 = vld [vmem:[%s0 + $0x40] sm:$0xff]
  %v47 = vld [vmem:[%s0 + $0x48] sm:$0xff]
  %v48 = vld [vmem:[%s0 + $0x50] sm:$0xff]
  %v49 = vld [vmem:[%s0 + $0x58] sm:$0xff]
  %v50 = vld [vmem:[%s0 + $0x60] sm:$0xff]
  %v51 = vld [vmem:[%s0 + $0x68] sm:$0xff]
  %v52 = vld [vmem:[%s0 + $0x70] sm:$0xff]
  %v53 = vld [vmem:[%s0 + $0x78] sm:$0xff]
  %v54 = vld [vmem:[%s1] sm:$0xff]
  %v55 = vld [vmem:[%s1 + $0x8] sm:$0xff]
  %v56 = vld [vmem:[%s5] sm:$0x1]
  %v58 = vlaneseq
  %v59 = vshrl.u32 %v58, 7
  %v60 = vsub.s32 0, %v59
  %v61 = vrot.slane %v56, %v60
  %vm63 = vcmask 130048
  %v65 = vsel %vm63, %v38, 0
  %v68 = vsel %vm63, %v39, 0
  %v71 = vsel %vm63, %v40, 0
  %v74 = vsel %vm63, %v41, 0
  %v77 = vsel %vm63, %v42, 0
  %v80 = vsel %vm63, %v43, 0
  %v83 = vsel %vm63, %v44, 0
  %v86 = vsel %vm63, %v45, 0
  %v89 = vsel %vm63, %v46, 0
  %v92 = vsel %vm63, %v47, 0
  %v95 = vsel %vm63, %v48, 0
  %v98 = vsel %vm63, %v49, 0
  %v101 = vsel %vm63, %v50, 0
  %v104 = vsel %vm63, %v51, 0
  %v107 = vsel %vm63, %v52, 0
  %v110 = vsel %vm63, %v53, 0
  %112 = vmatprep.subr.mxu0 0.0
  %113 = vmatpush1.msra.mxu0 0.0
  %114 = vmatprep.subr.mxu0 0.0
  %115 = vmatpush1.msra.mxu0 0.0
  %116 = vmatprep.subr.mxu0 0.0
  %117 = vmatpush1.msra.mxu0 0.0
  %118 = vmatprep.subr.mxu0 0.0
  %119 = vmatpush1.msra.mxu0 0.0
  %120 = vmatprep.subr.mxu0 0.0
  %121 = vmatpush1.msra.mxu0 0.0
  %122 = vmatprep.subr.mxu0 0.0
  %123 = vmatpush1.msra.mxu0 0.0
  %124 = vmatprep.subr.mxu0 0.0
  %125 = vmatpush1.msra.mxu0 0.0
  %126 = vmatprep.subr.mxu0 0.0
  %127 = vmatpush1.msra.mxu0 0.0
  %128 = vmatprep.subr.mxu0 0.0
  %129 = vmatpush1.msra.mxu0 0.0
  %130 = vmatprep.subr.mxu0 0.0
  %131 = vmatpush1.msra.mxu0 0.0
  %132 = vmatprep.subr.mxu0 0.0
  %133 = vmatpush1.msra.mxu0 0.0
  %134 = vmatprep.subr.mxu0 0.0
  %135 = vmatpush1.msra.mxu0 0.0
  %136 = vmatprep.subr.mxu0 0.0
  %137 = vmatpush1.msra.mxu0 0.0
  %138 = vmatprep.subr.mxu0 0.0
  %139 = vmatpush1.msra.mxu0 0.0
  %140 = vmatprep.subr.mxu0 0.0
  %141 = vmatpush1.msra.mxu0 %v55
  %142 = vmatprep.subr.mxu0 0.0
  %143 = vmatpush1.msra.mxu0 %v54
  %144 = vmatprep.subr.mxu0 0.0
  %145 = vmatpush2.msra.mxu0 0.0
  %146 = vmatprep.subr.mxu0 0.0
  %147 = vmatpush2.msra.mxu0 0.0
  %148 = vmatprep.subr.mxu0 0.0
  %149 = vmatpush2.msra.mxu0 0.0
  %150 = vmatprep.subr.mxu0 0.0
  %151 = vmatpush2.msra.mxu0 0.0
  %152 = vmatprep.subr.mxu0 0.0
  %153 = vmatpush2.msra.mxu0 0.0
  %154 = vmatprep.subr.mxu0 0.0
  %155 = vmatpush2.msra.mxu0 0.0
  %156 = vmatprep.subr.mxu0 0.0
  %157 = vmatpush2.msra.mxu0 0.0
  %158 = vmatprep.subr.mxu0 0.0
  %159 = vmatpush2.msra.mxu0 0.0
  %160 = vmatprep.subr.mxu0 0.0
  %161 = vmatpush2.msra.mxu0 0.0
  %162 = vmatprep.subr.mxu0 0.0
  %163 = vmatpush2.msra.mxu0 0.0
  %164 = vmatprep.subr.mxu0 0.0
  %165 = vmatpush2.msra.mxu0 0.0
  %166 = vmatprep.subr.mxu0 0.0
  %167 = vmatpush2.msra.mxu0 0.0
  %168 = vmatprep.subr.mxu0 0.0
  %169 = vmatpush2.msra.mxu0 0.0
  %170 = vmatprep.subr.mxu0 0.0
  %171 = vmatpush2.msra.mxu0 0.0
  %172 = vmatprep.subr.mxu0 0.0
  %173 = vmatpush2.msra.mxu0 0.0
  %174 = vmatprep.subr.mxu0 0.0
  %175 = vmatpush2.msra.mxu0 0.0
  %176 = vmatprep.mubr.f32.mxu0 0.0
  %177 = vmatmul.mubr.f32.gmra.mxu0 %v65
  %v178 = vpop.f32.mrf.mxu0
  %v179 = vadd.f32 %v61, %v178
  %v180 = vpop.f32.mrf.mxu0
  %181 = vmatprep.mubr.f32.mxu0 0.0
  %182 = vmatmul.mubr.f32.gmra.mxu0 %v68
  %v183 = vpop.f32.mrf.mxu0
  %v184 = vadd.f32 %v61, %v183
  %v185 = vpop.f32.mrf.mxu0
  %186 = vmatprep.mubr.f32.mxu0 0.0
  %187 = vmatmul.mubr.f32.gmra.mxu0 %v71
  %v188 = vpop.f32.mrf.mxu0
  %v189 = vadd.f32 %v61, %v188
  %v190 = vpop.f32.mrf.mxu0
  %191 = vmatprep.mubr.f32.mxu0 0.0
  %192 = vmatmul.mubr.f32.gmra.mxu0 %v74
  %v193 = vpop.f32.mrf.mxu0
  %v194 = vadd.f32 %v61, %v193
  %v195 = vpop.f32.mrf.mxu0
  %196 = vmatprep.mubr.f32.mxu0 0.0
  %197 = vmatmul.mubr.f32.gmra.mxu0 %v77
  %v198 = vpop.f32.mrf.mxu0
  %v199 = vadd.f32 %v61, %v198
  %v200 = vpop.f32.mrf.mxu0
  %201 = vmatprep.mubr.f32.mxu0 0.0
  %202 = vmatmul.mubr.f32.gmra.mxu0 %v80
  %v203 = vpop.f32.mrf.mxu0
  %v204 = vadd.f32 %v61, %v203
  %v205 = vpop.f32.mrf.mxu0
  %206 = vmatprep.mubr.f32.mxu0 0.0
  %207 = vmatmul.mubr.f32.gmra.mxu0 %v83
  %v208 = vpop.f32.mrf.mxu0
  %v209 = vadd.f32 %v61, %v208
  %v210 = vpop.f32.mrf.mxu0
  %211 = vmatprep.mubr.f32.mxu0 0.0
  %212 = vmatmul.mubr.f32.gmra.mxu0 %v86
  %v213 = vpop.f32.mrf.mxu0
  %v214 = vadd.f32 %v61, %v213
  %v215 = vpop.f32.mrf.mxu0
  %216 = vmatprep.mubr.f32.mxu0 0.0
  %217 = vmatmul.mubr.f32.gmra.mxu0 %v89
  %v218 = vpop.f32.mrf.mxu0
  %v219 = vadd.f32 %v61, %v218
  %v220 = vpop.f32.mrf.mxu0
  %221 = vmatprep.mubr.f32.mxu0 0.0
  %222 = vmatmul.mubr.f32.gmra.mxu0 %v92
  %v223 = vpop.f32.mrf.mxu0
  %v224 = vadd.f32 %v61, %v223
  %v225 = vpop.f32.mrf.mxu0
  %226 = vmatprep.mubr.f32.mxu0 0.0
  %227 = vmatmul.mubr.f32.gmra.mxu0 %v95
  %v228 = vpop.f32.mrf.mxu0
  %v229 = vadd.f32 %v61, %v228
  %v230 = vpop.f32.mrf.mxu0
  %231 = vmatprep.mubr.f32.mxu0 0.0
  %232 = vmatmul.mubr.f32.gmra.mxu0 %v98
  %v233 = vpop.f32.mrf.mxu0
  %v234 = vadd.f32 %v61, %v233
  %v235 = vpop.f32.mrf.mxu0
  %236 = vmatprep.mubr.f32.mxu0 0.0
  %237 = vmatmul.mubr.f32.gmra.mxu0 %v101
  %v238 = vpop.f32.mrf.mxu0
  %v239 = vadd.f32 %v61, %v238
  %v240 = vpop.f32.mrf.mxu0
  %241 = vmatprep.mubr.f32.mxu0 0.0
  %242 = vmatmul.mubr.f32.gmra.mxu0 %v104
  %v243 = vpop.f32.mrf.mxu0
  %v244 = vadd.f32 %v61, %v243
  %v245 = vpop.f32.mrf.mxu0
  %246 = vmatprep.mubr.f32.mxu0 0.0
  %247 = vmatmul.mubr.f32.gmra.mxu0 %v107
  %v248 = vpop.f32.mrf.mxu0
  %v249 = vadd.f32 %v61, %v248
  %v250 = vpop.f32.mrf.mxu0
  %251 = vmatprep.mubr.f32.mxu0 0.0
  %252 = vmatmul.mubr.f32.gmra.mxu0 %v110
  %v253 = vpop.f32.mrf.mxu0
  %v254 = vadd.f32 %v61, %v253
  %v255 = vpop.f32.mrf.mxu0
  %256 = vdwg.mxu0
  %vm257 = vcmask 523264
  %258 = vst.msk [vmem:[#allocation2] sm:$0xff] %vm257, %v179
  %259 = vst.msk [vmem:[#allocation2 + $0x8] sm:$0xff] %vm257, %v184
  %260 = vst.msk [vmem:[#allocation2 + $0x10] sm:$0xff] %vm257, %v189
  %261 = vst.msk [vmem:[#allocation2 + $0x18] sm:$0xff] %vm257, %v194
  %262 = vst.msk [vmem:[#allocation2 + $0x20] sm:$0xff] %vm257, %v199
  %263 = vst.msk [vmem:[#allocation2 + $0x28] sm:$0xff] %vm257, %v204
  %264 = vst.msk [vmem:[#allocation2 + $0x30] sm:$0xff] %vm257, %v209
  %265 = vst.msk [vmem:[#allocation2 + $0x38] sm:$0xff] %vm257, %v214
  %266 = vst.msk [vmem:[#allocation2 + $0x40] sm:$0xff] %vm257, %v219
  %267 = vst.msk [vmem:[#allocation2 + $0x48] sm:$0xff] %vm257, %v224
  %268 = vst.msk [vmem:[#allocation2 + $0x50] sm:$0xff] %vm257, %v229
  %269 = vst.msk [vmem:[#allocation2 + $0x58] sm:$0xff] %vm257, %v234
  %270 = vst.msk [vmem:[#allocation2 + $0x60] sm:$0xff] %vm257, %v239
  %271 = vst.msk [vmem:[#allocation2 + $0x68] sm:$0xff] %vm257, %v244
  %272 = vst.msk [vmem:[#allocation2 + $0x70] sm:$0xff] %vm257, %v249
  %273 = vst.msk [vmem:[#allocation2 + $0x78] sm:$0xff] %vm257, %v254
  %v274 = vld [vmem:[%s2] sm:$0xff]
  %v275 = vld [vmem:[%s2 + $0x8] sm:$0xff]
  %v276 = vld [vmem:[%s6] sm:$0x1]
  %v278 = vlaneseq
  %v279 = vshrl.u32 %v278, 7
  %v280 = vsub.s32 0, %v279
  %v281 = vrot.slane %v276, %v280
  %283 = vmatprep.subr.mxu0 0.0
  %284 = vmatpush1.msra.mxu0 0.0
  %285 = vmatprep.subr.mxu0 0.0
  %286 = vmatpush1.msra.mxu0 0.0
  %287 = vmatprep.subr.mxu0 0.0
  %288 = vmatpush1.msra.mxu0 0.0
  %289 = vmatprep.subr.mxu0 0.0
  %290 = vmatpush1.msra.mxu0 0.0
  %291 = vmatprep.subr.mxu0 0.0
  %292 = vmatpush1.msra.mxu0 0.0
  %293 = vmatprep.subr.mxu0 0.0
  %294 = vmatpush1.msra.mxu0 0.0
  %295 = vmatprep.subr.mxu0 0.0
  %296 = vmatpush1.msra.mxu0 0.0
  %297 = vmatprep.subr.mxu0 0.0
  %298 = vmatpush1.msra.mxu0 0.0
  %299 = vmatprep.subr.mxu0 0.0
  %300 = vmatpush1.msra.mxu0 0.0
  %301 = vmatprep.subr.mxu0 0.0
  %302 = vmatpush1.msra.mxu0 0.0
  %303 = vmatprep.subr.mxu0 0.0
  %304 = vmatpush1.msra.mxu0 0.0
  %305 = vmatprep.subr.mxu0 0.0
  %306 = vmatpush1.msra.mxu0 0.0
  %307 = vmatprep.subr.mxu0 0.0
  %308 = vmatpush1.msra.mxu0 0.0
  %309 = vmatprep.subr.mxu0 0.0
  %310 = vmatpush1.msra.mxu0 0.0
  %311 = vmatprep.subr.mxu0 0.0
  %312 = vmatpush1.msra.mxu0 %v275
  %313 = vmatprep.subr.mxu0 0.0
  %314 = vmatpush1.msra.mxu0 %v274
  %315 = vmatprep.subr.mxu0 0.0
  %316 = vmatpush2.msra.mxu0 0.0
  %317 = vmatprep.subr.mxu0 0.0
  %318 = vmatpush2.msra.mxu0 0.0
  %319 = vmatprep.subr.mxu0 0.0
  %320 = vmatpush2.msra.mxu0 0.0
  %321 = vmatprep.subr.mxu0 0.0
  %322 = vmatpush2.msra.mxu0 0.0
  %323 = vmatprep.subr.mxu0 0.0
  %324 = vmatpush2.msra.mxu0 0.0
  %325 = vmatprep.subr.mxu0 0.0
  %326 = vmatpush2.msra.mxu0 0.0
  %327 = vmatprep.subr.mxu0 0.0
  %328 = vmatpush2.msra.mxu0 0.0
  %329 = vmatprep.subr.mxu0 0.0
  %330 = vmatpush2.msra.mxu0 0.0
  %331 = vmatprep.subr.mxu0 0.0
  %332 = vmatpush2.msra.mxu0 0.0
  %333 = vmatprep.subr.mxu0 0.0
  %334 = vmatpush2.msra.mxu0 0.0
  %335 = vmatprep.subr.mxu0 0.0
  %336 = vmatpush2.msra.mxu0 0.0
  %337 = vmatprep.subr.mxu0 0.0
  %338 = vmatpush2.msra.mxu0 0.0
  %339 = vmatprep.subr.mxu0 0.0
  %340 = vmatpush2.msra.mxu0 0.0
  %341 = vmatprep.subr.mxu0 0.0
  %342 = vmatpush2.msra.mxu0 0.0
  %343 = vmatprep.subr.mxu0 0.0
  %344 = vmatpush2.msra.mxu0 0.0
  %345 = vmatprep.subr.mxu0 0.0
  %346 = vmatpush2.msra.mxu0 0.0
  %347 = vmatprep.mubr.f32.mxu0 0.0
  %348 = vmatmul.mubr.f32.gmra.mxu0 %v65
  %v349 = vpop.f32.mrf.mxu0
  %v350 = vadd.f32 %v281, %v349
  %v351 = vpop.f32.mrf.mxu0
  %352 = vmatprep.mubr.f32.mxu0 0.0
  %353 = vmatmul.mubr.f32.gmra.mxu0 %v68
  %v354 = vpop.f32.mrf.mxu0
  %v355 = vadd.f32 %v281, %v354
  %v356 = vpop.f32.mrf.mxu0
  %357 = vmatprep.mubr.f32.mxu0 0.0
  %358 = vmatmul.mubr.f32.gmra.mxu0 %v71
  %v359 = vpop.f32.mrf.mxu0
  %v360 = vadd.f32 %v281, %v359
  %v361 = vpop.f32.mrf.mxu0
  %362 = vmatprep.mubr.f32.mxu0 0.0
  %363 = vmatmul.mubr.f32.gmra.mxu0 %v74
  %v364 = vpop.f32.mrf.mxu0
  %v365 = vadd.f32 %v281, %v364
  %v366 = vpop.f32.mrf.mxu0
  %367 = vmatprep.mubr.f32.mxu0 0.0
  %368 = vmatmul.mubr.f32.gmra.mxu0 %v77
  %v369 = vpop.f32.mrf.mxu0
  %v370 = vadd.f32 %v281, %v369
  %v371 = vpop.f32.mrf.mxu0
  %372 = vmatprep.mubr.f32.mxu0 0.0
  %373 = vmatmul.mubr.f32.gmra.mxu0 %v80
  %v374 = vpop.f32.mrf.mxu0
  %v375 = vadd.f32 %v281, %v374
  %v376 = vpop.f32.mrf.mxu0
  %377 = vmatprep.mubr.f32.mxu0 0.0
  %378 = vmatmul.mubr.f32.gmra.mxu0 %v83
  %v379 = vpop.f32.mrf.mxu0
  %v380 = vadd.f32 %v281, %v379
  %v381 = vpop.f32.mrf.mxu0
  %382 = vmatprep.mubr.f32.mxu0 0.0
  %383 = vmatmul.mubr.f32.gmra.mxu0 %v86
  %v384 = vpop.f32.mrf.mxu0
  %v385 = vadd.f32 %v281, %v384
  %v386 = vpop.f32.mrf.mxu0
  %387 = vmatprep.mubr.f32.mxu0 0.0
  %388 = vmatmul.mubr.f32.gmra.mxu0 %v89
  %v389 = vpop.f32.mrf.mxu0
  %v390 = vadd.f32 %v281, %v389
  %v391 = vpop.f32.mrf.mxu0
  %392 = vmatprep.mubr.f32.mxu0 0.0
  %393 = vmatmul.mubr.f32.gmra.mxu0 %v92
  %v394 = vpop.f32.mrf.mxu0
  %v395 = vadd.f32 %v281, %v394
  %v396 = vpop.f32.mrf.mxu0
  %397 = vmatprep.mubr.f32.mxu0 0.0
  %398 = vmatmul.mubr.f32.gmra.mxu0 %v95
  %v399 = vpop.f32.mrf.mxu0
  %v400 = vadd.f32 %v281, %v399
  %v401 = vpop.f32.mrf.mxu0
  %402 = vmatprep.mubr.f32.mxu0 0.0
  %403 = vmatmul.mubr.f32.gmra.mxu0 %v98
  %v404 = vpop.f32.mrf.mxu0
  %v405 = vadd.f32 %v281, %v404
  %v406 = vpop.f32.mrf.mxu0
  %407 = vmatprep.mubr.f32.mxu0 0.0
  %408 = vmatmul.mubr.f32.gmra.mxu0 %v101
  %v409 = vpop.f32.mrf.mxu0
  %v410 = vadd.f32 %v281, %v409
  %v411 = vpop.f32.mrf.mxu0
  %412 = vmatprep.mubr.f32.mxu0 0.0
  %413 = vmatmul.mubr.f32.gmra.mxu0 %v104
  %v414 = vpop.f32.mrf.mxu0
  %v415 = vadd.f32 %v281, %v414
  %v416 = vpop.f32.mrf.mxu0
  %417 = vmatprep.mubr.f32.mxu0 0.0
  %418 = vmatmul.mubr.f32.gmra.mxu0 %v107
  %v419 = vpop.f32.mrf.mxu0
  %v420 = vadd.f32 %v281, %v419
  %v421 = vpop.f32.mrf.mxu0
  %422 = vmatprep.mubr.f32.mxu0 0.0
  %423 = vmatmul.mubr.f32.gmra.mxu0 %v110
  %v424 = vpop.f32.mrf.mxu0
  %v425 = vadd.f32 %v281, %v424
  %v426 = vpop.f32.mrf.mxu0
  %427 = vdwg.mxu0
  %vm428 = vcmask 261120
  %429 = vst.msk [vmem:[#allocation3] sm:$0xff] %vm428, %v350
  %430 = vst.msk [vmem:[#allocation3 + $0x8] sm:$0xff] %vm428, %v355
  %431 = vst.msk [vmem:[#allocation3 + $0x10] sm:$0xff] %vm428, %v360
  %432 = vst.msk [vmem:[#allocation3 + $0x18] sm:$0xff] %vm428, %v365
  %433 = vst.msk [vmem:[#allocation3 + $0x20] sm:$0xff] %vm428, %v370
  %434 = vst.msk [vmem:[#allocation3 + $0x28] sm:$0xff] %vm428, %v375
  %435 = vst.msk [vmem:[#allocation3 + $0x30] sm:$0xff] %vm428, %v380
  %436 = vst.msk [vmem:[#allocation3 + $0x38] sm:$0xff] %vm428, %v385
  %437 = vst.msk [vmem:[#allocation3 + $0x40] sm:$0xff] %vm428, %v390
  %438 = vst.msk [vmem:[#allocation3 + $0x48] sm:$0xff] %vm428, %v395
  %439 = vst.msk [vmem:[#allocation3 + $0x50] sm:$0xff] %vm428, %v400
  %440 = vst.msk [vmem:[#allocation3 + $0x58] sm:$0xff] %vm428, %v405
  %441 = vst.msk [vmem:[#allocation3 + $0x60] sm:$0xff] %vm428, %v410
  %442 = vst.msk [vmem:[#allocation3 + $0x68] sm:$0xff] %vm428, %v415
  %443 = vst.msk [vmem:[#allocation3 + $0x70] sm:$0xff] %vm428, %v420
  %444 = vst.msk [vmem:[#allocation3 + $0x78] sm:$0xff] %vm428, %v425
  %v445 = vld [vmem:[%s3] sm:$0xff]
  %v446 = vld [vmem:[%s3 + $0x8] sm:$0xff]
  %v447 = vld [vmem:[%s3 + $0x10] sm:$0xff]
  %v448 = vld [vmem:[%s3 + $0x18] sm:$0xff]
  %v449 = vld [vmem:[%s4] sm:$0xff]
  %v450 = vld [vmem:[%s4 + $0x8] sm:$0xff]
  %v451 = vld [vmem:[%s4 + $0x10] sm:$0xff]
  %v452 = vld [vmem:[%s4 + $0x18] sm:$0xff]
  %v453 = vld [vmem:[%s7] sm:$0x1]
  %v455 = vlaneseq
  %v456 = vshrl.u32 %v455, 7
  %v457 = vsub.s32 0, %v456
  %v458 = vrot.slane %v453, %v457
  %v460 = vld [vmem:[%s8] sm:$0x1]
  %v462 = vlaneseq
  %v463 = vshrl.u32 %v462, 7
  %v464 = vsub.s32 0, %v463
  %v465 = vrot.slane %v460, %v464
  %v468 = vsel %vm428, 0.0, 0
  %470 = vmatprep.subr.mxu0 0.0
  %471 = vmatpush1.msra.mxu0 0.0
  %472 = vmatprep.subr.mxu0 0.0
  %473 = vmatpush1.msra.mxu0 0.0
  %474 = vmatprep.subr.mxu0 0.0
  %475 = vmatpush1.msra.mxu0 0.0
  %476 = vmatprep.subr.mxu0 0.0
  %477 = vmatpush1.msra.mxu0 0.0
  %478 = vmatprep.subr.mxu0 0.0
  %479 = vmatpush1.msra.mxu0 0.0
  %480 = vmatprep.subr.mxu0 0.0
  %481 = vmatpush1.msra.mxu0 0.0
  %482 = vmatprep.subr.mxu0 0.0
  %483 = vmatpush1.msra.mxu0 0.0
  %484 = vmatprep.subr.mxu0 0.0
  %485 = vmatpush1.msra.mxu0 0.0
  %486 = vmatprep.subr.mxu0 0.0
  %487 = vmatpush1.msra.mxu0 0.0
  %488 = vmatprep.subr.mxu0 0.0
  %489 = vmatpush1.msra.mxu0 0.0
  %490 = vmatprep.subr.mxu0 0.0
  %491 = vmatpush1.msra.mxu0 0.0
  %492 = vmatprep.subr.mxu0 0.0
  %493 = vmatpush1.msra.mxu0 0.0
  %494 = vmatprep.subr.mxu0 0.0
  %495 = vmatpush1.msra.mxu0 %v448
  %496 = vmatprep.subr.mxu0 0.0
  %497 = vmatpush1.msra.mxu0 %v447
  %498 = vmatprep.subr.mxu0 0.0
  %499 = vmatpush1.msra.mxu0 %v446
  %500 = vmatprep.subr.mxu0 0.0
  %501 = vmatpush1.msra.mxu0 %v445
  %502 = vmatprep.subr.mxu0 0.0
  %503 = vmatpush2.msra.mxu0 0.0
  %504 = vmatprep.subr.mxu0 0.0
  %505 = vmatpush2.msra.mxu0 0.0
  %506 = vmatprep.subr.mxu0 0.0
  %507 = vmatpush2.msra.mxu0 0.0
  %508 = vmatprep.subr.mxu0 0.0
  %509 = vmatpush2.msra.mxu0 0.0
  %510 = vmatprep.subr.mxu0 0.0
  %511 = vmatpush2.msra.mxu0 0.0
  %512 = vmatprep.subr.mxu0 0.0
  %513 = vmatpush2.msra.mxu0 0.0
  %514 = vmatprep.subr.mxu0 0.0
  %515 = vmatpush2.msra.mxu0 0.0
  %516 = vmatprep.subr.mxu0 0.0
  %517 = vmatpush2.msra.mxu0 0.0
  %518 = vmatprep.subr.mxu0 0.0
  %519 = vmatpush2.msra.mxu0 0.0
  %520 = vmatprep.subr.mxu0 0.0
  %521 = vmatpush2.msra.mxu0 0.0
  %522 = vmatprep.subr.mxu0 0.0
  %523 = vmatpush2.msra.mxu0 0.0
  %524 = vmatprep.subr.mxu0 0.0
  %525 = vmatpush2.msra.mxu0 0.0
  %526 = vmatprep.subr.mxu0 0.0
  %527 = vmatpush2.msra.mxu0 0.0
  %528 = vmatprep.subr.mxu0 0.0
  %529 = vmatpush2.msra.mxu0 0.0
  %530 = vmatprep.subr.mxu0 0.0
  %531 = vmatpush2.msra.mxu0 0.0
  %532 = vmatprep.subr.mxu0 0.0
  %533 = vmatpush2.msra.mxu0 0.0
  %534 = vmatprep.mubr.f32.mxu0 0.0
  %535 = vmatmul.mubr.f32.gmra.mxu0 %v468
  %v536 = vpop.f32.mrf.mxu0
  %v537 = vadd.f32 %v458, %v536
  %v538 = vpop.f32.mrf.mxu0
  %539 = vdwg.mxu0
  %540 = vmatprep.subr.mxu0 0.0
  %541 = vmatpush1.msra.mxu0 0.0
  %542 = vmatprep.subr.mxu0 0.0
  %543 = vmatpush1.msra.mxu0 0.0
  %544 = vmatprep.subr.mxu0 0.0
  %545 = vmatpush1.msra.mxu0 0.0
  %546 = vmatprep.subr.mxu0 0.0
  %547 = vmatpush1.msra.mxu0 0.0
  %548 = vmatprep.subr.mxu0 0.0
  %549 = vmatpush1.msra.mxu0 0.0
  %550 = vmatprep.subr.mxu0 0.0
  %551 = vmatpush1.msra.mxu0 0.0
  %552 = vmatprep.subr.mxu0 0.0
  %553 = vmatpush1.msra.mxu0 0.0
  %554 = vmatprep.subr.mxu0 0.0
  %555 = vmatpush1.msra.mxu0 0.0
  %556 = vmatprep.subr.mxu0 0.0
  %557 = vmatpush1.msra.mxu0 0.0
  %558 = vmatprep.subr.mxu0 0.0
  %559 = vmatpush1.msra.mxu0 0.0
  %560 = vmatprep.subr.mxu0 0.0
  %561 = vmatpush1.msra.mxu0 0.0
  %562 = vmatprep.subr.mxu0 0.0
  %563 = vmatpush1.msra.mxu0 0.0
  %564 = vmatprep.subr.mxu0 0.0
  %565 = vmatpush1.msra.mxu0 %v452
  %566 = vmatprep.subr.mxu0 0.0
  %567 = vmatpush1.msra.mxu0 %v451
  %568 = vmatprep.subr.mxu0 0.0
  %569 = vmatpush1.msra.mxu0 %v450
  %570 = vmatprep.subr.mxu0 0.0
  %571 = vmatpush1.msra.mxu0 %v449
  %572 = vmatprep.subr.mxu0 0.0
  %573 = vmatpush2.msra.mxu0 0.0
  %574 = vmatprep.subr.mxu0 0.0
  %575 = vmatpush2.msra.mxu0 0.0
  %576 = vmatprep.subr.mxu0 0.0
  %577 = vmatpush2.msra.mxu0 0.0
  %578 = vmatprep.subr.mxu0 0.0
  %579 = vmatpush2.msra.mxu0 0.0
  %580 = vmatprep.subr.mxu0 0.0
  %581 = vmatpush2.msra.mxu0 0.0
  %582 = vmatprep.subr.mxu0 0.0
  %583 = vmatpush2.msra.mxu0 0.0
  %584 = vmatprep.subr.mxu0 0.0
  %585 = vmatpush2.msra.mxu0 0.0
  %586 = vmatprep.subr.mxu0 0.0
  %587 = vmatpush2.msra.mxu0 0.0
  %588 = vmatprep.subr.mxu0 0.0
  %589 = vmatpush2.msra.mxu0 0.0
  %590 = vmatprep.subr.mxu0 0.0
  %591 = vmatpush2.msra.mxu0 0.0
  %592 = vmatprep.subr.mxu0 0.0
  %593 = vmatpush2.msra.mxu0 0.0
  %594 = vmatprep.subr.mxu0 0.0
  %595 = vmatpush2.msra.mxu0 0.0
  %596 = vmatprep.subr.mxu0 0.0
  %597 = vmatpush2.msra.mxu0 0.0
  %598 = vmatprep.subr.mxu0 0.0
  %599 = vmatpush2.msra.mxu0 0.0
  %600 = vmatprep.subr.mxu0 0.0
  %601 = vmatpush2.msra.mxu0 0.0
  %602 = vmatprep.subr.mxu0 0.0
  %603 = vmatpush2.msra.mxu0 0.0
  %604 = vmatprep.mubr.f32.mxu0 0.0
  %605 = vmatmul.mubr.f32.gmra.mxu0 %v468
  %v606 = vpop.f32.mrf.mxu0
  %v607 = vadd.f32 %v465, %v606
  %v608 = vpop.f32.mrf.mxu0
  %609 = vdwg.mxu0
  %v610 = vld [vmem:[#allocation2] sm:$0xff]
  %v611 = vadd.f32 %v610, %v537
  %v612 = vxor.u32 %v611, 2147483648
  %v613 = vmul.f32 %v612, 1.442695
  %v614 = vpow.pop %v613
  %v615 = vadd.f32 %v614, 1.0
  %v616 = vrcp.pop %v615
  %v617 = vmul.f32 1.0, %v616
  %v618 = vld [vmem:[#allocation3] sm:$0xff]
  %v619 = vmul.f32 %v617, %v607
  %v620 = vadd.f32 %v618, %v619
  %v621 = vtanh.pop %v620
  %v622 = vsub.f32 1.0, %v617
  %624 = vrot.lane.b32.xlu0 %v621, 32
  %v625 = vpop.permute.xlu0 %624
  %v627 = vmul.f32 %v622, %v625
  %v628 = vmul.f32 %v617, 0.0
  %v629 = vadd.f32 %v627, %v628
  %631 = vrot.lane.b32.xlu0 %v629, 96
  %v632 = vpop.permute.xlu0 %631
  %634 = vst.msk [vmem:[#allocation4] sm:$0xff] %vm428, %v632
  %v635 = vsel %vm428, %v632, 0
  %637 = vmatprep.subr.mxu0 0.0
  %638 = vmatpush1.msra.mxu0 0.0
  %639 = vmatprep.subr.mxu0 0.0
  %640 = vmatpush1.msra.mxu0 0.0
  %641 = vmatprep.subr.mxu0 0.0
  %642 = vmatpush1.msra.mxu0 0.0
  %643 = vmatprep.subr.mxu0 0.0
  %644 = vmatpush1.msra.mxu0 0.0
  %645 = vmatprep.subr.mxu0 0.0
  %646 = vmatpush1.msra.mxu0 0.0
  %647 = vmatprep.subr.mxu0 0.0
  %648 = vmatpush1.msra.mxu0 0.0
  %649 = vmatprep.subr.mxu0 0.0
  %650 = vmatpush1.msra.mxu0 0.0
  %651 = vmatprep.subr.mxu0 0.0
  %652 = vmatpush1.msra.mxu0 0.0
  %653 = vmatprep.subr.mxu0 0.0
  %654 = vmatpush1.msra.mxu0 0.0
  %655 = vmatprep.subr.mxu0 0.0
  %656 = vmatpush1.msra.mxu0 0.0
  %657 = vmatprep.subr.mxu0 0.0
  %658 = vmatpush1.msra.mxu0 0.0
  %659 = vmatprep.subr.mxu0 0.0
  %660 = vmatpush1.msra.mxu0 0.0
  %661 = vmatprep.subr.mxu0 0.0
  %662 = vmatpush1.msra.mxu0 %v448
  %663 = vmatprep.subr.mxu0 0.0
  %664 = vmatpush1.msra.mxu0 %v447
  %665 = vmatprep.subr.mxu0 0.0
  %666 = vmatpush1.msra.mxu0 %v446
  %667 = vmatprep.subr.mxu0 0.0
  %668 = vmatpush1.msra.mxu0 %v445
  %669 = vmatprep.subr.mxu0 0.0
  %670 = vmatpush2.msra.mxu0 0.0
  %671 = vmatprep.subr.mxu0 0.0
  %672 = vmatpush2.msra.mxu0 0.0
  %673 = vmatprep.subr.mxu0 0.0
  %674 = vmatpush2.msra.mxu0 0.0
  %675 = vmatprep.subr.mxu0 0.0
  %676 = vmatpush2.msra.mxu0 0.0
  %677 = vmatprep.subr.mxu0 0.0
  %678 = vmatpush2.msra.mxu0 0.0
  %679 = vmatprep.subr.mxu0 0.0
  %680 = vmatpush2.msra.mxu0 0.0
  %681 = vmatprep.subr.mxu0 0.0
  %682 = vmatpush2.msra.mxu0 0.0
  %683 = vmatprep.subr.mxu0 0.0
  %684 = vmatpush2.msra.mxu0 0.0
  %685 = vmatprep.subr.mxu0 0.0
  %686 = vmatpush2.msra.mxu0 0.0
  %687 = vmatprep.subr.mxu0 0.0
  %688 = vmatpush2.msra.mxu0 0.0
  %689 = vmatprep.subr.mxu0 0.0
  %690 = vmatpush2.msra.mxu0 0.0
  %691 = vmatprep.subr.mxu0 0.0
  %692 = vmatpush2.msra.mxu0 0.0
  %693 = vmatprep.subr.mxu0 0.0
  %694 = vmatpush2.msra.mxu0 0.0
  %695 = vmatprep.subr.mxu0 0.0
  %696 = vmatpush2.msra.mxu0 0.0
  %697 = vmatprep.subr.mxu0 0.0
  %698 = vmatpush2.msra.mxu0 0.0
  %699 = vmatprep.subr.mxu0 0.0
  %700 = vmatpush2.msra.mxu0 0.0
  %701 = vmatprep.mubr.f32.mxu0 0.0
  %702 = vmatmul.mubr.f32.gmra.mxu0 %v635
  %v703 = vpop.f32.mrf.mxu0
  %v704 = vadd.f32 %v458, %v703
  %v705 = vpop.f32.mrf.mxu0
  %706 = vdwg.mxu0
  %707 = vmatprep.subr.mxu0 0.0
  %708 = vmatpush1.msra.mxu0 0.0
  %709 = vmatprep.subr.mxu0 0.0
  %710 = vmatpush1.msra.mxu0 0.0
  %711 = vmatprep.subr.mxu0 0.0
  %712 = vmatpush1.msra.mxu0 0.0
  %713 = vmatprep.subr.mxu0 0.0
  %714 = vmatpush1.msra.mxu0 0.0
  %715 = vmatprep.subr.mxu0 0.0
  %716 = vmatpush1.msra.mxu0 0.0
  %717 = vmatprep.subr.mxu0 0.0
  %718 = vmatpush1.msra.mxu0 0.0
  %719 = vmatprep.subr.mxu0 0.0
  %720 = vmatpush1.msra.mxu0 0.0
  %721 = vmatprep.subr.mxu0 0.0
  %722 = vmatpush1.msra.mxu0 0.0
  %723 = vmatprep.subr.mxu0 0.0
  %724 = vmatpush1.msra.mxu0 0.0
  %725 = vmatprep.subr.mxu0 0.0
  %726 = vmatpush1.msra.mxu0 0.0
  %727 = vmatprep.subr.mxu0 0.0
  %728 = vmatpush1.msra.mxu0 0.0
  %729 = vmatprep.subr.mxu0 0.0
  %730 = vmatpush1.msra.mxu0 0.0
  %731 = vmatprep.subr.mxu0 0.0
  %732 = vmatpush1.msra.mxu0 %v452
  %733 = vmatprep.subr.mxu0 0.0
  %734 = vmatpush1.msra.mxu0 %v451
  %735 = vmatprep.subr.mxu0 0.0
  %736 = vmatpush1.msra.mxu0 %v450
  %737 = vmatprep.subr.mxu0 0.0
  %738 = vmatpush1.msra.mxu0 %v449
  %739 = vmatprep.subr.mxu0 0.0
  %740 = vmatpush2.msra.mxu0 0.0
  %741 = vmatprep.subr.mxu0 0.0
  %742 = vmatpush2.msra.mxu0 0.0
  %743 = vmatprep.subr.mxu0 0.0
  %744 = vmatpush2.msra.mxu0 0.0
  %745 = vmatprep.subr.mxu0 0.0
  %746 = vmatpush2.msra.mxu0 0.0
  %747 = vmatprep.subr.mxu0 0.0
  %748 = vmatpush2.msra.mxu0 0.0
  %749 = vmatprep.subr.mxu0 0.0
  %750 = vmatpush2.msra.mxu0 0.0
  %751 = vmatprep.subr.mxu0 0.0
  %752 = vmatpush2.msra.mxu0 0.0
  %753 = vmatprep.subr.mxu0 0.0
  %754 = vmatpush2.msra.mxu0 0.0
  %755 = vmatprep.subr.mxu0 0.0
  %756 = vmatpush2.msra.mxu0 0.0
  %757 = vmatprep.subr.mxu0 0.0
  %758 = vmatpush2.msra.mxu0 0.0
  %759 = vmatprep.subr.mxu0 0.0
  %760 = vmatpush2.msra.mxu0 0.0
  %761 = vmatprep.subr.mxu0 0.0
  %762 = vmatpush2.msra.mxu0 0.0
  %763 = vmatprep.subr.mxu0 0.0
  %764 = vmatpush2.msra.mxu0 0.0
  %765 = vmatprep.subr.mxu0 0.0
  %766 = vmatpush2.msra.mxu0 0.0
  %767 = vmatprep.subr.mxu0 0.0
  %768 = vmatpush2.msra.mxu0 0.0
  %769 = vmatprep.subr.mxu0 0.0
  %770 = vmatpush2.msra.mxu0 0.0
  %771 = vmatprep.mubr.f32.mxu0 0.0
  %772 = vmatmul.mubr.f32.gmra.mxu0 %v635
  %v773 = vpop.f32.mrf.mxu0
  %v774 = vadd.f32 %v465, %v773
  %v775 = vpop.f32.mrf.mxu0
  %776 = vdwg.mxu0
  %v777 = vld [vmem:[#allocation2 + $0x8] sm:$0xff]
  %v778 = vadd.f32 %v777, %v704
  %v779 = vxor.u32 %v778, 2147483648
  %v780 = vmul.f32 %v779, 1.442695
  %v781 = vpow.pop %v780
  %v782 = vadd.f32 %v781, 1.0
  %v783 = vrcp.pop %v782
  %v784 = vmul.f32 1.0, %v783
  %v785 = vld [vmem:[#allocation3 + $0x8] sm:$0xff]
  %v786 = vmul.f32 %v784, %v774
  %v787 = vadd.f32 %v785, %v786
  %v788 = vtanh.pop %v787
  %v789 = vsub.f32 1.0, %v784
  %791 = vrot.lane.b32.xlu0 %v788, 32
  %v792 = vpop.permute.xlu0 %791
  %v794 = vmul.f32 %v789, %v792
  %v795 = vmul.f32 %v784, %v629
  %v796 = vadd.f32 %v794, %v795
  %798 = vrot.lane.b32.xlu0 %v796, 96
  %v799 = vpop.permute.xlu0 %798
  %801 = vst.msk [vmem:[#allocation4 + $0x8] sm:$0xff] %vm428, %v799
  %v802 = vsel %vm428, %v799, 0
  %804 = vmatprep.subr.mxu0 0.0
  %805 = vmatpush1.msra.mxu0 0.0
  %806 = vmatprep.subr.mxu0 0.0
  %807 = vmatpush1.msra.mxu0 0.0
  %808 = vmatprep.subr.mxu0 0.0
  %809 = vmatpush1.msra.mxu0 0.0
  %810 = vmatprep.subr.mxu0 0.0
  %811 = vmatpush1.msra.mxu0 0.0
  %812 = vmatprep.subr.mxu0 0.0
  %813 = vmatpush1.msra.mxu0 0.0
  %814 = vmatprep.subr.mxu0 0.0
  %815 = vmatpush1.msra.mxu0 0.0
  %816 = vmatprep.subr.mxu0 0.0
  %817 = vmatpush1.msra.mxu0 0.0
  %818 = vmatprep.subr.mxu0 0.0
  %819 = vmatpush1.msra.mxu0 0.0
  %820 = vmatprep.subr.mxu0 0.0
  %821 = vmatpush1.msra.mxu0 0.0
  %822 = vmatprep.subr.mxu0 0.0
  %823 = vmatpush1.msra.mxu0 0.0
  %824 = vmatprep.subr.mxu0 0.0
  %825 = vmatpush1.msra.mxu0 0.0
  %826 = vmatprep.subr.mxu0 0.0
  %827 = vmatpush1.msra.mxu0 0.0
  %828 = vmatprep.subr.mxu0 0.0
  %829 = vmatpush1.msra.mxu0 %v448
  %830 = vmatprep.subr.mxu0 0.0
  %831 = vmatpush1.msra.mxu0 %v447
  %832 = vmatprep.subr.mxu0 0.0
  %833 = vmatpush1.msra.mxu0 %v446
  %834 = vmatprep.subr.mxu0 0.0
  %835 = vmatpush1.msra.mxu0 %v445
  %836 = vmatprep.subr.mxu0 0.0
  %837 = vmatpush2.msra.mxu0 0.0
  %838 = vmatprep.subr.mxu0 0.0
  %839 = vmatpush2.msra.mxu0 0.0
  %840 = vmatprep.subr.mxu0 0.0
  %841 = vmatpush2.msra.mxu0 0.0
  %842 = vmatprep.subr.mxu0 0.0
  %843 = vmatpush2.msra.mxu0 0.0
  %844 = vmatprep.subr.mxu0 0.0
  %845 = vmatpush2.msra.mxu0 0.0
  %846 = vmatprep.subr.mxu0 0.0
  %847 = vmatpush2.msra.mxu0 0.0
  %848 = vmatprep.subr.mxu0 0.0
  %849 = vmatpush2.msra.mxu0 0.0
  %850 = vmatprep.subr.mxu0 0.0
  %851 = vmatpush2.msra.mxu0 0.0
  %852 = vmatprep.subr.mxu0 0.0
  %853 = vmatpush2.msra.mxu0 0.0
  %854 = vmatprep.subr.mxu0 0.0
  %855 = vmatpush2.msra.mxu0 0.0
  %856 = vmatprep.subr.mxu0 0.0
  %857 = vmatpush2.msra.mxu0 0.0
  %858 = vmatprep.subr.mxu0 0.0
  %859 = vmatpush2.msra.mxu0 0.0
  %860 = vmatprep.subr.mxu0 0.0
  %861 = vmatpush2.msra.mxu0 0.0
  %862 = vmatprep.subr.mxu0 0.0
  %863 = vmatpush2.msra.mxu0 0.0
  %864 = vmatprep.subr.mxu0 0.0
  %865 = vmatpush2.msra.mxu0 0.0
  %866 = vmatprep.subr.mxu0 0.0
  %867 = vmatpush2.msra.mxu0 0.0
  %868 = vmatprep.mubr.f32.mxu0 0.0
  %869 = vmatmul.mubr.f32.gmra.mxu0 %v802
  %v870 = vpop.f32.mrf.mxu0
  %v871 = vadd.f32 %v458, %v870
  %v872 = vpop.f32.mrf.mxu0
  %873 = vdwg.mxu0
  %874 = vmatprep.subr.mxu0 0.0
  %875 = vmatpush1.msra.mxu0 0.0
  %876 = vmatprep.subr.mxu0 0.0
  %877 = vmatpush1.msra.mxu0 0.0
  %878 = vmatprep.subr.mxu0 0.0
  %879 = vmatpush1.msra.mxu0 0.0
  %880 = vmatprep.subr.mxu0 0.0
  %881 = vmatpush1.msra.mxu0 0.0
  %882 = vmatprep.subr.mxu0 0.0
  %883 = vmatpush1.msra.mxu0 0.0
  %884 = vmatprep.subr.mxu0 0.0
  %885 = vmatpush1.msra.mxu0 0.0
  %886 = vmatprep.subr.mxu0 0.0
  %887 = vmatpush1.msra.mxu0 0.0
  %888 = vmatprep.subr.mxu0 0.0
  %889 = vmatpush1.msra.mxu0 0.0
  %890 = vmatprep.subr.mxu0 0.0
  %891 = vmatpush1.msra.mxu0 0.0
  %892 = vmatprep.subr.mxu0 0.0
  %893 = vmatpush1.msra.mxu0 0.0
  %894 = vmatprep.subr.mxu0 0.0
  %895 = vmatpush1.msra.mxu0 0.0
  %896 = vmatprep.subr.mxu0 0.0
  %897 = vmatpush1.msra.mxu0 0.0
  %898 = vmatprep.subr.mxu0 0.0
  %899 = vmatpush1.msra.mxu0 %v452
  %900 = vmatprep.subr.mxu0 0.0
  %901 = vmatpush1.msra.mxu0 %v451
  %902 = vmatprep.subr.mxu0 0.0
  %903 = vmatpush1.msra.mxu0 %v450
  %904 = vmatprep.subr.mxu0 0.0
  %905 = vmatpush1.msra.mxu0 %v449
  %906 = vmatprep.subr.mxu0 0.0
  %907 = vmatpush2.msra.mxu0 0.0
  %908 = vmatprep.subr.mxu0 0.0
  %909 = vmatpush2.msra.mxu0 0.0
  %910 = vmatprep.subr.mxu0 0.0
  %911 = vmatpush2.msra.mxu0 0.0
  %912 = vmatprep.subr.mxu0 0.0
  %913 = vmatpush2.msra.mxu0 0.0
  %914 = vmatprep.subr.mxu0 0.0
  %915 = vmatpush2.msra.mxu0 0.0
  %916 = vmatprep.subr.mxu0 0.0
  %917 = vmatpush2.msra.mxu0 0.0
  %918 = vmatprep.subr.mxu0 0.0
  %919 = vmatpush2.msra.mxu0 0.0
  %920 = vmatprep.subr.mxu0 0.0
  %921 = vmatpush2.msra.mxu0 0.0
  %922 = vmatprep.subr.mxu0 0.0
  %923 = vmatpush2.msra.mxu0 0.0
  %924 = vmatprep.subr.mxu0 0.0
  %925 = vmatpush2.msra.mxu0 0.0
  %926 = vmatprep.subr.mxu0 0.0
  %927 = vmatpush2.msra.mxu0 0.0
  %928 = vmatprep.subr.mxu0 0.0
  %929 = vmatpush2.msra.mxu0 0.0
  %930 = vmatprep.subr.mxu0 0.0
  %931 = vmatpush2.msra.mxu0 0.0
  %932 = vmatprep.subr.mxu0 0.0
  %933 = vmatpush2.msra.mxu0 0.0
  %934 = vmatprep.subr.mxu0 0.0
  %935 = vmatpush2.msra.mxu0 0.0
  %936 = vmatprep.subr.mxu0 0.0
  %937 = vmatpush2.msra.mxu0 0.0
  %938 = vmatprep.mubr.f32.mxu0 0.0
  %939 = vmatmul.mubr.f32.gmra.mxu0 %v802
  %v940 = vpop.f32.mrf.mxu0
  %v941 = vadd.f32 %v465, %v940
  %v942 = vpop.f32.mrf.mxu0
  %943 = vdwg.mxu0
  %v944 = vld [vmem:[#allocation2 + $0x10] sm:$0xff]
  %v945 = vadd.f32 %v944, %v871
  %v946 = vxor.u32 %v945, 2147483648
  %v947 = vmul.f32 %v946, 1.442695
  %v948 = vpow.pop %v947
  %v949 = vadd.f32 %v948, 1.0
  %v950 = vrcp.pop %v949
  %v951 = vmul.f32 1.0, %v950
  %v952 = vld [vmem:[#allocation3 + $0x10] sm:$0xff]
  %v953 = vmul.f32 %v951, %v941
  %v954 = vadd.f32 %v952, %v953
  %v955 = vtanh.pop %v954
  %v956 = vsub.f32 1.0, %v951
  %958 = vrot.lane.b32.xlu0 %v955, 32
  %v959 = vpop.permute.xlu0 %958
  %v961 = vmul.f32 %v956, %v959
  %v962 = vmul.f32 %v951, %v796
  %v963 = vadd.f32 %v961, %v962
  %965 = vrot.lane.b32.xlu0 %v963, 96
  %v966 = vpop.permute.xlu0 %965
  %968 = vst.msk [vmem:[#allocation4 + $0x10] sm:$0xff] %vm428, %v966
  %v969 = vsel %vm428, %v966, 0
  %971 = vmatprep.subr.mxu0 0.0
  %972 = vmatpush1.msra.mxu0 0.0
  %973 = vmatprep.subr.mxu0 0.0
  %974 = vmatpush1.msra.mxu0 0.0
  %975 = vmatprep.subr.mxu0 0.0
  %976 = vmatpush1.msra.mxu0 0.0
  %977 = vmatprep.subr.mxu0 0.0
  %978 = vmatpush1.msra.mxu0 0.0
  %979 = vmatprep.subr.mxu0 0.0
  %980 = vmatpush1.msra.mxu0 0.0
  %981 = vmatprep.subr.mxu0 0.0
  %982 = vmatpush1.msra.mxu0 0.0
  %983 = vmatprep.subr.mxu0 0.0
  %984 = vmatpush1.msra.mxu0 0.0
  %985 = vmatprep.subr.mxu0 0.0
  %986 = vmatpush1.msra.mxu0 0.0
  %987 = vmatprep.subr.mxu0 0.0
  %988 = vmatpush1.msra.mxu0 0.0
  %989 = vmatprep.subr.mxu0 0.0
  %990 = vmatpush1.msra.mxu0 0.0
  %991 = vmatprep.subr.mxu0 0.0
  %992 = vmatpush1.msra.mxu0 0.0
  %993 = vmatprep.subr.mxu0 0.0
  %994 = vmatpush1.msra.mxu0 0.0
  %995 = vmatprep.subr.mxu0 0.0
  %996 = vmatpush1.msra.mxu0 %v448
  %997 = vmatprep.subr.mxu0 0.0
  %998 = vmatpush1.msra.mxu0 %v447
  %999 = vmatprep.subr.mxu0 0.0
  %1000 = vmatpush1.msra.mxu0 %v446
  %1001 = vmatprep.subr.mxu0 0.0
  %1002 = vmatpush1.msra.mxu0 %v445
  %1003 = vmatprep.subr.mxu0 0.0
  %1004 = vmatpush2.msra.mxu0 0.0
  %1005 = vmatprep.subr.mxu0 0.0
  %1006 = vmatpush2.msra.mxu0 0.0
  %1007 = vmatprep.subr.mxu0 0.0
  %1008 = vmatpush2.msra.mxu0 0.0
  %1009 = vmatprep.subr.mxu0 0.0
  %1010 = vmatpush2.msra.mxu0 0.0
  %1011 = vmatprep.subr.mxu0 0.0
  %1012 = vmatpush2.msra.mxu0 0.0
  %1013 = vmatprep.subr.mxu0 0.0
  %1014 = vmatpush2.msra.mxu0 0.0
  %1015 = vmatprep.subr.mxu0 0.0
  %1016 = vmatpush2.msra.mxu0 0.0
  %1017 = vmatprep.subr.mxu0 0.0
  %1018 = vmatpush2.msra.mxu0 0.0
  %1019 = vmatprep.subr.mxu0 0.0
  %1020 = vmatpush2.msra.mxu0 0.0
  %1021 = vmatprep.subr.mxu0 0.0
  %1022 = vmatpush2.msra.mxu0 0.0
  %1023 = vmatprep.subr.mxu0 0.0
  %1024 = vmatpush2.msra.mxu0 0.0
  %1025 = vmatprep.subr.mxu0 0.0
  %1026 = vmatpush2.msra.mxu0 0.0
  %1027 = vmatprep.subr.mxu0 0.0
  %1028 = vmatpush2.msra.mxu0 0.0
  %1029 = vmatprep.subr.mxu0 0.0
  %1030 = vmatpush2.msra.mxu0 0.0
  %1031 = vmatprep.subr.mxu0 0.0
  %1032 = vmatpush2.msra.mxu0 0.0
  %1033 = vmatprep.subr.mxu0 0.0
  %1034 = vmatpush2.msra.mxu0 0.0
  %1035 = vmatprep.mubr.f32.mxu0 0.0
  %1036 = vmatmul.mubr.f32.gmra.mxu0 %v969
  %v1037 = vpop.f32.mrf.mxu0
  %v1038 = vadd.f32 %v458, %v1037
  %v1039 = vpop.f32.mrf.mxu0
  %1040 = vdwg.mxu0
  %1041 = vmatprep.subr.mxu0 0.0
  %1042 = vmatpush1.msra.mxu0 0.0
  %1043 = vmatprep.subr.mxu0 0.0
  %1044 = vmatpush1.msra.mxu0 0.0
  %1045 = vmatprep.subr.mxu0 0.0
  %1046 = vmatpush1.msra.mxu0 0.0
  %1047 = vmatprep.subr.mxu0 0.0
  %1048 = vmatpush1.msra.mxu0 0.0
  %1049 = vmatprep.subr.mxu0 0.0
  %1050 = vmatpush1.msra.mxu0 0.0
  %1051 = vmatprep.subr.mxu0 0.0
  %1052 = vmatpush1.msra.mxu0 0.0
  %1053 = vmatprep.subr.mxu0 0.0
  %1054 = vmatpush1.msra.mxu0 0.0
  %1055 = vmatprep.subr.mxu0 0.0
  %1056 = vmatpush1.msra.mxu0 0.0
  %1057 = vmatprep.subr.mxu0 0.0
  %1058 = vmatpush1.msra.mxu0 0.0
  %1059 = vmatprep.subr.mxu0 0.0
  %1060 = vmatpush1.msra.mxu0 0.0
  %1061 = vmatprep.subr.mxu0 0.0
  %1062 = vmatpush1.msra.mxu0 0.0
  %1063 = vmatprep.subr.mxu0 0.0
  %1064 = vmatpush1.msra.mxu0 0.0
  %1065 = vmatprep.subr.mxu0 0.0
  %1066 = vmatpush1.msra.mxu0 %v452
  %1067 = vmatprep.subr.mxu0 0.0
  %1068 = vmatpush1.msra.mxu0 %v451
  %1069 = vmatprep.subr.mxu0 0.0
  %1070 = vmatpush1.msra.mxu0 %v450
  %1071 = vmatprep.subr.mxu0 0.0
  %1072 = vmatpush1.msra.mxu0 %v449
  %1073 = vmatprep.subr.mxu0 0.0
  %1074 = vmatpush2.msra.mxu0 0.0
  %1075 = vmatprep.subr.mxu0 0.0
  %1076 = vmatpush2.msra.mxu0 0.0
  %1077 = vmatprep.subr.mxu0 0.0
  %1078 = vmatpush2.msra.mxu0 0.0
  %1079 = vmatprep.subr.mxu0 0.0
  %1080 = vmatpush2.msra.mxu0 0.0
  %1081 = vmatprep.subr.mxu0 0.0
  %1082 = vmatpush2.msra.mxu0 0.0
  %1083 = vmatprep.subr.mxu0 0.0
  %1084 = vmatpush2.msra.mxu0 0.0
  %1085 = vmatprep.subr.mxu0 0.0
  %1086 = vmatpush2.msra.mxu0 0.0
  %1087 = vmatprep.subr.mxu0 0.0
  %1088 = vmatpush2.msra.mxu0 0.0
  %1089 = vmatprep.subr.mxu0 0.0
  %1090 = vmatpush2.msra.mxu0 0.0
  %1091 = vmatprep.subr.mxu0 0.0
  %1092 = vmatpush2.msra.mxu0 0.0
  %1093 = vmatprep.subr.mxu0 0.0
  %1094 = vmatpush2.msra.mxu0 0.0
  %1095 = vmatprep.subr.mxu0 0.0
  %1096 = vmatpush2.msra.mxu0 0.0
  %1097 = vmatprep.subr.mxu0 0.0
  %1098 = vmatpush2.msra.mxu0 0.0
  %1099 = vmatprep.subr.mxu0 0.0
  %1100 = vmatpush2.msra.mxu0 0.0
  %1101 = vmatprep.subr.mxu0 0.0
  %1102 = vmatpush2.msra.mxu0 0.0
  %1103 = vmatprep.subr.mxu0 0.0
  %1104 = vmatpush2.msra.mxu0 0.0
  %1105 = vmatprep.mubr.f32.mxu0 0.0
  %1106 = vmatmul.mubr.f32.gmra.mxu0 %v969
  %v1107 = vpop.f32.mrf.mxu0
  %v1108 = vadd.f32 %v465, %v1107
  %v1109 = vpop.f32.mrf.mxu0
  %1110 = vdwg.mxu0
  %v1111 = vld [vmem:[#allocation2 + $0x18] sm:$0xff]
  %v1112 = vadd.f32 %v1111, %v1038
  %v1113 = vxor.u32 %v1112, 2147483648
  %v1114 = vmul.f32 %v1113, 1.442695
  %v1115 = vpow.pop %v1114
  %v1116 = vadd.f32 %v1115, 1.0
  %v1117 = vrcp.pop %v1116
  %v1118 = vmul.f32 1.0, %v1117
  %v1119 = vld [vmem:[#allocation3 + $0x18] sm:$0xff]
  %v1120 = vmul.f32 %v1118, %v1108
  %v1121 = vadd.f32 %v1119, %v1120
  %v1122 = vtanh.pop %v1121
  %v1123 = vsub.f32 1.0, %v1118
  %1125 = vrot.lane.b32.xlu0 %v1122, 32
  %v1126 = vpop.permute.xlu0 %1125
  %v1128 = vmul.f32 %v1123, %v1126
  %v1129 = vmul.f32 %v1118, %v963
  %v1130 = vadd.f32 %v1128, %v1129
  %1132 = vrot.lane.b32.xlu0 %v1130, 96
  %v1133 = vpop.permute.xlu0 %1132
  %1135 = vst.msk [vmem:[#allocation4 + $0x18] sm:$0xff] %vm428, %v1133
  %v1136 = vsel %vm428, %v1133, 0
  %1138 = vmatprep.subr.mxu0 0.0
  %1139 = vmatpush1.msra.mxu0 0.0
  %1140 = vmatprep.subr.mxu0 0.0
  %1141 = vmatpush1.msra.mxu0 0.0
  %1142 = vmatprep.subr.mxu0 0.0
  %1143 = vmatpush1.msra.mxu0 0.0
  %1144 = vmatprep.subr.mxu0 0.0
  %1145 = vmatpush1.msra.mxu0 0.0
  %1146 = vmatprep.subr.mxu0 0.0
  %1147 = vmatpush1.msra.mxu0 0.0
  %1148 = vmatprep.subr.mxu0 0.0
  %1149 = vmatpush1.msra.mxu0 0.0
  %1150 = vmatprep.subr.mxu0 0.0
  %1151 = vmatpush1.msra.mxu0 0.0
  %1152 = vmatprep.subr.mxu0 0.0
  %1153 = vmatpush1.msra.mxu0 0.0
  %1154 = vmatprep.subr.mxu0 0.0
  %1155 = vmatpush1.msra.mxu0 0.0
  %1156 = vmatprep.subr.mxu0 0.0
  %1157 = vmatpush1.msra.mxu0 0.0
  %1158 = vmatprep.subr.mxu0 0.0
  %1159 = vmatpush1.msra.mxu0 0.0
  %1160 = vmatprep.subr.mxu0 0.0
  %1161 = vmatpush1.msra.mxu0 0.0
  %1162 = vmatprep.subr.mxu0 0.0
  %1163 = vmatpush1.msra.mxu0 %v448
  %1164 = vmatprep.subr.mxu0 0.0
  %1165 = vmatpush1.msra.mxu0 %v447
  %1166 = vmatprep.subr.mxu0 0.0
  %1167 = vmatpush1.msra.mxu0 %v446
  %1168 = vmatprep.subr.mxu0 0.0
  %1169 = vmatpush1.msra.mxu0 %v445
  %1170 = vmatprep.subr.mxu0 0.0
  %1171 = vmatpush2.msra.mxu0 0.0
  %1172 = vmatprep.subr.mxu0 0.0
  %1173 = vmatpush2.msra.mxu0 0.0
  %1174 = vmatprep.subr.mxu0 0.0
  %1175 = vmatpush2.msra.mxu0 0.0
  %1176 = vmatprep.subr.mxu0 0.0
  %1177 = vmatpush2.msra.mxu0 0.0
  %1178 = vmatprep.subr.mxu0 0.0
  %1179 = vmatpush2.msra.mxu0 0.0
  %1180 = vmatprep.subr.mxu0 0.0
  %1181 = vmatpush2.msra.mxu0 0.0
  %1182 = vmatprep.subr.mxu0 0.0
  %1183 = vmatpush2.msra.mxu0 0.0
  %1184 = vmatprep.subr.mxu0 0.0
  %1185 = vmatpush2.msra.mxu0 0.0
  %1186 = vmatprep.subr.mxu0 0.0
  %1187 = vmatpush2.msra.mxu0 0.0
  %1188 = vmatprep.subr.mxu0 0.0
  %1189 = vmatpush2.msra.mxu0 0.0
  %1190 = vmatprep.subr.mxu0 0.0
  %1191 = vmatpush2.msra.mxu0 0.0
  %1192 = vmatprep.subr.mxu0 0.0
  %1193 = vmatpush2.msra.mxu0 0.0
  %1194 = vmatprep.subr.mxu0 0.0
  %1195 = vmatpush2.msra.mxu0 0.0
  %1196 = vmatprep.subr.mxu0 0.0
  %1197 = vmatpush2.msra.mxu0 0.0
  %1198 = vmatprep.subr.mxu0 0.0
  %1199 = vmatpush2.msra.mxu0 0.0
  %1200 = vmatprep.subr.mxu0 0.0
  %1201 = vmatpush2.msra.mxu0 0.0
  %1202 = vmatprep.mubr.f32.mxu0 0.0
  %1203 = vmatmul.mubr.f32.gmra.mxu0 %v1136
  %v1204 = vpop.f32.mrf.mxu0
  %v1205 = vadd.f32 %v458, %v1204
  %v1206 = vpop.f32.mrf.mxu0
  %1207 = vdwg.mxu0
  %1208 = vmatprep.subr.mxu0 0.0
  %1209 = vmatpush1.msra.mxu0 0.0
  %1210 = vmatprep.subr.mxu0 0.0
  %1211 = vmatpush1.msra.mxu0 0.0
  %1212 = vmatprep.subr.mxu0 0.0
  %1213 = vmatpush1.msra.mxu0 0.0
  %1214 = vmatprep.subr.mxu0 0.0
  %1215 = vmatpush1.msra.mxu0 0.0
  %1216 = vmatprep.subr.mxu0 0.0
  %1217 = vmatpush1.msra.mxu0 0.0
  %1218 = vmatprep.subr.mxu0 0.0
  %1219 = vmatpush1.msra.mxu0 0.0
  %1220 = vmatprep.subr.mxu0 0.0
  %1221 = vmatpush1.msra.mxu0 0.0
  %1222 = vmatprep.subr.mxu0 0.0
  %1223 = vmatpush1.msra.mxu0 0.0
  %1224 = vmatprep.subr.mxu0 0.0
  %1225 = vmatpush1.msra.mxu0 0.0
  %1226 = vmatprep.subr.mxu0 0.0
  %1227 = vmatpush1.msra.mxu0 0.0
  %1228 = vmatprep.subr.mxu0 0.0
  %1229 = vmatpush1.msra.mxu0 0.0
  %1230 = vmatprep.subr.mxu0 0.0
  %1231 = vmatpush1.msra.mxu0 0.0
  %1232 = vmatprep.subr.mxu0 0.0
  %1233 = vmatpush1.msra.mxu0 %v452
  %1234 = vmatprep.subr.mxu0 0.0
  %1235 = vmatpush1.msra.mxu0 %v451
  %1236 = vmatprep.subr.mxu0 0.0
  %1237 = vmatpush1.msra.mxu0 %v450
  %1238 = vmatprep.subr.mxu0 0.0
  %1239 = vmatpush1.msra.mxu0 %v449
  %1240 = vmatprep.subr.mxu0 0.0
  %1241 = vmatpush2.msra.mxu0 0.0
  %1242 = vmatprep.subr.mxu0 0.0
  %1243 = vmatpush2.msra.mxu0 0.0
  %1244 = vmatprep.subr.mxu0 0.0
  %1245 = vmatpush2.msra.mxu0 0.0
  %1246 = vmatprep.subr.mxu0 0.0
  %1247 = vmatpush2.msra.mxu0 0.0
  %1248 = vmatprep.subr.mxu0 0.0
  %1249 = vmatpush2.msra.mxu0 0.0
  %1250 = vmatprep.subr.mxu0 0.0
  %1251 = vmatpush2.msra.mxu0 0.0
  %1252 = vmatprep.subr.mxu0 0.0
  %1253 = vmatpush2.msra.mxu0 0.0
  %1254 = vmatprep.subr.mxu0 0.0
  %1255 = vmatpush2.msra.mxu0 0.0
  %1256 = vmatprep.subr.mxu0 0.0
  %1257 = vmatpush2.msra.mxu0 0.0
  %1258 = vmatprep.subr.mxu0 0.0
  %1259 = vmatpush2.msra.mxu0 0.0
  %1260 = vmatprep.subr.mxu0 0.0
  %1261 = vmatpush2.msra.mxu0 0.0
  %1262 = vmatprep.subr.mxu0 0.0
  %1263 = vmatpush2.msra.mxu0 0.0
  %1264 = vmatprep.subr.mxu0 0.0
  %1265 = vmatpush2.msra.mxu0 0.0
  %1266 = vmatprep.subr.mxu0 0.0
  %1267 = vmatpush2.msra.mxu0 0.0
  %1268 = vmatprep.subr.mxu0 0.0
  %1269 = vmatpush2.msra.mxu0 0.0
  %1270 = vmatprep.subr.mxu0 0.0
  %1271 = vmatpush2.msra.mxu0 0.0
  %1272 = vmatprep.mubr.f32.mxu0 0.0
  %1273 = vmatmul.mubr.f32.gmra.mxu0 %v1136
  %v1274 = vpop.f32.mrf.mxu0
  %v1275 = vadd.f32 %v465, %v1274
  %v1276 = vpop.f32.mrf.mxu0
  %1277 = vdwg.mxu0
  %v1278 = vld [vmem:[#allocation2 + $0x20] sm:$0xff]
  %v1279 = vadd.f32 %v1278, %v1205
  %v1280 = vxor.u32 %v1279, 2147483648
  %v1281 = vmul.f32 %v1280, 1.442695
  %v1282 = vpow.pop %v1281
  %v1283 = vadd.f32 %v1282, 1.0
  %v1284 = vrcp.pop %v1283
  %v1285 = vmul.f32 1.0, %v1284
  %v1286 = vld [vmem:[#allocation3 + $0x20] sm:$0xff]
  %v1287 = vmul.f32 %v1285, %v1275
  %v1288 = vadd.f32 %v1286, %v1287
  %v1289 = vtanh.pop %v1288
  %v1290 = vsub.f32 1.0, %v1285
  %1292 = vrot.lane.b32.xlu0 %v1289, 32
  %v1293 = vpop.permute.xlu0 %1292
  %v1295 = vmul.f32 %v1290, %v1293
  %v1296 = vmul.f32 %v1285, %v1130
  %v1297 = vadd.f32 %v1295, %v1296
  %1299 = vrot.lane.b32.xlu0 %v1297, 96
  %v1300 = vpop.permute.xlu0 %1299
  %1302 = vst.msk [vmem:[#allocation4 + $0x20] sm:$0xff] %vm428, %v1300
  %v1303 = vsel %vm428, %v1300, 0
  %1305 = vmatprep.subr.mxu0 0.0
  %1306 = vmatpush1.msra.mxu0 0.0
  %1307 = vmatprep.subr.mxu0 0.0
  %1308 = vmatpush1.msra.mxu0 0.0
  %1309 = vmatprep.subr.mxu0 0.0
  %1310 = vmatpush1.msra.mxu0 0.0
  %1311 = vmatprep.subr.mxu0 0.0
  %1312 = vmatpush1.msra.mxu0 0.0
  %1313 = vmatprep.subr.mxu0 0.0
  %1314 = vmatpush1.msra.mxu0 0.0
  %1315 = vmatprep.subr.mxu0 0.0
  %1316 = vmatpush1.msra.mxu0 0.0
  %1317 = vmatprep.subr.mxu0 0.0
  %1318 = vmatpush1.msra.mxu0 0.0
  %1319 = vmatprep.subr.mxu0 0.0
  %1320 = vmatpush1.msra.mxu0 0.0
  %1321 = vmatprep.subr.mxu0 0.0
  %1322 = vmatpush1.msra.mxu0 0.0
  %1323 = vmatprep.subr.mxu0 0.0
  %1324 = vmatpush1.msra.mxu0 0.0
  %1325 = vmatprep.subr.mxu0 0.0
  %1326 = vmatpush1.msra.mxu0 0.0
  %1327 = vmatprep.subr.mxu0 0.0
  %1328 = vmatpush1.msra.mxu0 0.0
  %1329 = vmatprep.subr.mxu0 0.0
  %1330 = vmatpush1.msra.mxu0 %v448
  %1331 = vmatprep.subr.mxu0 0.0
  %1332 = vmatpush1.msra.mxu0 %v447
  %1333 = vmatprep.subr.mxu0 0.0
  %1334 = vmatpush1.msra.mxu0 %v446
  %1335 = vmatprep.subr.mxu0 0.0
  %1336 = vmatpush1.msra.mxu0 %v445
  %1337 = vmatprep.subr.mxu0 0.0
  %1338 = vmatpush2.msra.mxu0 0.0
  %1339 = vmatprep.subr.mxu0 0.0
  %1340 = vmatpush2.msra.mxu0 0.0
  %1341 = vmatprep.subr.mxu0 0.0
  %1342 = vmatpush2.msra.mxu0 0.0
  %1343 = vmatprep.subr.mxu0 0.0
  %1344 = vmatpush2.msra.mxu0 0.0
  %1345 = vmatprep.subr.mxu0 0.0
  %1346 = vmatpush2.msra.mxu0 0.0
  %1347 = vmatprep.subr.mxu0 0.0
  %1348 = vmatpush2.msra.mxu0 0.0
  %1349 = vmatprep.subr.mxu0 0.0
  %1350 = vmatpush2.msra.mxu0 0.0
  %1351 = vmatprep.subr.mxu0 0.0
  %1352 = vmatpush2.msra.mxu0 0.0
  %1353 = vmatprep.subr.mxu0 0.0
  %1354 = vmatpush2.msra.mxu0 0.0
  %1355 = vmatprep.subr.mxu0 0.0
  %1356 = vmatpush2.msra.mxu0 0.0
  %1357 = vmatprep.subr.mxu0 0.0
  %1358 = vmatpush2.msra.mxu0 0.0
  %1359 = vmatprep.subr.mxu0 0.0
  %1360 = vmatpush2.msra.mxu0 0.0
  %1361 = vmatprep.subr.mxu0 0.0
  %1362 = vmatpush2.msra.mxu0 0.0
  %1363 = vmatprep.subr.mxu0 0.0
  %1364 = vmatpush2.msra.mxu0 0.0
  %1365 = vmatprep.subr.mxu0 0.0
  %1366 = vmatpush2.msra.mxu0 0.0
  %1367 = vmatprep.subr.mxu0 0.0
  %1368 = vmatpush2.msra.mxu0 0.0
  %1369 = vmatprep.mubr.f32.mxu0 0.0
  %1370 = vmatmul.mubr.f32.gmra.mxu0 %v1303
  %v1371 = vpop.f32.mrf.mxu0
  %v1372 = vadd.f32 %v458, %v1371
  %v1373 = vpop.f32.mrf.mxu0
  %1374 = vdwg.mxu0
  %1375 = vmatprep.subr.mxu0 0.0
  %1376 = vmatpush1.msra.mxu0 0.0
  %1377 = vmatprep.subr.mxu0 0.0
  %1378 = vmatpush1.msra.mxu0 0.0
  %1379 = vmatprep.subr.mxu0 0.0
  %1380 = vmatpush1.msra.mxu0 0.0
  %1381 = vmatprep.subr.mxu0 0.0
  %1382 = vmatpush1.msra.mxu0 0.0
  %1383 = vmatprep.subr.mxu0 0.0
  %1384 = vmatpush1.msra.mxu0 0.0
  %1385 = vmatprep.subr.mxu0 0.0
  %1386 = vmatpush1.msra.mxu0 0.0
  %1387 = vmatprep.subr.mxu0 0.0
  %1388 = vmatpush1.msra.mxu0 0.0
  %1389 = vmatprep.subr.mxu0 0.0
  %1390 = vmatpush1.msra.mxu0 0.0
  %1391 = vmatprep.subr.mxu0 0.0
  %1392 = vmatpush1.msra.mxu0 0.0
  %1393 = vmatprep.subr.mxu0 0.0
  %1394 = vmatpush1.msra.mxu0 0.0
  %1395 = vmatprep.subr.mxu0 0.0
  %1396 = vmatpush1.msra.mxu0 0.0
  %1397 = vmatprep.subr.mxu0 0.0
  %1398 = vmatpush1.msra.mxu0 0.0
  %1399 = vmatprep.subr.mxu0 0.0
  %1400 = vmatpush1.msra.mxu0 %v452
  %1401 = vmatprep.subr.mxu0 0.0
  %1402 = vmatpush1.msra.mxu0 %v451
  %1403 = vmatprep.subr.mxu0 0.0
  %1404 = vmatpush1.msra.mxu0 %v450
  %1405 = vmatprep.subr.mxu0 0.0
  %1406 = vmatpush1.msra.mxu0 %v449
  %1407 = vmatprep.subr.mxu0 0.0
  %1408 = vmatpush2.msra.mxu0 0.0
  %1409 = vmatprep.subr.mxu0 0.0
  %1410 = vmatpush2.msra.mxu0 0.0
  %1411 = vmatprep.subr.mxu0 0.0
  %1412 = vmatpush2.msra.mxu0 0.0
  %1413 = vmatprep.subr.mxu0 0.0
  %1414 = vmatpush2.msra.mxu0 0.0
  %1415 = vmatprep.subr.mxu0 0.0
  %1416 = vmatpush2.msra.mxu0 0.0
  %1417 = vmatprep.subr.mxu0 0.0
  %1418 = vmatpush2.msra.mxu0 0.0
  %1419 = vmatprep.subr.mxu0 0.0
  %1420 = vmatpush2.msra.mxu0 0.0
  %1421 = vmatprep.subr.mxu0 0.0
  %1422 = vmatpush2.msra.mxu0 0.0
  %1423 = vmatprep.subr.mxu0 0.0
  %1424 = vmatpush2.msra.mxu0 0.0
  %1425 = vmatprep.subr.mxu0 0.0
  %1426 = vmatpush2.msra.mxu0 0.0
  %1427 = vmatprep.subr.mxu0 0.0
  %1428 = vmatpush2.msra.mxu0 0.0
  %1429 = vmatprep.subr.mxu0 0.0
  %1430 = vmatpush2.msra.mxu0 0.0
  %1431 = vmatprep.subr.mxu0 0.0
  %1432 = vmatpush2.msra.mxu0 0.0
  %1433 = vmatprep.subr.mxu0 0.0
  %1434 = vmatpush2.msra.mxu0 0.0
  %1435 = vmatprep.subr.mxu0 0.0
  %1436 = vmatpush2.msra.mxu0 0.0
  %1437 = vmatprep.subr.mxu0 0.0
  %1438 = vmatpush2.msra.mxu0 0.0
  %1439 = vmatprep.mubr.f32.mxu0 0.0
  %1440 = vmatmul.mubr.f32.gmra.mxu0 %v1303
  %v1441 = vpop.f32.mrf.mxu0
  %v1442 = vadd.f32 %v465, %v1441
  %v1443 = vpop.f32.mrf.mxu0
  %1444 = vdwg.mxu0
  %v1445 = vld [vmem:[#allocation2 + $0x28] sm:$0xff]
  %v1446 = vadd.f32 %v1445, %v1372
  %v1447 = vxor.u32 %v1446, 2147483648
  %v1448 = vmul.f32 %v1447, 1.442695
  %v1449 = vpow.pop %v1448
  %v1450 = vadd.f32 %v1449, 1.0
  %v1451 = vrcp.pop %v1450
  %v1452 = vmul.f32 1.0, %v1451
  %v1453 = vld [vmem:[#allocation3 + $0x28] sm:$0xff]
  %v1454 = vmul.f32 %v1452, %v1442
  %v1455 = vadd.f32 %v1453, %v1454
  %v1456 = vtanh.pop %v1455
  %v1457 = vsub.f32 1.0, %v1452
  %1459 = vrot.lane.b32.xlu0 %v1456, 32
  %v1460 = vpop.permute.xlu0 %1459
  %v1462 = vmul.f32 %v1457, %v1460
  %v1463 = vmul.f32 %v1452, %v1297
  %v1464 = vadd.f32 %v1462, %v1463
  %1466 = vrot.lane.b32.xlu0 %v1464, 96
  %v1467 = vpop.permute.xlu0 %1466
  %1469 = vst.msk [vmem:[#allocation4 + $0x28] sm:$0xff] %vm428, %v1467
  %v1470 = vsel %vm428, %v1467, 0
  %1472 = vmatprep.subr.mxu0 0.0
  %1473 = vmatpush1.msra.mxu0 0.0
  %1474 = vmatprep.subr.mxu0 0.0
  %1475 = vmatpush1.msra.mxu0 0.0
  %1476 = vmatprep.subr.mxu0 0.0
  %1477 = vmatpush1.msra.mxu0 0.0
  %1478 = vmatprep.subr.mxu0 0.0
  %1479 = vmatpush1.msra.mxu0 0.0
  %1480 = vmatprep.subr.mxu0 0.0
  %1481 = vmatpush1.msra.mxu0 0.0
  %1482 = vmatprep.subr.mxu0 0.0
  %1483 = vmatpush1.msra.mxu0 0.0
  %1484 = vmatprep.subr.mxu0 0.0
  %1485 = vmatpush1.msra.mxu0 0.0
  %1486 = vmatprep.subr.mxu0 0.0
  %1487 = vmatpush1.msra.mxu0 0.0
  %1488 = vmatprep.subr.mxu0 0.0
  %1489 = vmatpush1.msra.mxu0 0.0
  %1490 = vmatprep.subr.mxu0 0.0
  %1491 = vmatpush1.msra.mxu0 0.0
  %1492 = vmatprep.subr.mxu0 0.0
  %1493 = vmatpush1.msra.mxu0 0.0
  %1494 = vmatprep.subr.mxu0 0.0
  %1495 = vmatpush1.msra.mxu0 0.0
  %1496 = vmatprep.subr.mxu0 0.0
  %1497 = vmatpush1.msra.mxu0 %v448
  %1498 = vmatprep.subr.mxu0 0.0
  %1499 = vmatpush1.msra.mxu0 %v447
  %1500 = vmatprep.subr.mxu0 0.0
  %1501 = vmatpush1.msra.mxu0 %v446
  %1502 = vmatprep.subr.mxu0 0.0
  %1503 = vmatpush1.msra.mxu0 %v445
  %1504 = vmatprep.subr.mxu0 0.0
  %1505 = vmatpush2.msra.mxu0 0.0
  %1506 = vmatprep.subr.mxu0 0.0
  %1507 = vmatpush2.msra.mxu0 0.0
  %1508 = vmatprep.subr.mxu0 0.0
  %1509 = vmatpush2.msra.mxu0 0.0
  %1510 = vmatprep.subr.mxu0 0.0
  %1511 = vmatpush2.msra.mxu0 0.0
  %1512 = vmatprep.subr.mxu0 0.0
  %1513 = vmatpush2.msra.mxu0 0.0
  %1514 = vmatprep.subr.mxu0 0.0
  %1515 = vmatpush2.msra.mxu0 0.0
  %1516 = vmatprep.subr.mxu0 0.0
  %1517 = vmatpush2.msra.mxu0 0.0
  %1518 = vmatprep.subr.mxu0 0.0
  %1519 = vmatpush2.msra.mxu0 0.0
  %1520 = vmatprep.subr.mxu0 0.0
  %1521 = vmatpush2.msra.mxu0 0.0
  %1522 = vmatprep.subr.mxu0 0.0
  %1523 = vmatpush2.msra.mxu0 0.0
  %1524 = vmatprep.subr.mxu0 0.0
  %1525 = vmatpush2.msra.mxu0 0.0
  %1526 = vmatprep.subr.mxu0 0.0
  %1527 = vmatpush2.msra.mxu0 0.0
  %1528 = vmatprep.subr.mxu0 0.0
  %1529 = vmatpush2.msra.mxu0 0.0
  %1530 = vmatprep.subr.mxu0 0.0
  %1531 = vmatpush2.msra.mxu0 0.0
  %1532 = vmatprep.subr.mxu0 0.0
  %1533 = vmatpush2.msra.mxu0 0.0
  %1534 = vmatprep.subr.mxu0 0.0
  %1535 = vmatpush2.msra.mxu0 0.0
  %1536 = vmatprep.mubr.f32.mxu0 0.0
  %1537 = vmatmul.mubr.f32.gmra.mxu0 %v1470
  %v1538 = vpop.f32.mrf.mxu0
  %v1539 = vadd.f32 %v458, %v1538
  %v1540 = vpop.f32.mrf.mxu0
  %1541 = vdwg.mxu0
  %1542 = vmatprep.subr.mxu0 0.0
  %1543 = vmatpush1.msra.mxu0 0.0
  %1544 = vmatprep.subr.mxu0 0.0
  %1545 = vmatpush1.msra.mxu0 0.0
  %1546 = vmatprep.subr.mxu0 0.0
  %1547 = vmatpush1.msra.mxu0 0.0
  %1548 = vmatprep.subr.mxu0 0.0
  %1549 = vmatpush1.msra.mxu0 0.0
  %1550 = vmatprep.subr.mxu0 0.0
  %1551 = vmatpush1.msra.mxu0 0.0
  %1552 = vmatprep.subr.mxu0 0.0
  %1553 = vmatpush1.msra.mxu0 0.0
  %1554 = vmatprep.subr.mxu0 0.0
  %1555 = vmatpush1.msra.mxu0 0.0
  %1556 = vmatprep.subr.mxu0 0.0
  %1557 = vmatpush1.msra.mxu0 0.0
  %1558 = vmatprep.subr.mxu0 0.0
  %1559 = vmatpush1.msra.mxu0 0.0
  %1560 = vmatprep.subr.mxu0 0.0
  %1561 = vmatpush1.msra.mxu0 0.0
  %1562 = vmatprep.subr.mxu0 0.0
  %1563 = vmatpush1.msra.mxu0 0.0
  %1564 = vmatprep.subr.mxu0 0.0
  %1565 = vmatpush1.msra.mxu0 0.0
  %1566 = vmatprep.subr.mxu0 0.0
  %1567 = vmatpush1.msra.mxu0 %v452
  %1568 = vmatprep.subr.mxu0 0.0
  %1569 = vmatpush1.msra.mxu0 %v451
  %1570 = vmatprep.subr.mxu0 0.0
  %1571 = vmatpush1.msra.mxu0 %v450
  %1572 = vmatprep.subr.mxu0 0.0
  %1573 = vmatpush1.msra.mxu0 %v449
  %1574 = vmatprep.subr.mxu0 0.0
  %1575 = vmatpush2.msra.mxu0 0.0
  %1576 = vmatprep.subr.mxu0 0.0
  %1577 = vmatpush2.msra.mxu0 0.0
  %1578 = vmatprep.subr.mxu0 0.0
  %1579 = vmatpush2.msra.mxu0 0.0
  %1580 = vmatprep.subr.mxu0 0.0
  %1581 = vmatpush2.msra.mxu0 0.0
  %1582 = vmatprep.subr.mxu0 0.0
  %1583 = vmatpush2.msra.mxu0 0.0
  %1584 = vmatprep.subr.mxu0 0.0
  %1585 = vmatpush2.msra.mxu0 0.0
  %1586 = vmatprep.subr.mxu0 0.0
  %1587 = vmatpush2.msra.mxu0 0.0
  %1588 = vmatprep.subr.mxu0 0.0
  %1589 = vmatpush2.msra.mxu0 0.0
  %1590 = vmatprep.subr.mxu0 0.0
  %1591 = vmatpush2.msra.mxu0 0.0
  %1592 = vmatprep.subr.mxu0 0.0
  %1593 = vmatpush2.msra.mxu0 0.0
  %1594 = vmatprep.subr.mxu0 0.0
  %1595 = vmatpush2.msra.mxu0 0.0
  %1596 = vmatprep.subr.mxu0 0.0
  %1597 = vmatpush2.msra.mxu0 0.0
  %1598 = vmatprep.subr.mxu0 0.0
  %1599 = vmatpush2.msra.mxu0 0.0
  %1600 = vmatprep.subr.mxu0 0.0
  %1601 = vmatpush2.msra.mxu0 0.0
  %1602 = vmatprep.subr.mxu0 0.0
  %1603 = vmatpush2.msra.mxu0 0.0
  %1604 = vmatprep.subr.mxu0 0.0
  %1605 = vmatpush2.msra.mxu0 0.0
  %1606 = vmatprep.mubr.f32.mxu0 0.0
  %1607 = vmatmul.mubr.f32.gmra.mxu0 %v1470
  %v1608 = vpop.f32.mrf.mxu0
  %v1609 = vadd.f32 %v465, %v1608
  %v1610 = vpop.f32.mrf.mxu0
  %1611 = vdwg.mxu0
  %v1612 = vld [vmem:[#allocation2 + $0x30] sm:$0xff]
  %v1613 = vadd.f32 %v1612, %v1539
  %v1614 = vxor.u32 %v1613, 2147483648
  %v1615 = vmul.f32 %v1614, 1.442695
  %v1616 = vpow.pop %v1615
  %v1617 = vadd.f32 %v1616, 1.0
  %v1618 = vrcp.pop %v1617
  %v1619 = vmul.f32 1.0, %v1618
  %v1620 = vld [vmem:[#allocation3 + $0x30] sm:$0xff]
  %v1621 = vmul.f32 %v1619, %v1609
  %v1622 = vadd.f32 %v1620, %v1621
  %v1623 = vtanh.pop %v1622
  %v1624 = vsub.f32 1.0, %v1619
  %1626 = vrot.lane.b32.xlu0 %v1623, 32
  %v1627 = vpop.permute.xlu0 %1626
  %v1629 = vmul.f32 %v1624, %v1627
  %v1630 = vmul.f32 %v1619, %v1464
  %v1631 = vadd.f32 %v1629, %v1630
  %1633 = vrot.lane.b32.xlu0 %v1631, 96
  %v1634 = vpop.permute.xlu0 %1633
  %1636 = vst.msk [vmem:[#allocation4 + $0x30] sm:$0xff] %vm428, %v1634
  %v1637 = vsel %vm428, %v1634, 0
  %1639 = vmatprep.subr.mxu0 0.0
  %1640 = vmatpush1.msra.mxu0 0.0
  %1641 = vmatprep.subr.mxu0 0.0
  %1642 = vmatpush1.msra.mxu0 0.0
  %1643 = vmatprep.subr.mxu0 0.0
  %1644 = vmatpush1.msra.mxu0 0.0
  %1645 = vmatprep.subr.mxu0 0.0
  %1646 = vmatpush1.msra.mxu0 0.0
  %1647 = vmatprep.subr.mxu0 0.0
  %1648 = vmatpush1.msra.mxu0 0.0
  %1649 = vmatprep.subr.mxu0 0.0
  %1650 = vmatpush1.msra.mxu0 0.0
  %1651 = vmatprep.subr.mxu0 0.0
  %1652 = vmatpush1.msra.mxu0 0.0
  %1653 = vmatprep.subr.mxu0 0.0
  %1654 = vmatpush1.msra.mxu0 0.0
  %1655 = vmatprep.subr.mxu0 0.0
  %1656 = vmatpush1.msra.mxu0 0.0
  %1657 = vmatprep.subr.mxu0 0.0
  %1658 = vmatpush1.msra.mxu0 0.0
  %1659 = vmatprep.subr.mxu0 0.0
  %1660 = vmatpush1.msra.mxu0 0.0
  %1661 = vmatprep.subr.mxu0 0.0
  %1662 = vmatpush1.msra.mxu0 0.0
  %1663 = vmatprep.subr.mxu0 0.0
  %1664 = vmatpush1.msra.mxu0 %v448
  %1665 = vmatprep.subr.mxu0 0.0
  %1666 = vmatpush1.msra.mxu0 %v447
  %1667 = vmatprep.subr.mxu0 0.0
  %1668 = vmatpush1.msra.mxu0 %v446
  %1669 = vmatprep.subr.mxu0 0.0
  %1670 = vmatpush1.msra.mxu0 %v445
  %1671 = vmatprep.subr.mxu0 0.0
  %1672 = vmatpush2.msra.mxu0 0.0
  %1673 = vmatprep.subr.mxu0 0.0
  %1674 = vmatpush2.msra.mxu0 0.0
  %1675 = vmatprep.subr.mxu0 0.0
  %1676 = vmatpush2.msra.mxu0 0.0
  %1677 = vmatprep.subr.mxu0 0.0
  %1678 = vmatpush2.msra.mxu0 0.0
  %1679 = vmatprep.subr.mxu0 0.0
  %1680 = vmatpush2.msra.mxu0 0.0
  %1681 = vmatprep.subr.mxu0 0.0
  %1682 = vmatpush2.msra.mxu0 0.0
  %1683 = vmatprep.subr.mxu0 0.0
  %1684 = vmatpush2.msra.mxu0 0.0
  %1685 = vmatprep.subr.mxu0 0.0
  %1686 = vmatpush2.msra.mxu0 0.0
  %1687 = vmatprep.subr.mxu0 0.0
  %1688 = vmatpush2.msra.mxu0 0.0
  %1689 = vmatprep.subr.mxu0 0.0
  %1690 = vmatpush2.msra.mxu0 0.0
  %1691 = vmatprep.subr.mxu0 0.0
  %1692 = vmatpush2.msra.mxu0 0.0
  %1693 = vmatprep.subr.mxu0 0.0
  %1694 = vmatpush2.msra.mxu0 0.0
  %1695 = vmatprep.subr.mxu0 0.0
  %1696 = vmatpush2.msra.mxu0 0.0
  %1697 = vmatprep.subr.mxu0 0.0
  %1698 = vmatpush2.msra.mxu0 0.0
  %1699 = vmatprep.subr.mxu0 0.0
  %1700 = vmatpush2.msra.mxu0 0.0
  %1701 = vmatprep.subr.mxu0 0.0
  %1702 = vmatpush2.msra.mxu0 0.0
  %1703 = vmatprep.mubr.f32.mxu0 0.0
  %1704 = vmatmul.mubr.f32.gmra.mxu0 %v1637
  %v1705 = vpop.f32.mrf.mxu0
  %v1706 = vadd.f32 %v458, %v1705
  %v1707 = vpop.f32.mrf.mxu0
  %1708 = vdwg.mxu0
  %1709 = vmatprep.subr.mxu0 0.0
  %1710 = vmatpush1.msra.mxu0 0.0
  %1711 = vmatprep.subr.mxu0 0.0
  %1712 = vmatpush1.msra.mxu0 0.0
  %1713 = vmatprep.subr.mxu0 0.0
  %1714 = vmatpush1.msra.mxu0 0.0
  %1715 = vmatprep.subr.mxu0 0.0
  %1716 = vmatpush1.msra.mxu0 0.0
  %1717 = vmatprep.subr.mxu0 0.0
  %1718 = vmatpush1.msra.mxu0 0.0
  %1719 = vmatprep.subr.mxu0 0.0
  %1720 = vmatpush1.msra.mxu0 0.0
  %1721 = vmatprep.subr.mxu0 0.0
  %1722 = vmatpush1.msra.mxu0 0.0
  %1723 = vmatprep.subr.mxu0 0.0
  %1724 = vmatpush1.msra.mxu0 0.0
  %1725 = vmatprep.subr.mxu0 0.0
  %1726 = vmatpush1.msra.mxu0 0.0
  %1727 = vmatprep.subr.mxu0 0.0
  %1728 = vmatpush1.msra.mxu0 0.0
  %1729 = vmatprep.subr.mxu0 0.0
  %1730 = vmatpush1.msra.mxu0 0.0
  %1731 = vmatprep.subr.mxu0 0.0
  %1732 = vmatpush1.msra.mxu0 0.0
  %1733 = vmatprep.subr.mxu0 0.0
  %1734 = vmatpush1.msra.mxu0 %v452
  %1735 = vmatprep.subr.mxu0 0.0
  %1736 = vmatpush1.msra.mxu0 %v451
  %1737 = vmatprep.subr.mxu0 0.0
  %1738 = vmatpush1.msra.mxu0 %v450
  %1739 = vmatprep.subr.mxu0 0.0
  %1740 = vmatpush1.msra.mxu0 %v449
  %1741 = vmatprep.subr.mxu0 0.0
  %1742 = vmatpush2.msra.mxu0 0.0
  %1743 = vmatprep.subr.mxu0 0.0
  %1744 = vmatpush2.msra.mxu0 0.0
  %1745 = vmatprep.subr.mxu0 0.0
  %1746 = vmatpush2.msra.mxu0 0.0
  %1747 = vmatprep.subr.mxu0 0.0
  %1748 = vmatpush2.msra.mxu0 0.0
  %1749 = vmatprep.subr.mxu0 0.0
  %1750 = vmatpush2.msra.mxu0 0.0
  %1751 = vmatprep.subr.mxu0 0.0
  %1752 = vmatpush2.msra.mxu0 0.0
  %1753 = vmatprep.subr.mxu0 0.0
  %1754 = vmatpush2.msra.mxu0 0.0
  %1755 = vmatprep.subr.mxu0 0.0
  %1756 = vmatpush2.msra.mxu0 0.0
  %1757 = vmatprep.subr.mxu0 0.0
  %1758 = vmatpush2.msra.mxu0 0.0
  %1759 = vmatprep.subr.mxu0 0.0
  %1760 = vmatpush2.msra.mxu0 0.0
  %1761 = vmatprep.subr.mxu0 0.0
  %1762 = vmatpush2.msra.mxu0 0.0
  %1763 = vmatprep.subr.mxu0 0.0
  %1764 = vmatpush2.msra.mxu0 0.0
  %1765 = vmatprep.subr.mxu0 0.0
  %1766 = vmatpush2.msra.mxu0 0.0
  %1767 = vmatprep.subr.mxu0 0.0
  %1768 = vmatpush2.msra.mxu0 0.0
  %1769 = vmatprep.subr.mxu0 0.0
  %1770 = vmatpush2.msra.mxu0 0.0
  %1771 = vmatprep.subr.mxu0 0.0
  %1772 = vmatpush2.msra.mxu0 0.0
  %1773 = vmatprep.mubr.f32.mxu0 0.0
  %1774 = vmatmul.mubr.f32.gmra.mxu0 %v1637
  %v1775 = vpop.f32.mrf.mxu0
  %v1776 = vadd.f32 %v465, %v1775
  %v1777 = vpop.f32.mrf.mxu0
  %1778 = vdwg.mxu0
  %v1779 = vld [vmem:[#allocation2 + $0x38] sm:$0xff]
  %v1780 = vadd.f32 %v1779, %v1706
  %v1781 = vxor.u32 %v1780, 2147483648
  %v1782 = vmul.f32 %v1781, 1.442695
  %v1783 = vpow.pop %v1782
  %v1784 = vadd.f32 %v1783, 1.0
  %v1785 = vrcp.pop %v1784
  %v1786 = vmul.f32 1.0, %v1785
  %v1787 = vld [vmem:[#allocation3 + $0x38] sm:$0xff]
  %v1788 = vmul.f32 %v1786, %v1776
  %v1789 = vadd.f32 %v1787, %v1788
  %v1790 = vtanh.pop %v1789
  %v1791 = vsub.f32 1.0, %v1786
  %1793 = vrot.lane.b32.xlu0 %v1790, 32
  %v1794 = vpop.permute.xlu0 %1793
  %v1796 = vmul.f32 %v1791, %v1794
  %v1797 = vmul.f32 %v1786, %v1631
  %v1798 = vadd.f32 %v1796, %v1797
  %1800 = vrot.lane.b32.xlu0 %v1798, 96
  %v1801 = vpop.permute.xlu0 %1800
  %1803 = vst.msk [vmem:[#allocation4 + $0x38] sm:$0xff] %vm428, %v1801
  %v1804 = vsel %vm428, %v1801, 0
  %1806 = vmatprep.subr.mxu0 0.0
  %1807 = vmatpush1.msra.mxu0 0.0
  %1808 = vmatprep.subr.mxu0 0.0
  %1809 = vmatpush1.msra.mxu0 0.0
  %1810 = vmatprep.subr.mxu0 0.0
  %1811 = vmatpush1.msra.mxu0 0.0
  %1812 = vmatprep.subr.mxu0 0.0
  %1813 = vmatpush1.msra.mxu0 0.0
  %1814 = vmatprep.subr.mxu0 0.0
  %1815 = vmatpush1.msra.mxu0 0.0
  %1816 = vmatprep.subr.mxu0 0.0
  %1817 = vmatpush1.msra.mxu0 0.0
  %1818 = vmatprep.subr.mxu0 0.0
  %1819 = vmatpush1.msra.mxu0 0.0
  %1820 = vmatprep.subr.mxu0 0.0
  %1821 = vmatpush1.msra.mxu0 0.0
  %1822 = vmatprep.subr.mxu0 0.0
  %1823 = vmatpush1.msra.mxu0 0.0
  %1824 = vmatprep.subr.mxu0 0.0
  %1825 = vmatpush1.msra.mxu0 0.0
  %1826 = vmatprep.subr.mxu0 0.0
  %1827 = vmatpush1.msra.mxu0 0.0
  %1828 = vmatprep.subr.mxu0 0.0
  %1829 = vmatpush1.msra.mxu0 0.0
  %1830 = vmatprep.subr.mxu0 0.0
  %1831 = vmatpush1.msra.mxu0 %v448
  %1832 = vmatprep.subr.mxu0 0.0
  %1833 = vmatpush1.msra.mxu0 %v447
  %1834 = vmatprep.subr.mxu0 0.0
  %1835 = vmatpush1.msra.mxu0 %v446
  %1836 = vmatprep.subr.mxu0 0.0
  %1837 = vmatpush1.msra.mxu0 %v445
  %1838 = vmatprep.subr.mxu0 0.0
  %1839 = vmatpush2.msra.mxu0 0.0
  %1840 = vmatprep.subr.mxu0 0.0
  %1841 = vmatpush2.msra.mxu0 0.0
  %1842 = vmatprep.subr.mxu0 0.0
  %1843 = vmatpush2.msra.mxu0 0.0
  %1844 = vmatprep.subr.mxu0 0.0
  %1845 = vmatpush2.msra.mxu0 0.0
  %1846 = vmatprep.subr.mxu0 0.0
  %1847 = vmatpush2.msra.mxu0 0.0
  %1848 = vmatprep.subr.mxu0 0.0
  %1849 = vmatpush2.msra.mxu0 0.0
  %1850 = vmatprep.subr.mxu0 0.0
  %1851 = vmatpush2.msra.mxu0 0.0
  %1852 = vmatprep.subr.mxu0 0.0
  %1853 = vmatpush2.msra.mxu0 0.0
  %1854 = vmatprep.subr.mxu0 0.0
  %1855 = vmatpush2.msra.mxu0 0.0
  %1856 = vmatprep.subr.mxu0 0.0
  %1857 = vmatpush2.msra.mxu0 0.0
  %1858 = vmatprep.subr.mxu0 0.0
  %1859 = vmatpush2.msra.mxu0 0.0
  %1860 = vmatprep.subr.mxu0 0.0
  %1861 = vmatpush2.msra.mxu0 0.0
  %1862 = vmatprep.subr.mxu0 0.0
  %1863 = vmatpush2.msra.mxu0 0.0
  %1864 = vmatprep.subr.mxu0 0.0
  %1865 = vmatpush2.msra.mxu0 0.0
  %1866 = vmatprep.subr.mxu0 0.0
  %1867 = vmatpush2.msra.mxu0 0.0
  %1868 = vmatprep.subr.mxu0 0.0
  %1869 = vmatpush2.msra.mxu0 0.0
  %1870 = vmatprep.mubr.f32.mxu0 0.0
  %1871 = vmatmul.mubr.f32.gmra.mxu0 %v1804
  %v1872 = vpop.f32.mrf.mxu0
  %v1873 = vadd.f32 %v458, %v1872
  %v1874 = vpop.f32.mrf.mxu0
  %1875 = vdwg.mxu0
  %1876 = vmatprep.subr.mxu0 0.0
  %1877 = vmatpush1.msra.mxu0 0.0
  %1878 = vmatprep.subr.mxu0 0.0
  %1879 = vmatpush1.msra.mxu0 0.0
  %1880 = vmatprep.subr.mxu0 0.0
  %1881 = vmatpush1.msra.mxu0 0.0
  %1882 = vmatprep.subr.mxu0 0.0
  %1883 = vmatpush1.msra.mxu0 0.0
  %1884 = vmatprep.subr.mxu0 0.0
  %1885 = vmatpush1.msra.mxu0 0.0
  %1886 = vmatprep.subr.mxu0 0.0
  %1887 = vmatpush1.msra.mxu0 0.0
  %1888 = vmatprep.subr.mxu0 0.0
  %1889 = vmatpush1.msra.mxu0 0.0
  %1890 = vmatprep.subr.mxu0 0.0
  %1891 = vmatpush1.msra.mxu0 0.0
  %1892 = vmatprep.subr.mxu0 0.0
  %1893 = vmatpush1.msra.mxu0 0.0
  %1894 = vmatprep.subr.mxu0 0.0
  %1895 = vmatpush1.msra.mxu0 0.0
  %1896 = vmatprep.subr.mxu0 0.0
  %1897 = vmatpush1.msra.mxu0 0.0
  %1898 = vmatprep.subr.mxu0 0.0
  %1899 = vmatpush1.msra.mxu0 0.0
  %1900 = vmatprep.subr.mxu0 0.0
  %1901 = vmatpush1.msra.mxu0 %v452
  %1902 = vmatprep.subr.mxu0 0.0
  %1903 = vmatpush1.msra.mxu0 %v451
  %1904 = vmatprep.subr.mxu0 0.0
  %1905 = vmatpush1.msra.mxu0 %v450
  %1906 = vmatprep.subr.mxu0 0.0
  %1907 = vmatpush1.msra.mxu0 %v449
  %1908 = vmatprep.subr.mxu0 0.0
  %1909 = vmatpush2.msra.mxu0 0.0
  %1910 = vmatprep.subr.mxu0 0.0
  %1911 = vmatpush2.msra.mxu0 0.0
  %1912 = vmatprep.subr.mxu0 0.0
  %1913 = vmatpush2.msra.mxu0 0.0
  %1914 = vmatprep.subr.mxu0 0.0
  %1915 = vmatpush2.msra.mxu0 0.0
  %1916 = vmatprep.subr.mxu0 0.0
  %1917 = vmatpush2.msra.mxu0 0.0
  %1918 = vmatprep.subr.mxu0 0.0
  %1919 = vmatpush2.msra.mxu0 0.0
  %1920 = vmatprep.subr.mxu0 0.0
  %1921 = vmatpush2.msra.mxu0 0.0
  %1922 = vmatprep.subr.mxu0 0.0
  %1923 = vmatpush2.msra.mxu0 0.0
  %1924 = vmatprep.subr.mxu0 0.0
  %1925 = vmatpush2.msra.mxu0 0.0
  %1926 = vmatprep.subr.mxu0 0.0
  %1927 = vmatpush2.msra.mxu0 0.0
  %1928 = vmatprep.subr.mxu0 0.0
  %1929 = vmatpush2.msra.mxu0 0.0
  %1930 = vmatprep.subr.mxu0 0.0
  %1931 = vmatpush2.msra.mxu0 0.0
  %1932 = vmatprep.subr.mxu0 0.0
  %1933 = vmatpush2.msra.mxu0 0.0
  %1934 = vmatprep.subr.mxu0 0.0
  %1935 = vmatpush2.msra.mxu0 0.0
  %1936 = vmatprep.subr.mxu0 0.0
  %1937 = vmatpush2.msra.mxu0 0.0
  %1938 = vmatprep.subr.mxu0 0.0
  %1939 = vmatpush2.msra.mxu0 0.0
  %1940 = vmatprep.mubr.f32.mxu0 0.0
  %1941 = vmatmul.mubr.f32.gmra.mxu0 %v1804
  %v1942 = vpop.f32.mrf.mxu0
  %v1943 = vadd.f32 %v465, %v1942
  %v1944 = vpop.f32.mrf.mxu0
  %1945 = vdwg.mxu0
  %v1946 = vld [vmem:[#allocation2 + $0x40] sm:$0xff]
  %v1947 = vadd.f32 %v1946, %v1873
  %v1948 = vxor.u32 %v1947, 2147483648
  %v1949 = vmul.f32 %v1948, 1.442695
  %v1950 = vpow.pop %v1949
  %v1951 = vadd.f32 %v1950, 1.0
  %v1952 = vrcp.pop %v1951
  %v1953 = vmul.f32 1.0, %v1952
  %v1954 = vld [vmem:[#allocation3 + $0x40] sm:$0xff]
  %v1955 = vmul.f32 %v1953, %v1943
  %v1956 = vadd.f32 %v1954, %v1955
  %v1957 = vtanh.pop %v1956
  %v1958 = vsub.f32 1.0, %v1953
  %1960 = vrot.lane.b32.xlu0 %v1957, 32
  %v1961 = vpop.permute.xlu0 %1960
  %v1963 = vmul.f32 %v1958, %v1961
  %v1964 = vmul.f32 %v1953, %v1798
  %v1965 = vadd.f32 %v1963, %v1964
  %1967 = vrot.lane.b32.xlu0 %v1965, 96
  %v1968 = vpop.permute.xlu0 %1967
  %1970 = vst.msk [vmem:[#allocation4 + $0x40] sm:$0xff] %vm428, %v1968
  %v1971 = vsel %vm428, %v1968, 0
  %1973 = vmatprep.subr.mxu0 0.0
  %1974 = vmatpush1.msra.mxu0 0.0
  %1975 = vmatprep.subr.mxu0 0.0
  %1976 = vmatpush1.msra.mxu0 0.0
  %1977 = vmatprep.subr.mxu0 0.0
  %1978 = vmatpush1.msra.mxu0 0.0
  %1979 = vmatprep.subr.mxu0 0.0
  %1980 = vmatpush1.msra.mxu0 0.0
  %1981 = vmatprep.subr.mxu0 0.0
  %1982 = vmatpush1.msra.mxu0 0.0
  %1983 = vmatprep.subr.mxu0 0.0
  %1984 = vmatpush1.msra.mxu0 0.0
  %1985 = vmatprep.subr.mxu0 0.0
  %1986 = vmatpush1.msra.mxu0 0.0
  %1987 = vmatprep.subr.mxu0 0.0
  %1988 = vmatpush1.msra.mxu0 0.0
  %1989 = vmatprep.subr.mxu0 0.0
  %1990 = vmatpush1.msra.mxu0 0.0
  %1991 = vmatprep.subr.mxu0 0.0
  %1992 = vmatpush1.msra.mxu0 0.0
  %1993 = vmatprep.subr.mxu0 0.0
  %1994 = vmatpush1.msra.mxu0 0.0
  %1995 = vmatprep.subr.mxu0 0.0
  %1996 = vmatpush1.msra.mxu0 0.0
  %1997 = vmatprep.subr.mxu0 0.0
  %1998 = vmatpush1.msra.mxu0 %v448
  %1999 = vmatprep.subr.mxu0 0.0
  %2000 = vmatpush1.msra.mxu0 %v447
  %2001 = vmatprep.subr.mxu0 0.0
  %2002 = vmatpush1.msra.mxu0 %v446
  %2003 = vmatprep.subr.mxu0 0.0
  %2004 = vmatpush1.msra.mxu0 %v445
  %2005 = vmatprep.subr.mxu0 0.0
  %2006 = vmatpush2.msra.mxu0 0.0
  %2007 = vmatprep.subr.mxu0 0.0
  %2008 = vmatpush2.msra.mxu0 0.0
  %2009 = vmatprep.subr.mxu0 0.0
  %2010 = vmatpush2.msra.mxu0 0.0
  %2011 = vmatprep.subr.mxu0 0.0
  %2012 = vmatpush2.msra.mxu0 0.0
  %2013 = vmatprep.subr.mxu0 0.0
  %2014 = vmatpush2.msra.mxu0 0.0
  %2015 = vmatprep.subr.mxu0 0.0
  %2016 = vmatpush2.msra.mxu0 0.0
  %2017 = vmatprep.subr.mxu0 0.0
  %2018 = vmatpush2.msra.mxu0 0.0
  %2019 = vmatprep.subr.mxu0 0.0
  %2020 = vmatpush2.msra.mxu0 0.0
  %2021 = vmatprep.subr.mxu0 0.0
  %2022 = vmatpush2.msra.mxu0 0.0
  %2023 = vmatprep.subr.mxu0 0.0
  %2024 = vmatpush2.msra.mxu0 0.0
  %2025 = vmatprep.subr.mxu0 0.0
  %2026 = vmatpush2.msra.mxu0 0.0
  %2027 = vmatprep.subr.mxu0 0.0
  %2028 = vmatpush2.msra.mxu0 0.0
  %2029 = vmatprep.subr.mxu0 0.0
  %2030 = vmatpush2.msra.mxu0 0.0
  %2031 = vmatprep.subr.mxu0 0.0
  %2032 = vmatpush2.msra.mxu0 0.0
  %2033 = vmatprep.subr.mxu0 0.0
  %2034 = vmatpush2.msra.mxu0 0.0
  %2035 = vmatprep.subr.mxu0 0.0
  %2036 = vmatpush2.msra.mxu0 0.0
  %2037 = vmatprep.mubr.f32.mxu0 0.0
  %2038 = vmatmul.mubr.f32.gmra.mxu0 %v1971
  %v2039 = vpop.f32.mrf.mxu0
  %v2040 = vadd.f32 %v458, %v2039
  %v2041 = vpop.f32.mrf.mxu0
  %2042 = vdwg.mxu0
  %2043 = vmatprep.subr.mxu0 0.0
  %2044 = vmatpush1.msra.mxu0 0.0
  %2045 = vmatprep.subr.mxu0 0.0
  %2046 = vmatpush1.msra.mxu0 0.0
  %2047 = vmatprep.subr.mxu0 0.0
  %2048 = vmatpush1.msra.mxu0 0.0
  %2049 = vmatprep.subr.mxu0 0.0
  %2050 = vmatpush1.msra.mxu0 0.0
  %2051 = vmatprep.subr.mxu0 0.0
  %2052 = vmatpush1.msra.mxu0 0.0
  %2053 = vmatprep.subr.mxu0 0.0
  %2054 = vmatpush1.msra.mxu0 0.0
  %2055 = vmatprep.subr.mxu0 0.0
  %2056 = vmatpush1.msra.mxu0 0.0
  %2057 = vmatprep.subr.mxu0 0.0
  %2058 = vmatpush1.msra.mxu0 0.0
  %2059 = vmatprep.subr.mxu0 0.0
  %2060 = vmatpush1.msra.mxu0 0.0
  %2061 = vmatprep.subr.mxu0 0.0
  %2062 = vmatpush1.msra.mxu0 0.0
  %2063 = vmatprep.subr.mxu0 0.0
  %2064 = vmatpush1.msra.mxu0 0.0
  %2065 = vmatprep.subr.mxu0 0.0
  %2066 = vmatpush1.msra.mxu0 0.0
  %2067 = vmatprep.subr.mxu0 0.0
  %2068 = vmatpush1.msra.mxu0 %v452
  %2069 = vmatprep.subr.mxu0 0.0
  %2070 = vmatpush1.msra.mxu0 %v451
  %2071 = vmatprep.subr.mxu0 0.0
  %2072 = vmatpush1.msra.mxu0 %v450
  %2073 = vmatprep.subr.mxu0 0.0
  %2074 = vmatpush1.msra.mxu0 %v449
  %2075 = vmatprep.subr.mxu0 0.0
  %2076 = vmatpush2.msra.mxu0 0.0
  %2077 = vmatprep.subr.mxu0 0.0
  %2078 = vmatpush2.msra.mxu0 0.0
  %2079 = vmatprep.subr.mxu0 0.0
  %2080 = vmatpush2.msra.mxu0 0.0
  %2081 = vmatprep.subr.mxu0 0.0
  %2082 = vmatpush2.msra.mxu0 0.0
  %2083 = vmatprep.subr.mxu0 0.0
  %2084 = vmatpush2.msra.mxu0 0.0
  %2085 = vmatprep.subr.mxu0 0.0
  %2086 = vmatpush2.msra.mxu0 0.0
  %2087 = vmatprep.subr.mxu0 0.0
  %2088 = vmatpush2.msra.mxu0 0.0
  %2089 = vmatprep.subr.mxu0 0.0
  %2090 = vmatpush2.msra.mxu0 0.0
  %2091 = vmatprep.subr.mxu0 0.0
  %2092 = vmatpush2.msra.mxu0 0.0
  %2093 = vmatprep.subr.mxu0 0.0
  %2094 = vmatpush2.msra.mxu0 0.0
  %2095 = vmatprep.subr.mxu0 0.0
  %2096 = vmatpush2.msra.mxu0 0.0
  %2097 = vmatprep.subr.mxu0 0.0
  %2098 = vmatpush2.msra.mxu0 0.0
  %2099 = vmatprep.subr.mxu0 0.0
  %2100 = vmatpush2.msra.mxu0 0.0
  %2101 = vmatprep.subr.mxu0 0.0
  %2102 = vmatpush2.msra.mxu0 0.0
  %2103 = vmatprep.subr.mxu0 0.0
  %2104 = vmatpush2.msra.mxu0 0.0
  %2105 = vmatprep.subr.mxu0 0.0
  %2106 = vmatpush2.msra.mxu0 0.0
  %2107 = vmatprep.mubr.f32.mxu0 0.0
  %2108 = vmatmul.mubr.f32.gmra.mxu0 %v1971
  %v2109 = vpop.f32.mrf.mxu0
  %v2110 = vadd.f32 %v465, %v2109
  %v2111 = vpop.f32.mrf.mxu0
  %2112 = vdwg.mxu0
  %v2113 = vld [vmem:[#allocation2 + $0x48] sm:$0xff]
  %v2114 = vadd.f32 %v2113, %v2040
  %v2115 = vxor.u32 %v2114, 2147483648
  %v2116 = vmul.f32 %v2115, 1.442695
  %v2117 = vpow.pop %v2116
  %v2118 = vadd.f32 %v2117, 1.0
  %v2119 = vrcp.pop %v2118
  %v2120 = vmul.f32 1.0, %v2119
  %v2121 = vld [vmem:[#allocation3 + $0x48] sm:$0xff]
  %v2122 = vmul.f32 %v2120, %v2110
  %v2123 = vadd.f32 %v2121, %v2122
  %v2124 = vtanh.pop %v2123
  %v2125 = vsub.f32 1.0, %v2120
  %2127 = vrot.lane.b32.xlu0 %v2124, 32
  %v2128 = vpop.permute.xlu0 %2127
  %v2130 = vmul.f32 %v2125, %v2128
  %v2131 = vmul.f32 %v2120, %v1965
  %v2132 = vadd.f32 %v2130, %v2131
  %2134 = vrot.lane.b32.xlu0 %v2132, 96
  %v2135 = vpop.permute.xlu0 %2134
  %2137 = vst.msk [vmem:[#allocation4 + $0x48] sm:$0xff] %vm428, %v2135
  %v2138 = vsel %vm428, %v2135, 0
  %2140 = vmatprep.subr.mxu0 0.0
  %2141 = vmatpush1.msra.mxu0 0.0
  %2142 = vmatprep.subr.mxu0 0.0
  %2143 = vmatpush1.msra.mxu0 0.0
  %2144 = vmatprep.subr.mxu0 0.0
  %2145 = vmatpush1.msra.mxu0 0.0
  %2146 = vmatprep.subr.mxu0 0.0
  %2147 = vmatpush1.msra.mxu0 0.0
  %2148 = vmatprep.subr.mxu0 0.0
  %2149 = vmatpush1.msra.mxu0 0.0
  %2150 = vmatprep.subr.mxu0 0.0
  %2151 = vmatpush1.msra.mxu0 0.0
  %2152 = vmatprep.subr.mxu0 0.0
  %2153 = vmatpush1.msra.mxu0 0.0
  %2154 = vmatprep.subr.mxu0 0.0
  %2155 = vmatpush1.msra.mxu0 0.0
  %2156 = vmatprep.subr.mxu0 0.0
  %2157 = vmatpush1.msra.mxu0 0.0
  %2158 = vmatprep.subr.mxu0 0.0
  %2159 = vmatpush1.msra.mxu0 0.0
  %2160 = vmatprep.subr.mxu0 0.0
  %2161 = vmatpush1.msra.mxu0 0.0
  %2162 = vmatprep.subr.mxu0 0.0
  %2163 = vmatpush1.msra.mxu0 0.0
  %2164 = vmatprep.subr.mxu0 0.0
  %2165 = vmatpush1.msra.mxu0 %v448
  %2166 = vmatprep.subr.mxu0 0.0
  %2167 = vmatpush1.msra.mxu0 %v447
  %2168 = vmatprep.subr.mxu0 0.0
  %2169 = vmatpush1.msra.mxu0 %v446
  %2170 = vmatprep.subr.mxu0 0.0
  %2171 = vmatpush1.msra.mxu0 %v445
  %2172 = vmatprep.subr.mxu0 0.0
  %2173 = vmatpush2.msra.mxu0 0.0
  %2174 = vmatprep.subr.mxu0 0.0
  %2175 = vmatpush2.msra.mxu0 0.0
  %2176 = vmatprep.subr.mxu0 0.0
  %2177 = vmatpush2.msra.mxu0 0.0
  %2178 = vmatprep.subr.mxu0 0.0
  %2179 = vmatpush2.msra.mxu0 0.0
  %2180 = vmatprep.subr.mxu0 0.0
  %2181 = vmatpush2.msra.mxu0 0.0
  %2182 = vmatprep.subr.mxu0 0.0
  %2183 = vmatpush2.msra.mxu0 0.0
  %2184 = vmatprep.subr.mxu0 0.0
  %2185 = vmatpush2.msra.mxu0 0.0
  %2186 = vmatprep.subr.mxu0 0.0
  %2187 = vmatpush2.msra.mxu0 0.0
  %2188 = vmatprep.subr.mxu0 0.0
  %2189 = vmatpush2.msra.mxu0 0.0
  %2190 = vmatprep.subr.mxu0 0.0
  %2191 = vmatpush2.msra.mxu0 0.0
  %2192 = vmatprep.subr.mxu0 0.0
  %2193 = vmatpush2.msra.mxu0 0.0
  %2194 = vmatprep.subr.mxu0 0.0
  %2195 = vmatpush2.msra.mxu0 0.0
  %2196 = vmatprep.subr.mxu0 0.0
  %2197 = vmatpush2.msra.mxu0 0.0
  %2198 = vmatprep.subr.mxu0 0.0
  %2199 = vmatpush2.msra.mxu0 0.0
  %2200 = vmatprep.subr.mxu0 0.0
  %2201 = vmatpush2.msra.mxu0 0.0
  %2202 = vmatprep.subr.mxu0 0.0
  %2203 = vmatpush2.msra.mxu0 0.0
  %2204 = vmatprep.mubr.f32.mxu0 0.0
  %2205 = vmatmul.mubr.f32.gmra.mxu0 %v2138
  %v2206 = vpop.f32.mrf.mxu0
  %v2207 = vadd.f32 %v458, %v2206
  %v2208 = vpop.f32.mrf.mxu0
  %2209 = vdwg.mxu0
  %2210 = vmatprep.subr.mxu0 0.0
  %2211 = vmatpush1.msra.mxu0 0.0
  %2212 = vmatprep.subr.mxu0 0.0
  %2213 = vmatpush1.msra.mxu0 0.0
  %2214 = vmatprep.subr.mxu0 0.0
  %2215 = vmatpush1.msra.mxu0 0.0
  %2216 = vmatprep.subr.mxu0 0.0
  %2217 = vmatpush1.msra.mxu0 0.0
  %2218 = vmatprep.subr.mxu0 0.0
  %2219 = vmatpush1.msra.mxu0 0.0
  %2220 = vmatprep.subr.mxu0 0.0
  %2221 = vmatpush1.msra.mxu0 0.0
  %2222 = vmatprep.subr.mxu0 0.0
  %2223 = vmatpush1.msra.mxu0 0.0
  %2224 = vmatprep.subr.mxu0 0.0
  %2225 = vmatpush1.msra.mxu0 0.0
  %2226 = vmatprep.subr.mxu0 0.0
  %2227 = vmatpush1.msra.mxu0 0.0
  %2228 = vmatprep.subr.mxu0 0.0
  %2229 = vmatpush1.msra.mxu0 0.0
  %2230 = vmatprep.subr.mxu0 0.0
  %2231 = vmatpush1.msra.mxu0 0.0
  %2232 = vmatprep.subr.mxu0 0.0
  %2233 = vmatpush1.msra.mxu0 0.0
  %2234 = vmatprep.subr.mxu0 0.0
  %2235 = vmatpush1.msra.mxu0 %v452
  %2236 = vmatprep.subr.mxu0 0.0
  %2237 = vmatpush1.msra.mxu0 %v451
  %2238 = vmatprep.subr.mxu0 0.0
  %2239 = vmatpush1.msra.mxu0 %v450
  %2240 = vmatprep.subr.mxu0 0.0
  %2241 = vmatpush1.msra.mxu0 %v449
  %2242 = vmatprep.subr.mxu0 0.0
  %2243 = vmatpush2.msra.mxu0 0.0
  %2244 = vmatprep.subr.mxu0 0.0
  %2245 = vmatpush2.msra.mxu0 0.0
  %2246 = vmatprep.subr.mxu0 0.0
  %2247 = vmatpush2.msra.mxu0 0.0
  %2248 = vmatprep.subr.mxu0 0.0
  %2249 = vmatpush2.msra.mxu0 0.0
  %2250 = vmatprep.subr.mxu0 0.0
  %2251 = vmatpush2.msra.mxu0 0.0
  %2252 = vmatprep.subr.mxu0 0.0
  %2253 = vmatpush2.msra.mxu0 0.0
  %2254 = vmatprep.subr.mxu0 0.0
  %2255 = vmatpush2.msra.mxu0 0.0
  %2256 = vmatprep.subr.mxu0 0.0
  %2257 = vmatpush2.msra.mxu0 0.0
  %2258 = vmatprep.subr.mxu0 0.0
  %2259 = vmatpush2.msra.mxu0 0.0
  %2260 = vmatprep.subr.mxu0 0.0
  %2261 = vmatpush2.msra.mxu0 0.0
  %2262 = vmatprep.subr.mxu0 0.0
  %2263 = vmatpush2.msra.mxu0 0.0
  %2264 = vmatprep.subr.mxu0 0.0
  %2265 = vmatpush2.msra.mxu0 0.0
  %2266 = vmatprep.subr.mxu0 0.0
  %2267 = vmatpush2.msra.mxu0 0.0
  %2268 = vmatprep.subr.mxu0 0.0
  %2269 = vmatpush2.msra.mxu0 0.0
  %2270 = vmatprep.subr.mxu0 0.0
  %2271 = vmatpush2.msra.mxu0 0.0
  %2272 = vmatprep.subr.mxu0 0.0
  %2273 = vmatpush2.msra.mxu0 0.0
  %2274 = vmatprep.mubr.f32.mxu0 0.0
  %2275 = vmatmul.mubr.f32.gmra.mxu0 %v2138
  %v2276 = vpop.f32.mrf.mxu0
  %v2277 = vadd.f32 %v465, %v2276
  %v2278 = vpop.f32.mrf.mxu0
  %2279 = vdwg.mxu0
  %v2280 = vld [vmem:[#allocation2 + $0x50] sm:$0xff]
  %v2281 = vadd.f32 %v2280, %v2207
  %v2282 = vxor.u32 %v2281, 2147483648
  %v2283 = vmul.f32 %v2282, 1.442695
  %v2284 = vpow.pop %v2283
  %v2285 = vadd.f32 %v2284, 1.0
  %v2286 = vrcp.pop %v2285
  %v2287 = vmul.f32 1.0, %v2286
  %v2288 = vld [vmem:[#allocation3 + $0x50] sm:$0xff]
  %v2289 = vmul.f32 %v2287, %v2277
  %v2290 = vadd.f32 %v2288, %v2289
  %v2291 = vtanh.pop %v2290
  %v2292 = vsub.f32 1.0, %v2287
  %2294 = vrot.lane.b32.xlu0 %v2291, 32
  %v2295 = vpop.permute.xlu0 %2294
  %v2297 = vmul.f32 %v2292, %v2295
  %v2298 = vmul.f32 %v2287, %v2132
  %v2299 = vadd.f32 %v2297, %v2298
  %2301 = vrot.lane.b32.xlu0 %v2299, 96
  %v2302 = vpop.permute.xlu0 %2301
  %2304 = vst.msk [vmem:[#allocation4 + $0x50] sm:$0xff] %vm428, %v2302
  %v2305 = vsel %vm428, %v2302, 0
  %2307 = vmatprep.subr.mxu0 0.0
  %2308 = vmatpush1.msra.mxu0 0.0
  %2309 = vmatprep.subr.mxu0 0.0
  %2310 = vmatpush1.msra.mxu0 0.0
  %2311 = vmatprep.subr.mxu0 0.0
  %2312 = vmatpush1.msra.mxu0 0.0
  %2313 = vmatprep.subr.mxu0 0.0
  %2314 = vmatpush1.msra.mxu0 0.0
  %2315 = vmatprep.subr.mxu0 0.0
  %2316 = vmatpush1.msra.mxu0 0.0
  %2317 = vmatprep.subr.mxu0 0.0
  %2318 = vmatpush1.msra.mxu0 0.0
  %2319 = vmatprep.subr.mxu0 0.0
  %2320 = vmatpush1.msra.mxu0 0.0
  %2321 = vmatprep.subr.mxu0 0.0
  %2322 = vmatpush1.msra.mxu0 0.0
  %2323 = vmatprep.subr.mxu0 0.0
  %2324 = vmatpush1.msra.mxu0 0.0
  %2325 = vmatprep.subr.mxu0 0.0
  %2326 = vmatpush1.msra.mxu0 0.0
  %2327 = vmatprep.subr.mxu0 0.0
  %2328 = vmatpush1.msra.mxu0 0.0
  %2329 = vmatprep.subr.mxu0 0.0
  %2330 = vmatpush1.msra.mxu0 0.0
  %2331 = vmatprep.subr.mxu0 0.0
  %2332 = vmatpush1.msra.mxu0 %v448
  %2333 = vmatprep.subr.mxu0 0.0
  %2334 = vmatpush1.msra.mxu0 %v447
  %2335 = vmatprep.subr.mxu0 0.0
  %2336 = vmatpush1.msra.mxu0 %v446
  %2337 = vmatprep.subr.mxu0 0.0
  %2338 = vmatpush1.msra.mxu0 %v445
  %2339 = vmatprep.subr.mxu0 0.0
  %2340 = vmatpush2.msra.mxu0 0.0
  %2341 = vmatprep.subr.mxu0 0.0
  %2342 = vmatpush2.msra.mxu0 0.0
  %2343 = vmatprep.subr.mxu0 0.0
  %2344 = vmatpush2.msra.mxu0 0.0
  %2345 = vmatprep.subr.mxu0 0.0
  %2346 = vmatpush2.msra.mxu0 0.0
  %2347 = vmatprep.subr.mxu0 0.0
  %2348 = vmatpush2.msra.mxu0 0.0
  %2349 = vmatprep.subr.mxu0 0.0
  %2350 = vmatpush2.msra.mxu0 0.0
  %2351 = vmatprep.subr.mxu0 0.0
  %2352 = vmatpush2.msra.mxu0 0.0
  %2353 = vmatprep.subr.mxu0 0.0
  %2354 = vmatpush2.msra.mxu0 0.0
  %2355 = vmatprep.subr.mxu0 0.0
  %2356 = vmatpush2.msra.mxu0 0.0
  %2357 = vmatprep.subr.mxu0 0.0
  %2358 = vmatpush2.msra.mxu0 0.0
  %2359 = vmatprep.subr.mxu0 0.0
  %2360 = vmatpush2.msra.mxu0 0.0
  %2361 = vmatprep.subr.mxu0 0.0
  %2362 = vmatpush2.msra.mxu0 0.0
  %2363 = vmatprep.subr.mxu0 0.0
  %2364 = vmatpush2.msra.mxu0 0.0
  %2365 = vmatprep.subr.mxu0 0.0
  %2366 = vmatpush2.msra.mxu0 0.0
  %2367 = vmatprep.subr.mxu0 0.0
  %2368 = vmatpush2.msra.mxu0 0.0
  %2369 = vmatprep.subr.mxu0 0.0
  %2370 = vmatpush2.msra.mxu0 0.0
  %2371 = vmatprep.mubr.f32.mxu0 0.0
  %2372 = vmatmul.mubr.f32.gmra.mxu0 %v2305
  %v2373 = vpop.f32.mrf.mxu0
  %v2374 = vadd.f32 %v458, %v2373
  %v2375 = vpop.f32.mrf.mxu0
  %2376 = vdwg.mxu0
  %2377 = vmatprep.subr.mxu0 0.0
  %2378 = vmatpush1.msra.mxu0 0.0
  %2379 = vmatprep.subr.mxu0 0.0
  %2380 = vmatpush1.msra.mxu0 0.0
  %2381 = vmatprep.subr.mxu0 0.0
  %2382 = vmatpush1.msra.mxu0 0.0
  %2383 = vmatprep.subr.mxu0 0.0
  %2384 = vmatpush1.msra.mxu0 0.0
  %2385 = vmatprep.subr.mxu0 0.0
  %2386 = vmatpush1.msra.mxu0 0.0
  %2387 = vmatprep.subr.mxu0 0.0
  %2388 = vmatpush1.msra.mxu0 0.0
  %2389 = vmatprep.subr.mxu0 0.0
  %2390 = vmatpush1.msra.mxu0 0.0
  %2391 = vmatprep.subr.mxu0 0.0
  %2392 = vmatpush1.msra.mxu0 0.0
  %2393 = vmatprep.subr.mxu0 0.0
  %2394 = vmatpush1.msra.mxu0 0.0
  %2395 = vmatprep.subr.mxu0 0.0
  %2396 = vmatpush1.msra.mxu0 0.0
  %2397 = vmatprep.subr.mxu0 0.0
  %2398 = vmatpush1.msra.mxu0 0.0
  %2399 = vmatprep.subr.mxu0 0.0
  %2400 = vmatpush1.msra.mxu0 0.0
  %2401 = vmatprep.subr.mxu0 0.0
  %2402 = vmatpush1.msra.mxu0 %v452
  %2403 = vmatprep.subr.mxu0 0.0
  %2404 = vmatpush1.msra.mxu0 %v451
  %2405 = vmatprep.subr.mxu0 0.0
  %2406 = vmatpush1.msra.mxu0 %v450
  %2407 = vmatprep.subr.mxu0 0.0
  %2408 = vmatpush1.msra.mxu0 %v449
  %2409 = vmatprep.subr.mxu0 0.0
  %2410 = vmatpush2.msra.mxu0 0.0
  %2411 = vmatprep.subr.mxu0 0.0
  %2412 = vmatpush2.msra.mxu0 0.0
  %2413 = vmatprep.subr.mxu0 0.0
  %2414 = vmatpush2.msra.mxu0 0.0
  %2415 = vmatprep.subr.mxu0 0.0
  %2416 = vmatpush2.msra.mxu0 0.0
  %2417 = vmatprep.subr.mxu0 0.0
  %2418 = vmatpush2.msra.mxu0 0.0
  %2419 = vmatprep.subr.mxu0 0.0
  %2420 = vmatpush2.msra.mxu0 0.0
  %2421 = vmatprep.subr.mxu0 0.0
  %2422 = vmatpush2.msra.mxu0 0.0
  %2423 = vmatprep.subr.mxu0 0.0
  %2424 = vmatpush2.msra.mxu0 0.0
  %2425 = vmatprep.subr.mxu0 0.0
  %2426 = vmatpush2.msra.mxu0 0.0
  %2427 = vmatprep.subr.mxu0 0.0
  %2428 = vmatpush2.msra.mxu0 0.0
  %2429 = vmatprep.subr.mxu0 0.0
  %2430 = vmatpush2.msra.mxu0 0.0
  %2431 = vmatprep.subr.mxu0 0.0
  %2432 = vmatpush2.msra.mxu0 0.0
  %2433 = vmatprep.subr.mxu0 0.0
  %2434 = vmatpush2.msra.mxu0 0.0
  %2435 = vmatprep.subr.mxu0 0.0
  %2436 = vmatpush2.msra.mxu0 0.0
  %2437 = vmatprep.subr.mxu0 0.0
  %2438 = vmatpush2.msra.mxu0 0.0
  %2439 = vmatprep.subr.mxu0 0.0
  %2440 = vmatpush2.msra.mxu0 0.0
  %2441 = vmatprep.mubr.f32.mxu0 0.0
  %2442 = vmatmul.mubr.f32.gmra.mxu0 %v2305
  %v2443 = vpop.f32.mrf.mxu0
  %v2444 = vadd.f32 %v465, %v2443
  %v2445 = vpop.f32.mrf.mxu0
  %2446 = vdwg.mxu0
  %v2447 = vld [vmem:[#allocation2 + $0x58] sm:$0xff]
  %v2448 = vadd.f32 %v2447, %v2374
  %v2449 = vxor.u32 %v2448, 2147483648
  %v2450 = vmul.f32 %v2449, 1.442695
  %v2451 = vpow.pop %v2450
  %v2452 = vadd.f32 %v2451, 1.0
  %v2453 = vrcp.pop %v2452
  %v2454 = vmul.f32 1.0, %v2453
  %v2455 = vld [vmem:[#allocation3 + $0x58] sm:$0xff]
  %v2456 = vmul.f32 %v2454, %v2444
  %v2457 = vadd.f32 %v2455, %v2456
  %v2458 = vtanh.pop %v2457
  %v2459 = vsub.f32 1.0, %v2454
  %2461 = vrot.lane.b32.xlu0 %v2458, 32
  %v2462 = vpop.permute.xlu0 %2461
  %v2464 = vmul.f32 %v2459, %v2462
  %v2465 = vmul.f32 %v2454, %v2299
  %v2466 = vadd.f32 %v2464, %v2465
  %2468 = vrot.lane.b32.xlu0 %v2466, 96
  %v2469 = vpop.permute.xlu0 %2468
  %2471 = vst.msk [vmem:[#allocation4 + $0x58] sm:$0xff] %vm428, %v2469
  %v2472 = vsel %vm428, %v2469, 0
  %2474 = vmatprep.subr.mxu0 0.0
  %2475 = vmatpush1.msra.mxu0 0.0
  %2476 = vmatprep.subr.mxu0 0.0
  %2477 = vmatpush1.msra.mxu0 0.0
  %2478 = vmatprep.subr.mxu0 0.0
  %2479 = vmatpush1.msra.mxu0 0.0
  %2480 = vmatprep.subr.mxu0 0.0
  %2481 = vmatpush1.msra.mxu0 0.0
  %2482 = vmatprep.subr.mxu0 0.0
  %2483 = vmatpush1.msra.mxu0 0.0
  %2484 = vmatprep.subr.mxu0 0.0
  %2485 = vmatpush1.msra.mxu0 0.0
  %2486 = vmatprep.subr.mxu0 0.0
  %2487 = vmatpush1.msra.mxu0 0.0
  %2488 = vmatprep.subr.mxu0 0.0
  %2489 = vmatpush1.msra.mxu0 0.0
  %2490 = vmatprep.subr.mxu0 0.0
  %2491 = vmatpush1.msra.mxu0 0.0
  %2492 = vmatprep.subr.mxu0 0.0
  %2493 = vmatpush1.msra.mxu0 0.0
  %2494 = vmatprep.subr.mxu0 0.0
  %2495 = vmatpush1.msra.mxu0 0.0
  %2496 = vmatprep.subr.mxu0 0.0
  %2497 = vmatpush1.msra.mxu0 0.0
  %2498 = vmatprep.subr.mxu0 0.0
  %2499 = vmatpush1.msra.mxu0 %v448
  %2500 = vmatprep.subr.mxu0 0.0
  %2501 = vmatpush1.msra.mxu0 %v447
  %2502 = vmatprep.subr.mxu0 0.0
  %2503 = vmatpush1.msra.mxu0 %v446
  %2504 = vmatprep.subr.mxu0 0.0
  %2505 = vmatpush1.msra.mxu0 %v445
  %2506 = vmatprep.subr.mxu0 0.0
  %2507 = vmatpush2.msra.mxu0 0.0
  %2508 = vmatprep.subr.mxu0 0.0
  %2509 = vmatpush2.msra.mxu0 0.0
  %2510 = vmatprep.subr.mxu0 0.0
  %2511 = vmatpush2.msra.mxu0 0.0
  %2512 = vmatprep.subr.mxu0 0.0
  %2513 = vmatpush2.msra.mxu0 0.0
  %2514 = vmatprep.subr.mxu0 0.0
  %2515 = vmatpush2.msra.mxu0 0.0
  %2516 = vmatprep.subr.mxu0 0.0
  %2517 = vmatpush2.msra.mxu0 0.0
  %2518 = vmatprep.subr.mxu0 0.0
  %2519 = vmatpush2.msra.mxu0 0.0
  %2520 = vmatprep.subr.mxu0 0.0
  %2521 = vmatpush2.msra.mxu0 0.0
  %2522 = vmatprep.subr.mxu0 0.0
  %2523 = vmatpush2.msra.mxu0 0.0
  %2524 = vmatprep.subr.mxu0 0.0
  %2525 = vmatpush2.msra.mxu0 0.0
  %2526 = vmatprep.subr.mxu0 0.0
  %2527 = vmatpush2.msra.mxu0 0.0
  %2528 = vmatprep.subr.mxu0 0.0
  %2529 = vmatpush2.msra.mxu0 0.0
  %2530 = vmatprep.subr.mxu0 0.0
  %2531 = vmatpush2.msra.mxu0 0.0
  %2532 = vmatprep.subr.mxu0 0.0
  %2533 = vmatpush2.msra.mxu0 0.0
  %2534 = vmatprep.subr.mxu0 0.0
  %2535 = vmatpush2.msra.mxu0 0.0
  %2536 = vmatprep.subr.mxu0 0.0
  %2537 = vmatpush2.msra.mxu0 0.0
  %2538 = vmatprep.mubr.f32.mxu0 0.0
  %2539 = vmatmul.mubr.f32.gmra.mxu0 %v2472
  %v2540 = vpop.f32.mrf.mxu0
  %v2541 = vadd.f32 %v458, %v2540
  %v2542 = vpop.f32.mrf.mxu0
  %2543 = vdwg.mxu0
  %2544 = vmatprep.subr.mxu0 0.0
  %2545 = vmatpush1.msra.mxu0 0.0
  %2546 = vmatprep.subr.mxu0 0.0
  %2547 = vmatpush1.msra.mxu0 0.0
  %2548 = vmatprep.subr.mxu0 0.0
  %2549 = vmatpush1.msra.mxu0 0.0
  %2550 = vmatprep.subr.mxu0 0.0
  %2551 = vmatpush1.msra.mxu0 0.0
  %2552 = vmatprep.subr.mxu0 0.0
  %2553 = vmatpush1.msra.mxu0 0.0
  %2554 = vmatprep.subr.mxu0 0.0
  %2555 = vmatpush1.msra.mxu0 0.0
  %2556 = vmatprep.subr.mxu0 0.0
  %2557 = vmatpush1.msra.mxu0 0.0
  %2558 = vmatprep.subr.mxu0 0.0
  %2559 = vmatpush1.msra.mxu0 0.0
  %2560 = vmatprep.subr.mxu0 0.0
  %2561 = vmatpush1.msra.mxu0 0.0
  %2562 = vmatprep.subr.mxu0 0.0
  %2563 = vmatpush1.msra.mxu0 0.0
  %2564 = vmatprep.subr.mxu0 0.0
  %2565 = vmatpush1.msra.mxu0 0.0
  %2566 = vmatprep.subr.mxu0 0.0
  %2567 = vmatpush1.msra.mxu0 0.0
  %2568 = vmatprep.subr.mxu0 0.0
  %2569 = vmatpush1.msra.mxu0 %v452
  %2570 = vmatprep.subr.mxu0 0.0
  %2571 = vmatpush1.msra.mxu0 %v451
  %2572 = vmatprep.subr.mxu0 0.0
  %2573 = vmatpush1.msra.mxu0 %v450
  %2574 = vmatprep.subr.mxu0 0.0
  %2575 = vmatpush1.msra.mxu0 %v449
  %2576 = vmatprep.subr.mxu0 0.0
  %2577 = vmatpush2.msra.mxu0 0.0
  %2578 = vmatprep.subr.mxu0 0.0
  %2579 = vmatpush2.msra.mxu0 0.0
  %2580 = vmatprep.subr.mxu0 0.0
  %2581 = vmatpush2.msra.mxu0 0.0
  %2582 = vmatprep.subr.mxu0 0.0
  %2583 = vmatpush2.msra.mxu0 0.0
  %2584 = vmatprep.subr.mxu0 0.0
  %2585 = vmatpush2.msra.mxu0 0.0
  %2586 = vmatprep.subr.mxu0 0.0
  %2587 = vmatpush2.msra.mxu0 0.0
  %2588 = vmatprep.subr.mxu0 0.0
  %2589 = vmatpush2.msra.mxu0 0.0
  %2590 = vmatprep.subr.mxu0 0.0
  %2591 = vmatpush2.msra.mxu0 0.0
  %2592 = vmatprep.subr.mxu0 0.0
  %2593 = vmatpush2.msra.mxu0 0.0
  %2594 = vmatprep.subr.mxu0 0.0
  %2595 = vmatpush2.msra.mxu0 0.0
  %2596 = vmatprep.subr.mxu0 0.0
  %2597 = vmatpush2.msra.mxu0 0.0
  %2598 = vmatprep.subr.mxu0 0.0
  %2599 = vmatpush2.msra.mxu0 0.0
  %2600 = vmatprep.subr.mxu0 0.0
  %2601 = vmatpush2.msra.mxu0 0.0
  %2602 = vmatprep.subr.mxu0 0.0
  %2603 = vmatpush2.msra.mxu0 0.0
  %2604 = vmatprep.subr.mxu0 0.0
  %2605 = vmatpush2.msra.mxu0 0.0
  %2606 = vmatprep.subr.mxu0 0.0
  %2607 = vmatpush2.msra.mxu0 0.0
  %2608 = vmatprep.mubr.f32.mxu0 0.0
  %2609 = vmatmul.mubr.f32.gmra.mxu0 %v2472
  %v2610 = vpop.f32.mrf.mxu0
  %v2611 = vadd.f32 %v465, %v2610
  %v2612 = vpop.f32.mrf.mxu0
  %2613 = vdwg.mxu0
  %v2614 = vld [vmem:[#allocation2 + $0x60] sm:$0xff]
  %v2615 = vadd.f32 %v2614, %v2541
  %v2616 = vxor.u32 %v2615, 2147483648
  %v2617 = vmul.f32 %v2616, 1.442695
  %v2618 = vpow.pop %v2617
  %v2619 = vadd.f32 %v2618, 1.0
  %v2620 = vrcp.pop %v2619
  %v2621 = vmul.f32 1.0, %v2620
  %v2622 = vld [vmem:[#allocation3 + $0x60] sm:$0xff]
  %v2623 = vmul.f32 %v2621, %v2611
  %v2624 = vadd.f32 %v2622, %v2623
  %v2625 = vtanh.pop %v2624
  %v2626 = vsub.f32 1.0, %v2621
  %2628 = vrot.lane.b32.xlu0 %v2625, 32
  %v2629 = vpop.permute.xlu0 %2628
  %v2631 = vmul.f32 %v2626, %v2629
  %v2632 = vmul.f32 %v2621, %v2466
  %v2633 = vadd.f32 %v2631, %v2632
  %2635 = vrot.lane.b32.xlu0 %v2633, 96
  %v2636 = vpop.permute.xlu0 %2635
  %2638 = vst.msk [vmem:[#allocation4 + $0x60] sm:$0xff] %vm428, %v2636
  %v2639 = vsel %vm428, %v2636, 0
  %2641 = vmatprep.subr.mxu0 0.0
  %2642 = vmatpush1.msra.mxu0 0.0
  %2643 = vmatprep.subr.mxu0 0.0
  %2644 = vmatpush1.msra.mxu0 0.0
  %2645 = vmatprep.subr.mxu0 0.0
  %2646 = vmatpush1.msra.mxu0 0.0
  %2647 = vmatprep.subr.mxu0 0.0
  %2648 = vmatpush1.msra.mxu0 0.0
  %2649 = vmatprep.subr.mxu0 0.0
  %2650 = vmatpush1.msra.mxu0 0.0
  %2651 = vmatprep.subr.mxu0 0.0
  %2652 = vmatpush1.msra.mxu0 0.0
  %2653 = vmatprep.subr.mxu0 0.0
  %2654 = vmatpush1.msra.mxu0 0.0
  %2655 = vmatprep.subr.mxu0 0.0
  %2656 = vmatpush1.msra.mxu0 0.0
  %2657 = vmatprep.subr.mxu0 0.0
  %2658 = vmatpush1.msra.mxu0 0.0
  %2659 = vmatprep.subr.mxu0 0.0
  %2660 = vmatpush1.msra.mxu0 0.0
  %2661 = vmatprep.subr.mxu0 0.0
  %2662 = vmatpush1.msra.mxu0 0.0
  %2663 = vmatprep.subr.mxu0 0.0
  %2664 = vmatpush1.msra.mxu0 0.0
  %2665 = vmatprep.subr.mxu0 0.0
  %2666 = vmatpush1.msra.mxu0 %v448
  %2667 = vmatprep.subr.mxu0 0.0
  %2668 = vmatpush1.msra.mxu0 %v447
  %2669 = vmatprep.subr.mxu0 0.0
  %2670 = vmatpush1.msra.mxu0 %v446
  %2671 = vmatprep.subr.mxu0 0.0
  %2672 = vmatpush1.msra.mxu0 %v445
  %2673 = vmatprep.subr.mxu0 0.0
  %2674 = vmatpush2.msra.mxu0 0.0
  %2675 = vmatprep.subr.mxu0 0.0
  %2676 = vmatpush2.msra.mxu0 0.0
  %2677 = vmatprep.subr.mxu0 0.0
  %2678 = vmatpush2.msra.mxu0 0.0
  %2679 = vmatprep.subr.mxu0 0.0
  %2680 = vmatpush2.msra.mxu0 0.0
  %2681 = vmatprep.subr.mxu0 0.0
  %2682 = vmatpush2.msra.mxu0 0.0
  %2683 = vmatprep.subr.mxu0 0.0
  %2684 = vmatpush2.msra.mxu0 0.0
  %2685 = vmatprep.subr.mxu0 0.0
  %2686 = vmatpush2.msra.mxu0 0.0
  %2687 = vmatprep.subr.mxu0 0.0
  %2688 = vmatpush2.msra.mxu0 0.0
  %2689 = vmatprep.subr.mxu0 0.0
  %2690 = vmatpush2.msra.mxu0 0.0
  %2691 = vmatprep.subr.mxu0 0.0
  %2692 = vmatpush2.msra.mxu0 0.0
  %2693 = vmatprep.subr.mxu0 0.0
  %2694 = vmatpush2.msra.mxu0 0.0
  %2695 = vmatprep.subr.mxu0 0.0
  %2696 = vmatpush2.msra.mxu0 0.0
  %2697 = vmatprep.subr.mxu0 0.0
  %2698 = vmatpush2.msra.mxu0 0.0
  %2699 = vmatprep.subr.mxu0 0.0
  %2700 = vmatpush2.msra.mxu0 0.0
  %2701 = vmatprep.subr.mxu0 0.0
  %2702 = vmatpush2.msra.mxu0 0.0
  %2703 = vmatprep.subr.mxu0 0.0
  %2704 = vmatpush2.msra.mxu0 0.0
  %2705 = vmatprep.mubr.f32.mxu0 0.0
  %2706 = vmatmul.mubr.f32.gmra.mxu0 %v2639
  %v2707 = vpop.f32.mrf.mxu0
  %v2708 = vadd.f32 %v458, %v2707
  %v2709 = vpop.f32.mrf.mxu0
  %2710 = vdwg.mxu0
  %2711 = vmatprep.subr.mxu0 0.0
  %2712 = vmatpush1.msra.mxu0 0.0
  %2713 = vmatprep.subr.mxu0 0.0
  %2714 = vmatpush1.msra.mxu0 0.0
  %2715 = vmatprep.subr.mxu0 0.0
  %2716 = vmatpush1.msra.mxu0 0.0
  %2717 = vmatprep.subr.mxu0 0.0
  %2718 = vmatpush1.msra.mxu0 0.0
  %2719 = vmatprep.subr.mxu0 0.0
  %2720 = vmatpush1.msra.mxu0 0.0
  %2721 = vmatprep.subr.mxu0 0.0
  %2722 = vmatpush1.msra.mxu0 0.0
  %2723 = vmatprep.subr.mxu0 0.0
  %2724 = vmatpush1.msra.mxu0 0.0
  %2725 = vmatprep.subr.mxu0 0.0
  %2726 = vmatpush1.msra.mxu0 0.0
  %2727 = vmatprep.subr.mxu0 0.0
  %2728 = vmatpush1.msra.mxu0 0.0
  %2729 = vmatprep.subr.mxu0 0.0
  %2730 = vmatpush1.msra.mxu0 0.0
  %2731 = vmatprep.subr.mxu0 0.0
  %2732 = vmatpush1.msra.mxu0 0.0
  %2733 = vmatprep.subr.mxu0 0.0
  %2734 = vmatpush1.msra.mxu0 0.0
  %2735 = vmatprep.subr.mxu0 0.0
  %2736 = vmatpush1.msra.mxu0 %v452
  %2737 = vmatprep.subr.mxu0 0.0
  %2738 = vmatpush1.msra.mxu0 %v451
  %2739 = vmatprep.subr.mxu0 0.0
  %2740 = vmatpush1.msra.mxu0 %v450
  %2741 = vmatprep.subr.mxu0 0.0
  %2742 = vmatpush1.msra.mxu0 %v449
  %2743 = vmatprep.subr.mxu0 0.0
  %2744 = vmatpush2.msra.mxu0 0.0
  %2745 = vmatprep.subr.mxu0 0.0
  %2746 = vmatpush2.msra.mxu0 0.0
  %2747 = vmatprep.subr.mxu0 0.0
  %2748 = vmatpush2.msra.mxu0 0.0
  %2749 = vmatprep.subr.mxu0 0.0
  %2750 = vmatpush2.msra.mxu0 0.0
  %2751 = vmatprep.subr.mxu0 0.0
  %2752 = vmatpush2.msra.mxu0 0.0
  %2753 = vmatprep.subr.mxu0 0.0
  %2754 = vmatpush2.msra.mxu0 0.0
  %2755 = vmatprep.subr.mxu0 0.0
  %2756 = vmatpush2.msra.mxu0 0.0
  %2757 = vmatprep.subr.mxu0 0.0
  %2758 = vmatpush2.msra.mxu0 0.0
  %2759 = vmatprep.subr.mxu0 0.0
  %2760 = vmatpush2.msra.mxu0 0.0
  %2761 = vmatprep.subr.mxu0 0.0
  %2762 = vmatpush2.msra.mxu0 0.0
  %2763 = vmatprep.subr.mxu0 0.0
  %2764 = vmatpush2.msra.mxu0 0.0
  %2765 = vmatprep.subr.mxu0 0.0
  %2766 = vmatpush2.msra.mxu0 0.0
  %2767 = vmatprep.subr.mxu0 0.0
  %2768 = vmatpush2.msra.mxu0 0.0
  %2769 = vmatprep.subr.mxu0 0.0
  %2770 = vmatpush2.msra.mxu0 0.0
  %2771 = vmatprep.subr.mxu0 0.0
  %2772 = vmatpush2.msra.mxu0 0.0
  %2773 = vmatprep.subr.mxu0 0.0
  %2774 = vmatpush2.msra.mxu0 0.0
  %2775 = vmatprep.mubr.f32.mxu0 0.0
  %2776 = vmatmul.mubr.f32.gmra.mxu0 %v2639
  %v2777 = vpop.f32.mrf.mxu0
  %v2778 = vadd.f32 %v465, %v2777
  %v2779 = vpop.f32.mrf.mxu0
  %2780 = vdwg.mxu0
  %v2781 = vld [vmem:[#allocation2 + $0x68] sm:$0xff]
  %v2782 = vadd.f32 %v2781, %v2708
  %v2783 = vxor.u32 %v2782, 2147483648
  %v2784 = vmul.f32 %v2783, 1.442695
  %v2785 = vpow.pop %v2784
  %v2786 = vadd.f32 %v2785, 1.0
  %v2787 = vrcp.pop %v2786
  %v2788 = vmul.f32 1.0, %v2787
  %v2789 = vld [vmem:[#allocation3 + $0x68] sm:$0xff]
  %v2790 = vmul.f32 %v2788, %v2778
  %v2791 = vadd.f32 %v2789, %v2790
  %v2792 = vtanh.pop %v2791
  %v2793 = vsub.f32 1.0, %v2788
  %2795 = vrot.lane.b32.xlu0 %v2792, 32
  %v2796 = vpop.permute.xlu0 %2795
  %v2798 = vmul.f32 %v2793, %v2796
  %v2799 = vmul.f32 %v2788, %v2633
  %v2800 = vadd.f32 %v2798, %v2799
  %2802 = vrot.lane.b32.xlu0 %v2800, 96
  %v2803 = vpop.permute.xlu0 %2802
  %2805 = vst.msk [vmem:[#allocation4 + $0x68] sm:$0xff] %vm428, %v2803
  %v2806 = vsel %vm428, %v2803, 0
  %2808 = vmatprep.subr.mxu0 0.0
  %2809 = vmatpush1.msra.mxu0 0.0
  %2810 = vmatprep.subr.mxu0 0.0
  %2811 = vmatpush1.msra.mxu0 0.0
  %2812 = vmatprep.subr.mxu0 0.0
  %2813 = vmatpush1.msra.mxu0 0.0
  %2814 = vmatprep.subr.mxu0 0.0
  %2815 = vmatpush1.msra.mxu0 0.0
  %2816 = vmatprep.subr.mxu0 0.0
  %2817 = vmatpush1.msra.mxu0 0.0
  %2818 = vmatprep.subr.mxu0 0.0
  %2819 = vmatpush1.msra.mxu0 0.0
  %2820 = vmatprep.subr.mxu0 0.0
  %2821 = vmatpush1.msra.mxu0 0.0
  %2822 = vmatprep.subr.mxu0 0.0
  %2823 = vmatpush1.msra.mxu0 0.0
  %2824 = vmatprep.subr.mxu0 0.0
  %2825 = vmatpush1.msra.mxu0 0.0
  %2826 = vmatprep.subr.mxu0 0.0
  %2827 = vmatpush1.msra.mxu0 0.0
  %2828 = vmatprep.subr.mxu0 0.0
  %2829 = vmatpush1.msra.mxu0 0.0
  %2830 = vmatprep.subr.mxu0 0.0
  %2831 = vmatpush1.msra.mxu0 0.0
  %2832 = vmatprep.subr.mxu0 0.0
  %2833 = vmatpush1.msra.mxu0 %v448
  %2834 = vmatprep.subr.mxu0 0.0
  %2835 = vmatpush1.msra.mxu0 %v447
  %2836 = vmatprep.subr.mxu0 0.0
  %2837 = vmatpush1.msra.mxu0 %v446
  %2838 = vmatprep.subr.mxu0 0.0
  %2839 = vmatpush1.msra.mxu0 %v445
  %2840 = vmatprep.subr.mxu0 0.0
  %2841 = vmatpush2.msra.mxu0 0.0
  %2842 = vmatprep.subr.mxu0 0.0
  %2843 = vmatpush2.msra.mxu0 0.0
  %2844 = vmatprep.subr.mxu0 0.0
  %2845 = vmatpush2.msra.mxu0 0.0
  %2846 = vmatprep.subr.mxu0 0.0
  %2847 = vmatpush2.msra.mxu0 0.0
  %2848 = vmatprep.subr.mxu0 0.0
  %2849 = vmatpush2.msra.mxu0 0.0
  %2850 = vmatprep.subr.mxu0 0.0
  %2851 = vmatpush2.msra.mxu0 0.0
  %2852 = vmatprep.subr.mxu0 0.0
  %2853 = vmatpush2.msra.mxu0 0.0
  %2854 = vmatprep.subr.mxu0 0.0
  %2855 = vmatpush2.msra.mxu0 0.0
  %2856 = vmatprep.subr.mxu0 0.0
  %2857 = vmatpush2.msra.mxu0 0.0
  %2858 = vmatprep.subr.mxu0 0.0
  %2859 = vmatpush2.msra.mxu0 0.0
  %2860 = vmatprep.subr.mxu0 0.0
  %2861 = vmatpush2.msra.mxu0 0.0
  %2862 = vmatprep.subr.mxu0 0.0
  %2863 = vmatpush2.msra.mxu0 0.0
  %2864 = vmatprep.subr.mxu0 0.0
  %2865 = vmatpush2.msra.mxu0 0.0
  %2866 = vmatprep.subr.mxu0 0.0
  %2867 = vmatpush2.msra.mxu0 0.0
  %2868 = vmatprep.subr.mxu0 0.0
  %2869 = vmatpush2.msra.mxu0 0.0
  %2870 = vmatprep.subr.mxu0 0.0
  %2871 = vmatpush2.msra.mxu0 0.0
  %2872 = vmatprep.mubr.f32.mxu0 0.0
  %2873 = vmatmul.mubr.f32.gmra.mxu0 %v2806
  %v2874 = vpop.f32.mrf.mxu0
  %v2875 = vadd.f32 %v458, %v2874
  %v2876 = vpop.f32.mrf.mxu0
  %2877 = vdwg.mxu0
  %2878 = vmatprep.subr.mxu0 0.0
  %2879 = vmatpush1.msra.mxu0 0.0
  %2880 = vmatprep.subr.mxu0 0.0
  %2881 = vmatpush1.msra.mxu0 0.0
  %2882 = vmatprep.subr.mxu0 0.0
  %2883 = vmatpush1.msra.mxu0 0.0
  %2884 = vmatprep.subr.mxu0 0.0
  %2885 = vmatpush1.msra.mxu0 0.0
  %2886 = vmatprep.subr.mxu0 0.0
  %2887 = vmatpush1.msra.mxu0 0.0
  %2888 = vmatprep.subr.mxu0 0.0
  %2889 = vmatpush1.msra.mxu0 0.0
  %2890 = vmatprep.subr.mxu0 0.0
  %2891 = vmatpush1.msra.mxu0 0.0
  %2892 = vmatprep.subr.mxu0 0.0
  %2893 = vmatpush1.msra.mxu0 0.0
  %2894 = vmatprep.subr.mxu0 0.0
  %2895 = vmatpush1.msra.mxu0 0.0
  %2896 = vmatprep.subr.mxu0 0.0
  %2897 = vmatpush1.msra.mxu0 0.0
  %2898 = vmatprep.subr.mxu0 0.0
  %2899 = vmatpush1.msra.mxu0 0.0
  %2900 = vmatprep.subr.mxu0 0.0
  %2901 = vmatpush1.msra.mxu0 0.0
  %2902 = vmatprep.subr.mxu0 0.0
  %2903 = vmatpush1.msra.mxu0 %v452
  %2904 = vmatprep.subr.mxu0 0.0
  %2905 = vmatpush1.msra.mxu0 %v451
  %2906 = vmatprep.subr.mxu0 0.0
  %2907 = vmatpush1.msra.mxu0 %v450
  %2908 = vmatprep.subr.mxu0 0.0
  %2909 = vmatpush1.msra.mxu0 %v449
  %2910 = vmatprep.subr.mxu0 0.0
  %2911 = vmatpush2.msra.mxu0 0.0
  %2912 = vmatprep.subr.mxu0 0.0
  %2913 = vmatpush2.msra.mxu0 0.0
  %2914 = vmatprep.subr.mxu0 0.0
  %2915 = vmatpush2.msra.mxu0 0.0
  %2916 = vmatprep.subr.mxu0 0.0
  %2917 = vmatpush2.msra.mxu0 0.0
  %2918 = vmatprep.subr.mxu0 0.0
  %2919 = vmatpush2.msra.mxu0 0.0
  %2920 = vmatprep.subr.mxu0 0.0
  %2921 = vmatpush2.msra.mxu0 0.0
  %2922 = vmatprep.subr.mxu0 0.0
  %2923 = vmatpush2.msra.mxu0 0.0
  %2924 = vmatprep.subr.mxu0 0.0
  %2925 = vmatpush2.msra.mxu0 0.0
  %2926 = vmatprep.subr.mxu0 0.0
  %2927 = vmatpush2.msra.mxu0 0.0
  %2928 = vmatprep.subr.mxu0 0.0
  %2929 = vmatpush2.msra.mxu0 0.0
  %2930 = vmatprep.subr.mxu0 0.0
  %2931 = vmatpush2.msra.mxu0 0.0
  %2932 = vmatprep.subr.mxu0 0.0
  %2933 = vmatpush2.msra.mxu0 0.0
  %2934 = vmatprep.subr.mxu0 0.0
  %2935 = vmatpush2.msra.mxu0 0.0
  %2936 = vmatprep.subr.mxu0 0.0
  %2937 = vmatpush2.msra.mxu0 0.0
  %2938 = vmatprep.subr.mxu0 0.0
  %2939 = vmatpush2.msra.mxu0 0.0
  %2940 = vmatprep.subr.mxu0 0.0
  %2941 = vmatpush2.msra.mxu0 0.0
  %2942 = vmatprep.mubr.f32.mxu0 0.0
  %2943 = vmatmul.mubr.f32.gmra.mxu0 %v2806
  %v2944 = vpop.f32.mrf.mxu0
  %v2945 = vadd.f32 %v465, %v2944
  %v2946 = vpop.f32.mrf.mxu0
  %2947 = vdwg.mxu0
  %v2948 = vld [vmem:[#allocation2 + $0x70] sm:$0xff]
  %v2949 = vadd.f32 %v2948, %v2875
  %v2950 = vxor.u32 %v2949, 2147483648
  %v2951 = vmul.f32 %v2950, 1.442695
  %v2952 = vpow.pop %v2951
  %v2953 = vadd.f32 %v2952, 1.0
  %v2954 = vrcp.pop %v2953
  %v2955 = vmul.f32 1.0, %v2954
  %v2956 = vld [vmem:[#allocation3 + $0x70] sm:$0xff]
  %v2957 = vmul.f32 %v2955, %v2945
  %v2958 = vadd.f32 %v2956, %v2957
  %v2959 = vtanh.pop %v2958
  %v2960 = vsub.f32 1.0, %v2955
  %2962 = vrot.lane.b32.xlu0 %v2959, 32
  %v2963 = vpop.permute.xlu0 %2962
  %v2965 = vmul.f32 %v2960, %v2963
  %v2966 = vmul.f32 %v2955, %v2800
  %v2967 = vadd.f32 %v2965, %v2966
  %2969 = vrot.lane.b32.xlu0 %v2967, 96
  %v2970 = vpop.permute.xlu0 %2969
  %2972 = vst.msk [vmem:[#allocation4 + $0x70] sm:$0xff] %vm428, %v2970
  %v2973 = vsel %vm428, %v2970, 0
  %2975 = vmatprep.subr.mxu0 0.0
  %2976 = vmatpush1.msra.mxu0 0.0
  %2977 = vmatprep.subr.mxu0 0.0
  %2978 = vmatpush1.msra.mxu0 0.0
  %2979 = vmatprep.subr.mxu0 0.0
  %2980 = vmatpush1.msra.mxu0 0.0
  %2981 = vmatprep.subr.mxu0 0.0
  %2982 = vmatpush1.msra.mxu0 0.0
  %2983 = vmatprep.subr.mxu0 0.0
  %2984 = vmatpush1.msra.mxu0 0.0
  %2985 = vmatprep.subr.mxu0 0.0
  %2986 = vmatpush1.msra.mxu0 0.0
  %2987 = vmatprep.subr.mxu0 0.0
  %2988 = vmatpush1.msra.mxu0 0.0
  %2989 = vmatprep.subr.mxu0 0.0
  %2990 = vmatpush1.msra.mxu0 0.0
  %2991 = vmatprep.subr.mxu0 0.0
  %2992 = vmatpush1.msra.mxu0 0.0
  %2993 = vmatprep.subr.mxu0 0.0
  %2994 = vmatpush1.msra.mxu0 0.0
  %2995 = vmatprep.subr.mxu0 0.0
  %2996 = vmatpush1.msra.mxu0 0.0
  %2997 = vmatprep.subr.mxu0 0.0
  %2998 = vmatpush1.msra.mxu0 0.0
  %2999 = vmatprep.subr.mxu0 0.0
  %3000 = vmatpush1.msra.mxu0 %v448
  %3001 = vmatprep.subr.mxu0 0.0
  %3002 = vmatpush1.msra.mxu0 %v447
  %3003 = vmatprep.subr.mxu0 0.0
  %3004 = vmatpush1.msra.mxu0 %v446
  %3005 = vmatprep.subr.mxu0 0.0
  %3006 = vmatpush1.msra.mxu0 %v445
  %3007 = vmatprep.subr.mxu0 0.0
  %3008 = vmatpush2.msra.mxu0 0.0
  %3009 = vmatprep.subr.mxu0 0.0
  %3010 = vmatpush2.msra.mxu0 0.0
  %3011 = vmatprep.subr.mxu0 0.0
  %3012 = vmatpush2.msra.mxu0 0.0
  %3013 = vmatprep.subr.mxu0 0.0
  %3014 = vmatpush2.msra.mxu0 0.0
  %3015 = vmatprep.subr.mxu0 0.0
  %3016 = vmatpush2.msra.mxu0 0.0
  %3017 = vmatprep.subr.mxu0 0.0
  %3018 = vmatpush2.msra.mxu0 0.0
  %3019 = vmatprep.subr.mxu0 0.0
  %3020 = vmatpush2.msra.mxu0 0.0
  %3021 = vmatprep.subr.mxu0 0.0
  %3022 = vmatpush2.msra.mxu0 0.0
  %3023 = vmatprep.subr.mxu0 0.0
  %3024 = vmatpush2.msra.mxu0 0.0
  %3025 = vmatprep.subr.mxu0 0.0
  %3026 = vmatpush2.msra.mxu0 0.0
  %3027 = vmatprep.subr.mxu0 0.0
  %3028 = vmatpush2.msra.mxu0 0.0
  %3029 = vmatprep.subr.mxu0 0.0
  %3030 = vmatpush2.msra.mxu0 0.0
  %3031 = vmatprep.subr.mxu0 0.0
  %3032 = vmatpush2.msra.mxu0 0.0
  %3033 = vmatprep.subr.mxu0 0.0
  %3034 = vmatpush2.msra.mxu0 0.0
  %3035 = vmatprep.subr.mxu0 0.0
  %3036 = vmatpush2.msra.mxu0 0.0
  %3037 = vmatprep.subr.mxu0 0.0
  %3038 = vmatpush2.msra.mxu0 0.0
  %3039 = vmatprep.mubr.f32.mxu0 0.0
  %3040 = vmatmul.mubr.f32.gmra.mxu0 %v2973
  %v3041 = vpop.f32.mrf.mxu0
  %v3042 = vadd.f32 %v458, %v3041
  %v3043 = vpop.f32.mrf.mxu0
  %3044 = vdwg.mxu0
  %3045 = vmatprep.subr.mxu0 0.0
  %3046 = vmatpush1.msra.mxu0 0.0
  %3047 = vmatprep.subr.mxu0 0.0
  %3048 = vmatpush1.msra.mxu0 0.0
  %3049 = vmatprep.subr.mxu0 0.0
  %3050 = vmatpush1.msra.mxu0 0.0
  %3051 = vmatprep.subr.mxu0 0.0
  %3052 = vmatpush1.msra.mxu0 0.0
  %3053 = vmatprep.subr.mxu0 0.0
  %3054 = vmatpush1.msra.mxu0 0.0
  %3055 = vmatprep.subr.mxu0 0.0
  %3056 = vmatpush1.msra.mxu0 0.0
  %3057 = vmatprep.subr.mxu0 0.0
  %3058 = vmatpush1.msra.mxu0 0.0
  %3059 = vmatprep.subr.mxu0 0.0
  %3060 = vmatpush1.msra.mxu0 0.0
  %3061 = vmatprep.subr.mxu0 0.0
  %3062 = vmatpush1.msra.mxu0 0.0
  %3063 = vmatprep.subr.mxu0 0.0
  %3064 = vmatpush1.msra.mxu0 0.0
  %3065 = vmatprep.subr.mxu0 0.0
  %3066 = vmatpush1.msra.mxu0 0.0
  %3067 = vmatprep.subr.mxu0 0.0
  %3068 = vmatpush1.msra.mxu0 0.0
  %3069 = vmatprep.subr.mxu0 0.0
  %3070 = vmatpush1.msra.mxu0 %v452
  %3071 = vmatprep.subr.mxu0 0.0
  %3072 = vmatpush1.msra.mxu0 %v451
  %3073 = vmatprep.subr.mxu0 0.0
  %3074 = vmatpush1.msra.mxu0 %v450
  %3075 = vmatprep.subr.mxu0 0.0
  %3076 = vmatpush1.msra.mxu0 %v449
  %3077 = vmatprep.subr.mxu0 0.0
  %3078 = vmatpush2.msra.mxu0 0.0
  %3079 = vmatprep.subr.mxu0 0.0
  %3080 = vmatpush2.msra.mxu0 0.0
  %3081 = vmatprep.subr.mxu0 0.0
  %3082 = vmatpush2.msra.mxu0 0.0
  %3083 = vmatprep.subr.mxu0 0.0
  %3084 = vmatpush2.msra.mxu0 0.0
  %3085 = vmatprep.subr.mxu0 0.0
  %3086 = vmatpush2.msra.mxu0 0.0
  %3087 = vmatprep.subr.mxu0 0.0
  %3088 = vmatpush2.msra.mxu0 0.0
  %3089 = vmatprep.subr.mxu0 0.0
  %3090 = vmatpush2.msra.mxu0 0.0
  %3091 = vmatprep.subr.mxu0 0.0
  %3092 = vmatpush2.msra.mxu0 0.0
  %3093 = vmatprep.subr.mxu0 0.0
  %3094 = vmatpush2.msra.mxu0 0.0
  %3095 = vmatprep.subr.mxu0 0.0
  %3096 = vmatpush2.msra.mxu0 0.0
  %3097 = vmatprep.subr.mxu0 0.0
  %3098 = vmatpush2.msra.mxu0 0.0
  %3099 = vmatprep.subr.mxu0 0.0
  %3100 = vmatpush2.msra.mxu0 0.0
  %3101 = vmatprep.subr.mxu0 0.0
  %3102 = vmatpush2.msra.mxu0 0.0
  %3103 = vmatprep.subr.mxu0 0.0
  %3104 = vmatpush2.msra.mxu0 0.0
  %3105 = vmatprep.subr.mxu0 0.0
  %3106 = vmatpush2.msra.mxu0 0.0
  %3107 = vmatprep.subr.mxu0 0.0
  %3108 = vmatpush2.msra.mxu0 0.0
  %3109 = vmatprep.mubr.f32.mxu0 0.0
  %3110 = vmatmul.mubr.f32.gmra.mxu0 %v2973
  %v3111 = vpop.f32.mrf.mxu0
  %v3112 = vadd.f32 %v465, %v3111
  %v3113 = vpop.f32.mrf.mxu0
  %3114 = vdwg.mxu0
  %v3115 = vld [vmem:[#allocation2 + $0x78] sm:$0xff]
  %v3116 = vadd.f32 %v3115, %v3042
  %v3117 = vxor.u32 %v3116, 2147483648
  %v3118 = vmul.f32 %v3117, 1.442695
  %v3119 = vpow.pop %v3118
  %v3120 = vadd.f32 %v3119, 1.0
  %v3121 = vrcp.pop %v3120
  %v3122 = vmul.f32 1.0, %v3121
  %v3123 = vld [vmem:[#allocation3 + $0x78] sm:$0xff]
  %v3124 = vmul.f32 %v3122, %v3112
  %v3125 = vadd.f32 %v3123, %v3124
  %v3126 = vtanh.pop %v3125
  %v3127 = vsub.f32 1.0, %v3122
  %3129 = vrot.lane.b32.xlu0 %v3126, 32
  %v3130 = vpop.permute.xlu0 %3129
  %v3132 = vmul.f32 %v3127, %v3130
  %v3133 = vmul.f32 %v3122, %v2967
  %v3134 = vadd.f32 %v3132, %v3133
  %3136 = vrot.lane.b32.xlu0 %v3134, 96
  %v3137 = vpop.permute.xlu0 %3136
  %3139 = vst.msk [vmem:[#allocation4 + $0x78] sm:$0xff] %vm428, %v3137
  %v3140 = vld [vmem:[#allocation4] sm:$0xff]
  %v3141 = vld [vmem:[#allocation4 + $0x8] sm:$0xff]
  %v3142 = vld [vmem:[#allocation4 + $0x10] sm:$0xff]
  %v3143 = vld [vmem:[#allocation4 + $0x18] sm:$0xff]
  %v3144 = vld [vmem:[#allocation4 + $0x20] sm:$0xff]
  %v3145 = vld [vmem:[#allocation4 + $0x28] sm:$0xff]
  %v3146 = vld [vmem:[#allocation4 + $0x30] sm:$0xff]
  %v3147 = vld [vmem:[#allocation4 + $0x38] sm:$0xff]
  %v3148 = vld [vmem:[#allocation4 + $0x40] sm:$0xff]
  %v3149 = vld [vmem:[#allocation4 + $0x48] sm:$0xff]
  %v3150 = vld [vmem:[#allocation4 + $0x50] sm:$0xff]
  %v3151 = vld [vmem:[#allocation4 + $0x58] sm:$0xff]
  %v3152 = vld [vmem:[#allocation4 + $0x60] sm:$0xff]
  %v3153 = vld [vmem:[#allocation4 + $0x68] sm:$0xff]
  %v3154 = vld [vmem:[#allocation4 + $0x70] sm:$0xff]
  %v3155 = vld [vmem:[#allocation4 + $0x78] sm:$0xff]
  %v3156 = vld [vmem:[%s9] sm:$0xff]
  %v3157 = vld [vmem:[%s9 + $0x8] sm:$0xff]
  %v3158 = vld [vmem:[%s9 + $0x10] sm:$0xff]
  %v3159 = vld [vmem:[%s9 + $0x18] sm:$0xff]
  %v3160 = vld [vmem:[%s10] sm:$0x1]
  %v3162 = vlaneseq
  %v3163 = vshrl.u32 %v3162, 7
  %v3164 = vsub.s32 0, %v3163
  %v3165 = vrot.slane %v3160, %v3164
  %v3168 = vsel %vm428, %v3140, 0
  %v3171 = vsel %vm428, %v3141, 0
  %v3174 = vsel %vm428, %v3142, 0
  %v3177 = vsel %vm428, %v3143, 0
  %v3180 = vsel %vm428, %v3144, 0
  %v3183 = vsel %vm428, %v3145, 0
  %v3186 = vsel %vm428, %v3146, 0
  %v3189 = vsel %vm428, %v3147, 0
  %v3192 = vsel %vm428, %v3148, 0
  %v3195 = vsel %vm428, %v3149, 0
  %v3198 = vsel %vm428, %v3150, 0
  %v3201 = vsel %vm428, %v3151, 0
  %v3204 = vsel %vm428, %v3152, 0
  %v3207 = vsel %vm428, %v3153, 0
  %v3210 = vsel %vm428, %v3154, 0
  %v3213 = vsel %vm428, %v3155, 0
  %3215 = vmatprep.subr.mxu0 0.0
  %3216 = vmatpush1.msra.mxu0 0.0
  %3217 = vmatprep.subr.mxu0 0.0
  %3218 = vmatpush1.msra.mxu0 0.0
  %3219 = vmatprep.subr.mxu0 0.0
  %3220 = vmatpush1.msra.mxu0 0.0
  %3221 = vmatprep.subr.mxu0 0.0
  %3222 = vmatpush1.msra.mxu0 0.0
  %3223 = vmatprep.subr.mxu0 0.0
  %3224 = vmatpush1.msra.mxu0 0.0
  %3225 = vmatprep.subr.mxu0 0.0
  %3226 = vmatpush1.msra.mxu0 0.0
  %3227 = vmatprep.subr.mxu0 0.0
  %3228 = vmatpush1.msra.mxu0 0.0
  %3229 = vmatprep.subr.mxu0 0.0
  %3230 = vmatpush1.msra.mxu0 0.0
  %3231 = vmatprep.subr.mxu0 0.0
  %3232 = vmatpush1.msra.mxu0 0.0
  %3233 = vmatprep.subr.mxu0 0.0
  %3234 = vmatpush1.msra.mxu0 0.0
  %3235 = vmatprep.subr.mxu0 0.0
  %3236 = vmatpush1.msra.mxu0 0.0
  %3237 = vmatprep.subr.mxu0 0.0
  %3238 = vmatpush1.msra.mxu0 0.0
  %3239 = vmatprep.subr.mxu0 0.0
  %3240 = vmatpush1.msra.mxu0 %v3159
  %3241 = vmatprep.subr.mxu0 0.0
  %3242 = vmatpush1.msra.mxu0 %v3158
  %3243 = vmatprep.subr.mxu0 0.0
  %3244 = vmatpush1.msra.mxu0 %v3157
  %3245 = vmatprep.subr.mxu0 0.0
  %3246 = vmatpush1.msra.mxu0 %v3156
  %3247 = vmatprep.subr.mxu0 0.0
  %3248 = vmatpush2.msra.mxu0 0.0
  %3249 = vmatprep.subr.mxu0 0.0
  %3250 = vmatpush2.msra.mxu0 0.0
  %3251 = vmatprep.subr.mxu0 0.0
  %3252 = vmatpush2.msra.mxu0 0.0
  %3253 = vmatprep.subr.mxu0 0.0
  %3254 = vmatpush2.msra.mxu0 0.0
  %3255 = vmatprep.subr.mxu0 0.0
  %3256 = vmatpush2.msra.mxu0 0.0
  %3257 = vmatprep.subr.mxu0 0.0
  %3258 = vmatpush2.msra.mxu0 0.0
  %3259 = vmatprep.subr.mxu0 0.0
  %3260 = vmatpush2.msra.mxu0 0.0
  %3261 = vmatprep.subr.mxu0 0.0
  %3262 = vmatpush2.msra.mxu0 0.0
  %3263 = vmatprep.subr.mxu0 0.0
  %3264 = vmatpush2.msra.mxu0 0.0
  %3265 = vmatprep.subr.mxu0 0.0
  %3266 = vmatpush2.msra.mxu0 0.0
  %3267 = vmatprep.subr.mxu0 0.0
  %3268 = vmatpush2.msra.mxu0 0.0
  %3269 = vmatprep.subr.mxu0 0.0
  %3270 = vmatpush2.msra.mxu0 0.0
  %3271 = vmatprep.subr.mxu0 0.0
  %3272 = vmatpush2.msra.mxu0 0.0
  %3273 = vmatprep.subr.mxu0 0.0
  %3274 = vmatpush2.msra.mxu0 0.0
  %3275 = vmatprep.subr.mxu0 0.0
  %3276 = vmatpush2.msra.mxu0 0.0
  %3277 = vmatprep.subr.mxu0 0.0
  %3278 = vmatpush2.msra.mxu0 0.0
  %3279 = vmatprep.mubr.f32.mxu0 0.0
  %3280 = vmatmul.mubr.f32.gmra.mxu0 %v3168
  %v3281 = vpop.f32.mrf.mxu0
  %v3282 = vadd.f32 %v3165, %v3281
  %v3283 = vpop.f32.mrf.mxu0
  %3284 = vmatprep.mubr.f32.mxu0 0.0
  %3285 = vmatmul.mubr.f32.gmra.mxu0 %v3171
  %v3286 = vpop.f32.mrf.mxu0
  %v3287 = vadd.f32 %v3165, %v3286
  %v3288 = vpop.f32.mrf.mxu0
  %3289 = vmatprep.mubr.f32.mxu0 0.0
  %3290 = vmatmul.mubr.f32.gmra.mxu0 %v3174
  %v3291 = vpop.f32.mrf.mxu0
  %v3292 = vadd.f32 %v3165, %v3291
  %v3293 = vpop.f32.mrf.mxu0
  %3294 = vmatprep.mubr.f32.mxu0 0.0
  %3295 = vmatmul.mubr.f32.gmra.mxu0 %v3177
  %v3296 = vpop.f32.mrf.mxu0
  %v3297 = vadd.f32 %v3165, %v3296
  %v3298 = vpop.f32.mrf.mxu0
  %3299 = vmatprep.mubr.f32.mxu0 0.0
  %3300 = vmatmul.mubr.f32.gmra.mxu0 %v3180
  %v3301 = vpop.f32.mrf.mxu0
  %v3302 = vadd.f32 %v3165, %v3301
  %v3303 = vpop.f32.mrf.mxu0
  %3304 = vmatprep.mubr.f32.mxu0 0.0
  %3305 = vmatmul.mubr.f32.gmra.mxu0 %v3183
  %v3306 = vpop.f32.mrf.mxu0
  %v3307 = vadd.f32 %v3165, %v3306
  %v3308 = vpop.f32.mrf.mxu0
  %3309 = vmatprep.mubr.f32.mxu0 0.0
  %3310 = vmatmul.mubr.f32.gmra.mxu0 %v3186
  %v3311 = vpop.f32.mrf.mxu0
  %v3312 = vadd.f32 %v3165, %v3311
  %v3313 = vpop.f32.mrf.mxu0
  %3314 = vmatprep.mubr.f32.mxu0 0.0
  %3315 = vmatmul.mubr.f32.gmra.mxu0 %v3189
  %v3316 = vpop.f32.mrf.mxu0
  %v3317 = vadd.f32 %v3165, %v3316
  %v3318 = vpop.f32.mrf.mxu0
  %3319 = vmatprep.mubr.f32.mxu0 0.0
  %3320 = vmatmul.mubr.f32.gmra.mxu0 %v3192
  %v3321 = vpop.f32.mrf.mxu0
  %v3322 = vadd.f32 %v3165, %v3321
  %v3323 = vpop.f32.mrf.mxu0
  %3324 = vmatprep.mubr.f32.mxu0 0.0
  %3325 = vmatmul.mubr.f32.gmra.mxu0 %v3195
  %v3326 = vpop.f32.mrf.mxu0
  %v3327 = vadd.f32 %v3165, %v3326
  %v3328 = vpop.f32.mrf.mxu0
  %3329 = vmatprep.mubr.f32.mxu0 0.0
  %3330 = vmatmul.mubr.f32.gmra.mxu0 %v3198
  %v3331 = vpop.f32.mrf.mxu0
  %v3332 = vadd.f32 %v3165, %v3331
  %v3333 = vpop.f32.mrf.mxu0
  %3334 = vmatprep.mubr.f32.mxu0 0.0
  %3335 = vmatmul.mubr.f32.gmra.mxu0 %v3201
  %v3336 = vpop.f32.mrf.mxu0
  %v3337 = vadd.f32 %v3165, %v3336
  %v3338 = vpop.f32.mrf.mxu0
  %3339 = vmatprep.mubr.f32.mxu0 0.0
  %3340 = vmatmul.mubr.f32.gmra.mxu0 %v3204
  %v3341 = vpop.f32.mrf.mxu0
  %v3342 = vadd.f32 %v3165, %v3341
  %v3343 = vpop.f32.mrf.mxu0
  %3344 = vmatprep.mubr.f32.mxu0 0.0
  %3345 = vmatmul.mubr.f32.gmra.mxu0 %v3207
  %v3346 = vpop.f32.mrf.mxu0
  %v3347 = vadd.f32 %v3165, %v3346
  %v3348 = vpop.f32.mrf.mxu0
  %3349 = vmatprep.mubr.f32.mxu0 0.0
  %3350 = vmatmul.mubr.f32.gmra.mxu0 %v3210
  %v3351 = vpop.f32.mrf.mxu0
  %v3352 = vadd.f32 %v3165, %v3351
  %v3353 = vpop.f32.mrf.mxu0
  %3354 = vmatprep.mubr.f32.mxu0 0.0
  %3355 = vmatmul.mubr.f32.gmra.mxu0 %v3213
  %v3356 = vpop.f32.mrf.mxu0
  %v3357 = vadd.f32 %v3165, %v3356
  %v3358 = vpop.f32.mrf.mxu0
  %3359 = vdwg.mxu0
  %3360 = vst [vmem:[%s11] sm:$0xff] %v3282
  %3361 = vst [vmem:[%s11 + $0x8] sm:$0xff] %v3287
  %3362 = vst [vmem:[%s11 + $0x10] sm:$0xff] %v3292
  %3363 = vst [vmem:[%s11 + $0x18] sm:$0xff] %v3297
  %3364 = vst [vmem:[%s11 + $0x20] sm:$0xff] %v3302
  %3365 = vst [vmem:[%s11 + $0x28] sm:$0xff] %v3307
  %3366 = vst [vmem:[%s11 + $0x30] sm:$0xff] %v3312
  %3367 = vst [vmem:[%s11 + $0x38] sm:$0xff] %v3317
  %3368 = vst [vmem:[%s11 + $0x40] sm:$0xff] %v3322
  %3369 = vst [vmem:[%s11 + $0x48] sm:$0xff] %v3327
  %3370 = vst [vmem:[%s11 + $0x50] sm:$0xff] %v3332
  %3371 = vst [vmem:[%s11 + $0x58] sm:$0xff] %v3337
  %3372 = vst [vmem:[%s11 + $0x60] sm:$0xff] %v3342
  %3373 = vst [vmem:[%s11 + $0x68] sm:$0xff] %v3347
  %3374 = vst [vmem:[%s11 + $0x70] sm:$0xff] %v3352
  %3375 = vst [vmem:[%s11 + $0x78] sm:$0xff] %v3357
  // Predicated region
  $region46: #{gru_along_frequency_forward.1} parent=0 // pred_check
    _
  $region47: #{gru_along_frequency_forward.1} parent=0 // pred_check_branch
    %3377 = sbr.rel (0) target = $region49
  $region48: #{gru_along_frequency_forward.1} parent=0 // pred_region
    _
  $region49: #{gru_along_frequency_forward.1} parent=0 // pred_fallthru
    _
  // Predicated region
  $region50: #{gru_along_frequency_forward.1} parent=0 // pred_check
    _
  $region51: #{gru_along_frequency_forward.1} parent=0 // pred_check_branch
    %3379 = sbr.rel (0) target = $region53
  $region52: #{gru_along_frequency_forward.1} parent=0 // pred_region
    _
  $region53: #{gru_along_frequency_forward.1} parent=0 // pred_fallthru
    _

</llo_original>
